<compile_context>
chip_gen: v6e
topology: v6e:2x2x1
jax: 0.10.0
libtpu: 0.0.40
codegen_flags: <defaults>
</compile_context>

<pallas_src>
import functools

import jax
import jax.numpy as jnp
from jax import lax
from jax.experimental import pallas as pl
from jax.experimental.pallas import tpu as pltpu

BN_EPS = 1e-5
LANE = 128
SUBLANE_BF16 = 16


def _round_up(x, m):
    return (x + m - 1) // m * m


def _vmem_limit_bytes():
    # Generation-aware scoped-VMEM budget: ~3/4 of physical, capped at 96 MiB
    # (-> 48 MiB on v7x's 64 MiB, 96 MiB on v5e/v6e's 128 MiB).  Conservative
    # 64 MiB physical assumed if the query fails.
    cap = 64 * 1024 * 1024
    try:
        cap = int(getattr(pltpu.get_tpu_info(), "vmem_capacity_bytes", cap))
    except Exception:
        pass
    return int(min(cap * 3 // 4, 96 * 1024 * 1024))


VMEM_LIMIT = _vmem_limit_bytes()
# Weights up to this size are kept fully resident in VMEM (no K grid axis).
RESIDENT_W_BYTES = min(8 * 1024 * 1024, VMEM_LIMIT // 4)
# Larger M tiles amortize per-grid-step overhead; stay <=256 on 64 MiB parts.
TM_MAX = 512 if VMEM_LIMIT >= 64 * 1024 * 1024 else 256


def _tile_m(m):
    # bf16 operands pack (16,128) vregs -> round small tiles up to 16 sublanes.
    if m >= TM_MAX:
        return TM_MAX
    return max(SUBLANE_BF16, _round_up(m, SUBLANE_BF16))


# ---------------------------------------------------------------------------
# Kernel 1: conv-as-GEMM with fused per-channel sum / sum-of-squares.
#   Resident-weight variant: single "parallel" M-tile grid axis, the full
#   (kpad, cpad) weight has a constant index_map (fetched once, kept in VMEM),
#   one MXU dot per tile, bf16 y output, per-tile partial stats written to an
#   8-row lane-aligned block (row 0 holds the sums) so no block is shared
#   across the parallel axis.
# ---------------------------------------------------------------------------
def _gemm_stats_resident_kernel(a_ref, w_ref, y_ref, s1_ref, s2_ref):
    acc = jnp.dot(a_ref[...], w_ref[...], preferred_element_type=jnp.float32)
    y_ref[...] = acc.astype(y_ref.dtype)
    s1_ref[...] = jnp.broadcast_to(jnp.sum(acc, axis=0, keepdims=True),
                                   s1_ref.shape)
    s2_ref[...] = jnp.broadcast_to(jnp.sum(acc * acc, axis=0, keepdims=True),
                                   s2_ref.shape)


# K-tiled fallback (weight too big for a resident block): f32 accumulator
# scratch with pl.when init/finalize; stats still per-M-tile -> M stays
# "parallel", K is "arbitrary".
def _gemm_stats_ktiled_kernel(a_ref, w_ref, y_ref, s1_ref, s2_ref, acc_ref):
    k = pl.program_id(1)

    @pl.when(k == 0)
    def _():
        acc_ref[...] = jnp.zeros_like(acc_ref)

    acc_ref[...] += jnp.dot(a_ref[...], w_ref[...],
                            preferred_element_type=jnp.float32)

    @pl.when(k == pl.num_programs(1) - 1)
    def _():
        acc = acc_ref[...]
        y_ref[...] = acc.astype(y_ref.dtype)
        s1_ref[...] = jnp.broadcast_to(jnp.sum(acc, axis=0, keepdims=True),
                                       s1_ref.shape)
        s2_ref[...] = jnp.broadcast_to(jnp.sum(acc * acc, axis=0, keepdims=True),
                                       s2_ref.shape)


def gemm_with_stats(a_bf16, w_mat):
    """a_bf16: (M, K) bf16, w_mat: (K, Cout) f32.

    Returns (y (Mpad, Cpad) bf16, sum (1, Cpad) f32, sumsq (1, Cpad) f32).
    """
    M, K = a_bf16.shape
    cout = w_mat.shape[1]
    cpad = _round_up(cout, LANE)
    tm = _tile_m(M)
    mpad = _round_up(M, tm)
    n_tiles = mpad // tm

    resident = _round_up(K, LANE) * cpad * 2 <= RESIDENT_W_BYTES
    out_shapes = (jax.ShapeDtypeStruct((mpad, cpad), jnp.bfloat16),
                  jax.ShapeDtypeStruct((n_tiles * 8, cpad), jnp.float32),
                  jax.ShapeDtypeStruct((n_tiles * 8, cpad), jnp.float32))

    if resident:
        kpad = _round_up(K, LANE)
        a_p = jnp.pad(a_bf16, ((0, mpad - M), (0, kpad - K)))
        w_p = jnp.pad(w_mat.astype(jnp.bfloat16),
                      ((0, kpad - K), (0, cpad - cout)))
        y, s1_raw, s2_raw = pl.pallas_call(
            _gemm_stats_resident_kernel,
            out_shape=out_shapes,
            grid_spec=pltpu.PrefetchScalarGridSpec(
                num_scalar_prefetch=0,
                grid=(n_tiles,),
                in_specs=[pl.BlockSpec((tm, kpad), lambda i: (i, 0)),
                          # constant index map -> weight resident across grid
                          pl.BlockSpec((kpad, cpad), lambda i: (0, 0))],
                out_specs=[pl.BlockSpec((tm, cpad), lambda i: (i, 0)),
                           pl.BlockSpec((8, cpad), lambda i: (i, 0)),
                           pl.BlockSpec((8, cpad), lambda i: (i, 0))]),
            compiler_params=pltpu.CompilerParams(
                dimension_semantics=("parallel",),
                vmem_limit_bytes=VMEM_LIMIT),
        )(a_p, w_p)
    else:
        tk = 256 if K >= 256 else LANE
        kpad = _round_up(K, tk)
        a_p = jnp.pad(a_bf16, ((0, mpad - M), (0, kpad - K)))
        w_p = jnp.pad(w_mat.astype(jnp.bfloat16),
                      ((0, kpad - K), (0, cpad - cout)))
        y, s1_raw, s2_raw = pl.pallas_call(
            _gemm_stats_ktiled_kernel,
            out_shape=out_shapes,
            grid_spec=pltpu.PrefetchScalarGridSpec(
                num_scalar_prefetch=0,
                grid=(n_tiles, kpad // tk),
                in_specs=[pl.BlockSpec((tm, tk), lambda i, k: (i, k)),
                          pl.BlockSpec((tk, cpad), lambda i, k: (k, 0))],
                out_specs=[pl.BlockSpec((tm, cpad), lambda i, k: (i, 0)),
                           pl.BlockSpec((8, cpad), lambda i, k: (i, 0)),
                           pl.BlockSpec((8, cpad), lambda i, k: (i, 0))],
                scratch_shapes=[pltpu.VMEM((tm, cpad), jnp.float32)]),
            compiler_params=pltpu.CompilerParams(
                dimension_semantics=("parallel", "arbitrary"),
                vmem_limit_bytes=VMEM_LIMIT),
        )(a_p, w_p)

    # Row 0 of every 8-row block holds that tile's sums; reduce the tiny
    # (n_tiles, cpad) partials in plain JAX.
    s1 = jnp.sum(s1_raw.reshape(n_tiles, 8, cpad)[:, 0, :], axis=0,
                 keepdims=True)
    s2 = jnp.sum(s2_raw.reshape(n_tiles, 8, cpad)[:, 0, :], axis=0,
                 keepdims=True)
    return y, s1, s2


# ---------------------------------------------------------------------------
# Kernel 2: BN epilogue.  scale/shift are hoisted to per-channel f32 vectors
# outside the kernel; per element the kernel does one multiply-add, optional
# ReLU and optional post-ReLU residual add, writing bf16 in place over y.
# ---------------------------------------------------------------------------
def _bn_act_kernel(*refs, apply_relu, has_residual):
    if has_residual:
        y_ref, scale_ref, shift_ref, r_ref, o_ref = refs
    else:
        y_ref, scale_ref, shift_ref, o_ref = refs
    out = y_ref[...].astype(jnp.float32) * scale_ref[...] + shift_ref[...]
    if apply_relu:
        out = jnp.maximum(out, 0.0)
    if has_residual:
        out = out + r_ref[...].astype(jnp.float32)  # shortcut added AFTER ReLU
    o_ref[...] = out.astype(o_ref.dtype)


def bn_act(y_pad, s1, s2, gamma, beta, *, count, apply_relu, residual_pad=None):
    mpad, cpad = y_pad.shape
    cout = gamma.shape[0]
    tm = _tile_m(mpad)

    # Training-mode BatchNorm batch statistics (biased variance).  Padded
    # rows/channels contribute zeros to s1/s2 and count uses only real rows,
    # so the statistics are exact.
    # TODO(synk): E[x^2]-mean^2 in f32 can lose precision at very large M;
    # switch to a two-pass / Welford scheme if tolerances tighten.
    inv_n = 1.0 / float(count)
    mean = s1 * inv_n
    var = jnp.maximum(s2 * inv_n - mean * mean, 0.0)
    g_p = jnp.pad(gamma.reshape(1, -1), ((0, 0), (0, cpad - cout)))
    b_p = jnp.pad(beta.reshape(1, -1), ((0, 0), (0, cpad - cout)))
    scale = g_p * lax.rsqrt(var + BN_EPS)
    shift = b_p - mean * scale

    tile_spec = pl.BlockSpec((tm, cpad), lambda i: (i, 0))
    vec_spec = pl.BlockSpec((1, cpad), lambda i: (0, 0))
    inputs = [y_pad, scale, shift]
    in_specs = [tile_spec, vec_spec, vec_spec]
    if residual_pad is not None:
        inputs.append(residual_pad)
        in_specs.append(tile_spec)

    kernel = functools.partial(_bn_act_kernel, apply_relu=apply_relu,
                               has_residual=residual_pad is not None)
    return pl.pallas_call(
        kernel,
        out_shape=jax.ShapeDtypeStruct((mpad, cpad), jnp.bfloat16),
        grid_spec=pltpu.PrefetchScalarGridSpec(
            num_scalar_prefetch=0,
            grid=(mpad // tm,),
            in_specs=in_specs,
            out_specs=tile_spec),
        input_output_aliases={0: 0},  # write the result in place over y
        compiler_params=pltpu.CompilerParams(
            dimension_semantics=("parallel",),
            vmem_limit_bytes=VMEM_LIMIT),
    )(*inputs)


# ---------------------------------------------------------------------------
# Kernel 3: GEMM + bias (+ optional ReLU) for the Linear layers
# (resident-weight single-axis variant + K-tiled fallback).
# ---------------------------------------------------------------------------
def _gemm_bias_resident_kernel(a_ref, w_ref, b_ref, o_ref, *, apply_relu):
    out = jnp.dot(a_ref[...], w_ref[...],
                  preferred_element_type=jnp.float32) + b_ref[...]
    if apply_relu:
        out = jnp.maximum(out, 0.0)
    o_ref[...] = out.astype(o_ref.dtype)


def _gemm_bias_ktiled_kernel(a_ref, w_ref, b_ref, o_ref, acc_ref, *, apply_relu):
    k = pl.program_id(1)

    @pl.when(k == 0)
    def _():
        acc_ref[...] = jnp.zeros_like(acc_ref)

    acc_ref[...] += jnp.dot(a_ref[...], w_ref[...],
                            preferred_element_type=jnp.float32)

    @pl.when(k == pl.num_programs(1) - 1)
    def _():
        out = acc_ref[...] + b_ref[...]
        if apply_relu:
            out = jnp.maximum(out, 0.0)
        o_ref[...] = out.astype(o_ref.dtype)


def linear_layer(x_bf16, w_oi, bias, *, apply_relu, out_dtype):
    """PyTorch Linear: y = x @ w_oi.T + bias   (w_oi is (Cout, K), x bf16)."""
    M, K = x_bf16.shape
    cout = w_oi.shape[0]
    cpad = _round_up(cout, LANE)
    tm = _tile_m(M)
    mpad = _round_up(M, tm)

    b_p = jnp.pad(bias.reshape(1, -1).astype(jnp.float32),
                  ((0, 0), (0, cpad - cout)))
    w_t = jnp.transpose(w_oi).astype(jnp.bfloat16)
    resident = _round_up(K, LANE) * cpad * 2 <= RESIDENT_W_BYTES

    if resident:
        kpad = _round_up(K, LANE)
        a_p = jnp.pad(x_bf16, ((0, mpad - M), (0, kpad - K)))
        w_p = jnp.pad(w_t, ((0, kpad - K), (0, cpad - cout)))
        out = pl.pallas_call(
            functools.partial(_gemm_bias_resident_kernel, apply_relu=apply_relu),
            out_shape=jax.ShapeDtypeStruct((mpad, cpad), out_dtype),
            grid_spec=pltpu.PrefetchScalarGridSpec(
                num_scalar_prefetch=0,
                grid=(mpad // tm,),
                in_specs=[pl.BlockSpec((tm, kpad), lambda i: (i, 0)),
                          pl.BlockSpec((kpad, cpad), lambda i: (0, 0)),
                          pl.BlockSpec((1, cpad), lambda i: (0, 0))],
                out_specs=pl.BlockSpec((tm, cpad), lambda i: (i, 0))),
            compiler_params=pltpu.CompilerParams(
                dimension_semantics=("parallel",),
                vmem_limit_bytes=VMEM_LIMIT),
        )(a_p, w_p, b_p)
    else:
        tk = 256 if K >= 256 else LANE
        kpad = _round_up(K, tk)
        a_p = jnp.pad(x_bf16, ((0, mpad - M), (0, kpad - K)))
        w_p = jnp.pad(w_t, ((0, kpad - K), (0, cpad - cout)))
        out = pl.pallas_call(
            functools.partial(_gemm_bias_ktiled_kernel, apply_relu=apply_relu),
            out_shape=jax.ShapeDtypeStruct((mpad, cpad), out_dtype),
            grid_spec=pltpu.PrefetchScalarGridSpec(
                num_scalar_prefetch=0,
                grid=(mpad // tm, kpad // tk),
                in_specs=[pl.BlockSpec((tm, tk), lambda i, k: (i, k)),
                          pl.BlockSpec((tk, cpad), lambda i, k: (k, 0)),
                          pl.BlockSpec((1, cpad), lambda i, k: (0, 0))],
                out_specs=pl.BlockSpec((tm, cpad), lambda i, k: (i, 0)),
                scratch_shapes=[pltpu.VMEM((tm, cpad), jnp.float32)]),
            compiler_params=pltpu.CompilerParams(
                dimension_semantics=("parallel", "arbitrary"),
                vmem_limit_bytes=VMEM_LIMIT),
        )(a_p, w_p, b_p)
    return out[:M, :cout]


# ---------------------------------------------------------------------------
# Plain-JAX glue: bf16 im2col patch extraction (NHWC) and weight flattening.
# ---------------------------------------------------------------------------
def conv_patches_nhwc(x_nhwc, kh, kw, stride, padding):
    n, h, w, c = x_nhwc.shape
    xp = jnp.pad(x_nhwc, ((0, 0), (padding, padding), (padding, padding), (0, 0)))
    hp, wp = h + 2 * padding, w + 2 * padding
    ho = (hp - kh) // stride + 1
    wo = (wp - kw) // stride + 1
    cols = []
    for dh in range(kh):
        for dw in range(kw):
            cols.append(xp[:,
                           dh:dh + (ho - 1) * stride + 1:stride,
                           dw:dw + (wo - 1) * stride + 1:stride, :])
    patches = jnp.concatenate(cols, axis=-1)  # (N, Ho, Wo, kh*kw*C), bf16
    return patches.reshape(n * ho * wo, kh * kw * c), (n, ho, wo)


def flatten_conv_weight(w_oihw):
    # (Cout, Cin, kh, kw) -> (kh*kw*Cin, Cout), matching the patch ordering.
    cout, cin, kh, kw = w_oihw.shape
    return jnp.transpose(w_oihw, (2, 3, 1, 0)).reshape(kh * kw * cin, cout)


def conv_bn_act(x_nhwc, w_oihw, gamma, beta, *, stride, padding, apply_relu,
                residual_pad=None):
    """conv (no bias) -> BN(training batch stats) [-> ReLU] [+ residual].

    x_nhwc is bf16; returns (out_nhwc bf16, out_pad bf16 (Mpad, Cpad))."""
    cout = w_oihw.shape[0]
    a, (n, ho, wo) = conv_patches_nhwc(x_nhwc, w_oihw.shape[2], w_oihw.shape[3],
                                       stride, padding)
    y, s1, s2 = gemm_with_stats(a, flatten_conv_weight(w_oihw))
    out_pad = bn_act(y, s1, s2, gamma, beta, count=a.shape[0],
                     apply_relu=apply_relu, residual_pad=residual_pad)
    out_nhwc = out_pad[:a.shape[0], :cout].reshape(n, ho, wo, cout)
    return out_nhwc, out_pad


# ---------------------------------------------------------------------------
# wide_basic block and Wide_ResNet forward (bn=True default path).
# TODO(synk): the bn=False variant (conv bias + ReLU, no BN) is not needed by
# the default construction and is not implemented here.
# ---------------------------------------------------------------------------
def wide_basic_forward(x_nhwc, p, *, stride, in_planes, planes):
    # out = relu(bn1(conv1(x)))      (conv1: 3x3, stride 1, pad 1, no bias)
    out1, _ = conv_bn_act(x_nhwc, p["w1"], p["g1"], p["b1"],
                          stride=1, padding=1, apply_relu=True)

    if stride != 1 or in_planes != planes:
        # 1x1 strided conv (bias=True) + BN.  The conv bias cancels exactly
        # under training-mode BN mean subtraction, so it is not applied in
        # the kernel path (the f32 reference applies it, faithfully to torch).
        _, sc_pad = conv_bn_act(x_nhwc, p["w_sc"], p["g_sc"], p["b_sc"],
                                stride=stride, padding=0, apply_relu=False)
    else:
        # identity shortcut laid out as the padded bf16 (Mpad, Cpad) matrix.
        n, h, w, c = x_nhwc.shape
        m = n * h * w
        mpad = _round_up(m, _tile_m(m))
        cpad = _round_up(planes, LANE)
        sc_pad = jnp.pad(x_nhwc.reshape(m, c), ((0, mpad - m), (0, cpad - c)))

    # out = relu(bn2(conv2(out))) + shortcut(x)   (conv2: 3x3, stride, pad 1)
    out2, _ = conv_bn_act(out1, p["w2"], p["g2"], p["b2"],
                          stride=stride, padding=1, apply_relu=True,
                          residual_pad=sc_pad)
    return out2


def wide_resnet_forward(x_nchw, params, *, depth, widen_factor, in_planes,
                        num_classes):
    n_blocks = (depth - 4) // 6
    planes = in_planes * widen_factor

    # NCHW -> NHWC once, cast to bf16 once; activations stay bf16 NHWC.
    x = jnp.transpose(x_nchw, (0, 2, 3, 1)).astype(jnp.bfloat16)

    # stem: conv3x3(3, nStages[0], bn=True) + BN + ReLU
    out, _ = conv_bn_act(x, params["conv1_w"], params["bn1_g"], params["bn1_b"],
                         stride=1, padding=1, apply_relu=True)

    cur = in_planes
    for layer in ("layer1", "layer2"):
        strides = [2] + [1] * (n_blocks - 1)
        for bi, stride in enumerate(strides):
            out = wide_basic_forward(out, params[layer][bi], stride=stride,
                                     in_planes=cur, planes=planes)
            cur = planes

    # torch.flatten(out, 1) flattens NCHW; instead of transposing the
    # activations, permute linear1's weight columns once (NCHW -> NHWC order).
    n, h, w, c = out.shape
    flat = out.reshape(n, h * w * c)
    lin1_w = jnp.transpose(params["lin1_w"].reshape(-1, c, h, w), (0, 2, 3, 1))
    lin1_w = lin1_w.reshape(params["lin1_w"].shape[0], h * w * c)
    hidden = linear_layer(flat, lin1_w, params["lin1_b"],
                          apply_relu=True, out_dtype=jnp.bfloat16)
    return linear_layer(hidden, params["lin2_w"], params["lin2_b"],
                        apply_relu=False, out_dtype=jnp.float32)


# ---------------------------------------------------------------------------
# Pure-JAX f32 reference (faithful to the PyTorch module in training mode).
# TODO(synk): BatchNorm running-statistics updates (training-time side effect)
# are not reproduced; they do not affect the forward output.
# ---------------------------------------------------------------------------
def _bn_ref(y, gamma, beta):
    mean = jnp.mean(y, axis=(0, 2, 3), keepdims=True)
    var = jnp.mean((y - mean) ** 2, axis=(0, 2, 3), keepdims=True)
    return ((y - mean) * lax.rsqrt(var + BN_EPS) * gamma.reshape(1, -1, 1, 1)
            + beta.reshape(1, -1, 1, 1))


def _conv_ref(x, w, stride, padding, bias=None):
    y = lax.conv_general_dilated(
        x, w, window_strides=(stride, stride),
        padding=((padding, padding), (padding, padding)),
        dimension_numbers=("NCHW", "OIHW", "NCHW"),
        precision=lax.Precision.HIGHEST)
    if bias is not None:
        y = y + bias.reshape(1, -1, 1, 1)
    return y


def wide_resnet_reference(x, params, *, depth, widen_factor, in_planes,
                          num_classes):
    n_blocks = (depth - 4) // 6
    planes = in_planes * widen_factor
    out = jax.nn.relu(_bn_ref(_conv_ref(x, params["conv1_w"], 1, 1),
                              params["bn1_g"], params["bn1_b"]))
    cur = in_planes
    for layer in ("layer1", "layer2"):
        strides = [2] + [1] * (n_blocks - 1)
        for bi, stride in enumerate(strides):
            p = params[layer][bi]
            h1 = jax.nn.relu(_bn_ref(_conv_ref(out, p["w1"], 1, 1),
                                     p["g1"], p["b1"]))
            h2 = jax.nn.relu(_bn_ref(_conv_ref(h1, p["w2"], stride, 1),
                                     p["g2"], p["b2"]))
            if stride != 1 or cur != planes:
                sc = _bn_ref(_conv_ref(out, p["w_sc"], stride, 0,
                                       bias=p["w_sc_bias"]),
                             p["g_sc"], p["b_sc"])
            else:
                sc = out
            out = h2 + sc
            cur = planes
    flat = out.reshape(out.shape[0], -1)
    hidden = jax.nn.relu(
        jnp.matmul(flat, params["lin1_w"].T, precision=lax.Precision.HIGHEST)
        + params["lin1_b"])
    return (jnp.matmul(hidden, params["lin2_w"].T,
                       precision=lax.Precision.HIGHEST) + params["lin2_b"])


# ---------------------------------------------------------------------------
def make_params(key, *, depth, widen_factor, in_planes, in_dim, num_classes):
    n_blocks = (depth - 4) // 6
    planes = in_planes * widen_factor
    keys = iter(jax.random.split(key, 128))

    def conv_w(cout, cin, k):
        return 0.2 * jax.random.normal(next(keys), (cout, cin, k, k), jnp.float32)

    def bn_pair(c):
        g = 1.0 + 0.1 * jax.random.normal(next(keys), (c,), jnp.float32)
        b = 0.1 * jax.random.normal(next(keys), (c,), jnp.float32)
        return g, b

    params = {"conv1_w": conv_w(in_planes, 3, 3)}
    params["bn1_g"], params["bn1_b"] = bn_pair(in_planes)

    cur = in_planes
    for layer in ("layer1", "layer2"):
        strides = [2] + [1] * (n_blocks - 1)
        blocks = []
        for stride in strides:
            blk = {"w1": conv_w(planes, cur, 3), "w2": conv_w(planes, planes, 3)}
            blk["g1"], blk["b1"] = bn_pair(planes)
            blk["g2"], blk["b2"] = bn_pair(planes)
            if stride != 1 or cur != planes:
                blk["w_sc"] = conv_w(planes, cur, 1)
                blk["w_sc_bias"] = 0.1 * jax.random.normal(
                    next(keys), (planes,), jnp.float32)
                blk["g_sc"], blk["b_sc"] = bn_pair(planes)
            blocks.append(blk)
            cur = planes
        params[layer] = blocks

    feat = planes * (in_dim // 4) ** 2
    params["lin1_w"] = 0.05 * jax.random.normal(next(keys), (200, feat), jnp.float32)
    params["lin1_b"] = 0.05 * jax.random.normal(next(keys), (200,), jnp.float32)
    params["lin2_w"] = 0.1 * jax.random.normal(next(keys), (num_classes, 200),
                                               jnp.float32)
    params["lin2_b"] = 0.1 * jax.random.normal(next(keys), (num_classes,),
                                               jnp.float32)
    return params


if __name__ == "__main__":
    # Small Wide_ResNet: depth=10 -> 1 block per layer, widen_factor=2,
    # in_planes=4, in_dim=16, 10 classes, batch=2.  nStages = [4, 8, 8].
    DEPTH, WIDEN, IN_PLANES, IN_DIM, NUM_CLASSES, BATCH = 10, 2, 4, 16, 10, 2

    key = jax.random.PRNGKey(0)
    k_x, k_p = jax.random.split(key)
    x = jax.random.normal(k_x, (BATCH, 3, IN_DIM, IN_DIM), jnp.float32)
    params = make_params(k_p, depth=DEPTH, widen_factor=WIDEN,
                         in_planes=IN_PLANES, in_dim=IN_DIM,
                         num_classes=NUM_CLASSES)

    fwd = jax.jit(functools.partial(wide_resnet_forward, depth=DEPTH,
                                    widen_factor=WIDEN, in_planes=IN_PLANES,
                                    num_classes=NUM_CLASSES))
    out = jax.block_until_ready(fwd(x, params))
    ref = jax.block_until_ready(
        wide_resnet_reference(x, params, depth=DEPTH, widen_factor=WIDEN,
                              in_planes=IN_PLANES, num_classes=NUM_CLASSES))

    assert out.shape == (BATCH, NUM_CLASSES), out.shape
    # bf16 activations + bf16 MXU operands end-to-end vs the f32 reference:
    # use a mixed relative/absolute tolerance (a real semantic bug would be
    # O(ref scale), far above this).
    max_err = float(jnp.max(jnp.abs(out - ref)))
    ref_scale = float(jnp.max(jnp.abs(ref)))
    tol = 5e-2 * ref_scale + 1e-1
    assert max_err < tol, f"mismatch vs reference: {max_err} (tol {tol})"
    print("KERNEL_OK")
</pallas_src>

<mosaic_0001>
module attributes {stable_mosaic.version = 11 : i64} {
  func.func @_gemm_stats_resident_kernel(%arg0: i32, %arg1: memref<256x128xbf16, #tpu.memory_space<vmem>>, %arg2: memref<128x128xbf16, #tpu.memory_space<vmem>>, %arg3: memref<256x128xbf16, #tpu.memory_space<vmem>>, %arg4: memref<8x128xf32, #tpu.memory_space<vmem>>, %arg5: memref<8x128xf32, #tpu.memory_space<vmem>>) attributes {dimension_semantics = [#tpu.dimension_semantics<parallel>], iteration_bounds = array<i64: 2>, scalar_prefetch = 0 : i64, scratch_operands = 0 : i64, tpu.core_type = #tpu.core_type<tc>, window_params = [{transform_indices = @transform_0, window_bounds = array<i64: 256, 128>}, {pipeline_mode = #tpu.pipeline_mode<synchronous>, transform_indices = @transform_1, window_bounds = array<i64: 128, 128>}, {transform_indices = @transform_2, window_bounds = array<i64: 256, 128>}, {transform_indices = @transform_3, window_bounds = array<i64: 8, 128>}, {transform_indices = @transform_4, window_bounds = array<i64: 8, 128>}]} {
    %c0 = arith.constant 0 : index
    %c0_0 = arith.constant 0 : index
    %0 = vector.load %arg1[%c0, %c0_0] : memref<256x128xbf16, #tpu.memory_space<vmem>>, vector<256x128xbf16>
    %c0_1 = arith.constant 0 : index
    %c0_2 = arith.constant 0 : index
    %1 = vector.load %arg2[%c0_1, %c0_2] : memref<128x128xbf16, #tpu.memory_space<vmem>>, vector<128x128xbf16>
    %cst = arith.constant dense<0.000000e+00> : vector<256x128xf32>
    %2 = tpu.matmul %0, %1, %cst {dimension_numbers = #tpu.dot_dimension_numbers<[1], [0], [0], [1], [0, 0, 1, 1], [], []>} : vector<256x128xbf16>, vector<128x128xbf16>, vector<256x128xf32> -> vector<256x128xf32>
    %3 = arith.truncf %2 : vector<256x128xf32> to vector<256x128xbf16>
    %c0_3 = arith.constant 0 : index
    %c0_4 = arith.constant 0 : index
    %4 = vector.load %arg3[%c0_3, %c0_4] : memref<256x128xbf16, #tpu.memory_space<vmem>>, vector<256x128xbf16>
    tpu.vector_store %arg3[%c0_3, %c0_4], %3 {strides = array<i32>} : memref<256x128xbf16, #tpu.memory_space<vmem>>, vector<256x128xbf16>,
    %cst_5 = arith.constant dense<0.000000e+00> : vector<128xf32>
    %5 = vector.multi_reduction <add>, %2, %cst_5 [0] : vector<256x128xf32> to vector<128xf32>
    %6 = vector.shape_cast %5 : vector<128xf32> to vector<1x128xf32>
    %7 = vector.shape_cast %6 : vector<1x128xf32> to vector<1x128xf32>
    %8 = vector.broadcast %7 : vector<1x128xf32> to vector<8x128xf32>
    %c0_6 = arith.constant 0 : index
    %c0_7 = arith.constant 0 : index
    %9 = vector.load %arg4[%c0_6, %c0_7] : memref<8x128xf32, #tpu.memory_space<vmem>>, vector<8x128xf32>
    tpu.vector_store %arg4[%c0_6, %c0_7], %8 {strides = array<i32>} : memref<8x128xf32, #tpu.memory_space<vmem>>, vector<8x128xf32>,
    %10 = arith.mulf %2, %2 : vector<256x128xf32>
    %cst_8 = arith.constant dense<0.000000e+00> : vector<128xf32>
    %11 = vector.multi_reduction <add>, %10, %cst_8 [0] : vector<256x128xf32> to vector<128xf32>
    %12 = vector.shape_cast %11 : vector<128xf32> to vector<1x128xf32>
    %13 = vector.shape_cast %12 : vector<1x128xf32> to vector<1x128xf32>
    %14 = vector.broadcast %13 : vector<1x128xf32> to vector<8x128xf32>
    %c0_9 = arith.constant 0 : index
    %c0_10 = arith.constant 0 : index
    %15 = vector.load %arg5[%c0_9, %c0_10] : memref<8x128xf32, #tpu.memory_space<vmem>>, vector<8x128xf32>
    tpu.vector_store %arg5[%c0_9, %c0_10], %14 {strides = array<i32>} : memref<8x128xf32, #tpu.memory_space<vmem>>, vector<8x128xf32>,
    return
  }
  func.func @transform_0(%arg0: i32) -> (i32, i32) {
    %c0_i32 = arith.constant 0 : i32
    %c0_i32_0 = arith.constant 0 : i32
    return %arg0, %c0_i32 : i32, i32
  }
  func.func @transform_1(%arg0: i32) -> (i32, i32) {
    %c0_i32 = arith.constant 0 : i32
    %c0_i32_0 = arith.constant 0 : i32
    %c0_i32_1 = arith.constant 0 : i32
    return %c0_i32, %c0_i32_0 : i32, i32
  }
  func.func @transform_2(%arg0: i32) -> (i32, i32) {
    %c0_i32 = arith.constant 0 : i32
    %c0_i32_0 = arith.constant 0 : i32
    return %arg0, %c0_i32 : i32, i32
  }
  func.func @transform_3(%arg0: i32) -> (i32, i32) {
    %c0_i32 = arith.constant 0 : i32
    %c0_i32_0 = arith.constant 0 : i32
    return %arg0, %c0_i32 : i32, i32
  }
  func.func @transform_4(%arg0: i32) -> (i32, i32) {
    %c0_i32 = arith.constant 0 : i32
    %c0_i32_0 = arith.constant 0 : i32
    return %arg0, %c0_i32 : i32, i32
  }
}

module attributes {stable_mosaic.version = 11 : i64} {
  func.func @_bn_act_kernel(%arg0: i32, %arg1: memref<256x128xbf16, #tpu.memory_space<vmem>>, %arg2: memref<1x128xf32, #tpu.memory_space<vmem>>, %arg3: memref<1x128xf32, #tpu.memory_space<vmem>>, %arg4: memref<256x128xbf16, #tpu.memory_space<vmem>>) attributes {dimension_semantics = [#tpu.dimension_semantics<parallel>], iteration_bounds = array<i64: 2>, scalar_prefetch = 0 : i64, scratch_operands = 0 : i64, tpu.core_type = #tpu.core_type<tc>, window_params = [{transform_indices = @transform_0, window_bounds = array<i64: 256, 128>}, {pipeline_mode = #tpu.pipeline_mode<synchronous>, transform_indices = @transform_1, window_bounds = array<i64: 1, 128>}, {pipeline_mode = #tpu.pipeline_mode<synchronous>, transform_indices = @transform_2, window_bounds = array<i64: 1, 128>}, {transform_indices = @transform_3, window_bounds = array<i64: 256, 128>}]} {
    %c0 = arith.constant 0 : index
    %c0_0 = arith.constant 0 : index
    %0 = vector.load %arg1[%c0, %c0_0] : memref<256x128xbf16, #tpu.memory_space<vmem>>, vector<256x128xbf16>
    %1 = arith.extf %0 : vector<256x128xbf16> to vector<256x128xf32>
    %c0_1 = arith.constant 0 : index
    %c0_2 = arith.constant 0 : index
    %2 = vector.load %arg2[%c0_1, %c0_2] : memref<1x128xf32, #tpu.memory_space<vmem>>, vector<1x128xf32>
    %3 = vector.broadcast %2 : vector<1x128xf32> to vector<256x128xf32>
    %4 = arith.mulf %1, %3 : vector<256x128xf32>
    %c0_3 = arith.constant 0 : index
    %c0_4 = arith.constant 0 : index
    %5 = vector.load %arg3[%c0_3, %c0_4] : memref<1x128xf32, #tpu.memory_space<vmem>>, vector<1x128xf32>
    %6 = vector.broadcast %5 : vector<1x128xf32> to vector<256x128xf32>
    %7 = arith.addf %4, %6 : vector<256x128xf32>
    %cst = arith.constant 0.000000e+00 : f32
    %8 = vector.broadcast %cst : f32 to vector<256x128xf32>
    %9 = arith.maximumf %7, %8 : vector<256x128xf32>
    %10 = arith.truncf %9 : vector<256x128xf32> to vector<256x128xbf16>
    %c0_5 = arith.constant 0 : index
    %c0_6 = arith.constant 0 : index
    %11 = vector.load %arg4[%c0_5, %c0_6] : memref<256x128xbf16, #tpu.memory_space<vmem>>, vector<256x128xbf16>
    tpu.vector_store %arg4[%c0_5, %c0_6], %10 {strides = array<i32>} : memref<256x128xbf16, #tpu.memory_space<vmem>>, vector<256x128xbf16>,
    return
  }
  func.func @transform_0(%arg0: i32) -> (i32, i32) {
    %c0_i32 = arith.constant 0 : i32
    %c0_i32_0 = arith.constant 0 : i32
    return %arg0, %c0_i32 : i32, i32
  }
  func.func @transform_1(%arg0: i32) -> (i32, i32) {
    %c0_i32 = arith.constant 0 : i32
    %c0_i32_0 = arith.constant 0 : i32
    %c0_i32_1 = arith.constant 0 : i32
    return %c0_i32, %c0_i32_0 : i32, i32
  }
  func.func @transform_2(%arg0: i32) -> (i32, i32) {
    %c0_i32 = arith.constant 0 : i32
    %c0_i32_0 = arith.constant 0 : i32
    %c0_i32_1 = arith.constant 0 : i32
    return %c0_i32, %c0_i32_0 : i32, i32
  }
  func.func @transform_3(%arg0: i32) -> (i32, i32) {
    %c0_i32 = arith.constant 0 : i32
    %c0_i32_0 = arith.constant 0 : i32
    return %arg0, %c0_i32 : i32, i32
  }
}

module attributes {stable_mosaic.version = 11 : i64} {
  func.func @_gemm_stats_resident_kernel(%arg0: i32, %arg1: memref<128x128xbf16, #tpu.memory_space<vmem>>, %arg2: memref<128x128xbf16, #tpu.memory_space<vmem>>, %arg3: memref<128x128xbf16, #tpu.memory_space<vmem>>, %arg4: memref<8x128xf32, #tpu.memory_space<vmem>>, %arg5: memref<8x128xf32, #tpu.memory_space<vmem>>) attributes {dimension_semantics = [#tpu.dimension_semantics<parallel>], iteration_bounds = array<i64: 1>, scalar_prefetch = 0 : i64, scratch_operands = 0 : i64, tpu.core_type = #tpu.core_type<tc>, window_params = [{transform_indices = @transform_0, window_bounds = array<i64: 128, 128>}, {pipeline_mode = #tpu.pipeline_mode<synchronous>, transform_indices = @transform_1, window_bounds = array<i64: 128, 128>}, {transform_indices = @transform_2, window_bounds = array<i64: 128, 128>}, {transform_indices = @transform_3, window_bounds = array<i64: 8, 128>}, {transform_indices = @transform_4, window_bounds = array<i64: 8, 128>}]} {
    %c0 = arith.constant 0 : index
    %c0_0 = arith.constant 0 : index
    %0 = vector.load %arg1[%c0, %c0_0] : memref<128x128xbf16, #tpu.memory_space<vmem>>, vector<128x128xbf16>
    %c0_1 = arith.constant 0 : index
    %c0_2 = arith.constant 0 : index
    %1 = vector.load %arg2[%c0_1, %c0_2] : memref<128x128xbf16, #tpu.memory_space<vmem>>, vector<128x128xbf16>
    %cst = arith.constant dense<0.000000e+00> : vector<128x128xf32>
    %2 = tpu.matmul %0, %1, %cst {dimension_numbers = #tpu.dot_dimension_numbers<[1], [0], [0], [1], [0, 0, 1, 1], [], []>} : vector<128x128xbf16>, vector<128x128xbf16>, vector<128x128xf32> -> vector<128x128xf32>
    %3 = arith.truncf %2 : vector<128x128xf32> to vector<128x128xbf16>
    %c0_3 = arith.constant 0 : index
    %c0_4 = arith.constant 0 : index
    %4 = vector.load %arg3[%c0_3, %c0_4] : memref<128x128xbf16, #tpu.memory_space<vmem>>, vector<128x128xbf16>
    tpu.vector_store %arg3[%c0_3, %c0_4], %3 {strides = array<i32>} : memref<128x128xbf16, #tpu.memory_space<vmem>>, vector<128x128xbf16>,
    %cst_5 = arith.constant dense<0.000000e+00> : vector<128xf32>
    %5 = vector.multi_reduction <add>, %2, %cst_5 [0] : vector<128x128xf32> to vector<128xf32>
    %6 = vector.shape_cast %5 : vector<128xf32> to vector<1x128xf32>
    %7 = vector.shape_cast %6 : vector<1x128xf32> to vector<1x128xf32>
    %8 = vector.broadcast %7 : vector<1x128xf32> to vector<8x128xf32>
    %c0_6 = arith.constant 0 : index
    %c0_7 = arith.constant 0 : index
    %9 = vector.load %arg4[%c0_6, %c0_7] : memref<8x128xf32, #tpu.memory_space<vmem>>, vector<8x128xf32>
    tpu.vector_store %arg4[%c0_6, %c0_7], %8 {strides = array<i32>} : memref<8x128xf32, #tpu.memory_space<vmem>>, vector<8x128xf32>,
    %10 = arith.mulf %2, %2 : vector<128x128xf32>
    %cst_8 = arith.constant dense<0.000000e+00> : vector<128xf32>
    %11 = vector.multi_reduction <add>, %10, %cst_8 [0] : vector<128x128xf32> to vector<128xf32>
    %12 = vector.shape_cast %11 : vector<128xf32> to vector<1x128xf32>
    %13 = vector.shape_cast %12 : vector<1x128xf32> to vector<1x128xf32>
    %14 = vector.broadcast %13 : vector<1x128xf32> to vector<8x128xf32>
    %c0_9 = arith.constant 0 : index
    %c0_10 = arith.constant 0 : index
    %15 = vector.load %arg5[%c0_9, %c0_10] : memref<8x128xf32, #tpu.memory_space<vmem>>, vector<8x128xf32>
    tpu.vector_store %arg5[%c0_9, %c0_10], %14 {strides = array<i32>} : memref<8x128xf32, #tpu.memory_space<vmem>>, vector<8x128xf32>,
    return
  }
  func.func @transform_0(%arg0: i32) -> (i32, i32) {
    %c0_i32 = arith.constant 0 : i32
    %c0_i32_0 = arith.constant 0 : i32
    return %arg0, %c0_i32 : i32, i32
  }
  func.func @transform_1(%arg0: i32) -> (i32, i32) {
    %c0_i32 = arith.constant 0 : i32
    %c0_i32_0 = arith.constant 0 : i32
    %c0_i32_1 = arith.constant 0 : i32
    return %c0_i32, %c0_i32_0 : i32, i32
  }
  func.func @transform_2(%arg0: i32) -> (i32, i32) {
    %c0_i32 = arith.constant 0 : i32
    %c0_i32_0 = arith.constant 0 : i32
    return %arg0, %c0_i32 : i32, i32
  }
  func.func @transform_3(%arg0: i32) -> (i32, i32) {
    %c0_i32 = arith.constant 0 : i32
    %c0_i32_0 = arith.constant 0 : i32
    return %arg0, %c0_i32 : i32, i32
  }
  func.func @transform_4(%arg0: i32) -> (i32, i32) {
    %c0_i32 = arith.constant 0 : i32
    %c0_i32_0 = arith.constant 0 : i32
    return %arg0, %c0_i32 : i32, i32
  }
}

module attributes {stable_mosaic.version = 11 : i64} {
  func.func @_bn_act_kernel(%arg0: i32, %arg1: memref<128x128xbf16, #tpu.memory_space<vmem>>, %arg2: memref<1x128xf32, #tpu.memory_space<vmem>>, %arg3: memref<1x128xf32, #tpu.memory_space<vmem>>, %arg4: memref<128x128xbf16, #tpu.memory_space<vmem>>) attributes {dimension_semantics = [#tpu.dimension_semantics<parallel>], iteration_bounds = array<i64: 1>, scalar_prefetch = 0 : i64, scratch_operands = 0 : i64, tpu.core_type = #tpu.core_type<tc>, window_params = [{transform_indices = @transform_0, window_bounds = array<i64: 128, 128>}, {pipeline_mode = #tpu.pipeline_mode<synchronous>, transform_indices = @transform_1, window_bounds = array<i64: 1, 128>}, {pipeline_mode = #tpu.pipeline_mode<synchronous>, transform_indices = @transform_2, window_bounds = array<i64: 1, 128>}, {transform_indices = @transform_3, window_bounds = array<i64: 128, 128>}]} {
    %c0 = arith.constant 0 : index
    %c0_0 = arith.constant 0 : index
    %0 = vector.load %arg1[%c0, %c0_0] : memref<128x128xbf16, #tpu.memory_space<vmem>>, vector<128x128xbf16>
    %1 = arith.extf %0 : vector<128x128xbf16> to vector<128x128xf32>
    %c0_1 = arith.constant 0 : index
    %c0_2 = arith.constant 0 : index
    %2 = vector.load %arg2[%c0_1, %c0_2] : memref<1x128xf32, #tpu.memory_space<vmem>>, vector<1x128xf32>
    %3 = vector.broadcast %2 : vector<1x128xf32> to vector<128x128xf32>
    %4 = arith.mulf %1, %3 : vector<128x128xf32>
    %c0_3 = arith.constant 0 : index
    %c0_4 = arith.constant 0 : index
    %5 = vector.load %arg3[%c0_3, %c0_4] : memref<1x128xf32, #tpu.memory_space<vmem>>, vector<1x128xf32>
    %6 = vector.broadcast %5 : vector<1x128xf32> to vector<128x128xf32>
    %7 = arith.addf %4, %6 : vector<128x128xf32>
    %8 = arith.truncf %7 : vector<128x128xf32> to vector<128x128xbf16>
    %c0_5 = arith.constant 0 : index
    %c0_6 = arith.constant 0 : index
    %9 = vector.load %arg4[%c0_5, %c0_6] : memref<128x128xbf16, #tpu.memory_space<vmem>>, vector<128x128xbf16>
    tpu.vector_store %arg4[%c0_5, %c0_6], %8 {strides = array<i32>} : memref<128x128xbf16, #tpu.memory_space<vmem>>, vector<128x128xbf16>,
    return
  }
  func.func @transform_0(%arg0: i32) -> (i32, i32) {
    %c0_i32 = arith.constant 0 : i32
    %c0_i32_0 = arith.constant 0 : i32
    return %arg0, %c0_i32 : i32, i32
  }
  func.func @transform_1(%arg0: i32) -> (i32, i32) {
    %c0_i32 = arith.constant 0 : i32
    %c0_i32_0 = arith.constant 0 : i32
    %c0_i32_1 = arith.constant 0 : i32
    return %c0_i32, %c0_i32_0 : i32, i32
  }
  func.func @transform_2(%arg0: i32) -> (i32, i32) {
    %c0_i32 = arith.constant 0 : i32
    %c0_i32_0 = arith.constant 0 : i32
    %c0_i32_1 = arith.constant 0 : i32
    return %c0_i32, %c0_i32_0 : i32, i32
  }
  func.func @transform_3(%arg0: i32) -> (i32, i32) {
    %c0_i32 = arith.constant 0 : i32
    %c0_i32_0 = arith.constant 0 : i32
    return %arg0, %c0_i32 : i32, i32
  }
}

module attributes {stable_mosaic.version = 11 : i64} {
  func.func @_bn_act_kernel(%arg0: i32, %arg1: memref<128x128xbf16, #tpu.memory_space<vmem>>, %arg2: memref<1x128xf32, #tpu.memory_space<vmem>>, %arg3: memref<1x128xf32, #tpu.memory_space<vmem>>, %arg4: memref<128x128xbf16, #tpu.memory_space<vmem>>, %arg5: memref<128x128xbf16, #tpu.memory_space<vmem>>) attributes {dimension_semantics = [#tpu.dimension_semantics<parallel>], iteration_bounds = array<i64: 1>, scalar_prefetch = 0 : i64, scratch_operands = 0 : i64, tpu.core_type = #tpu.core_type<tc>, window_params = [{transform_indices = @transform_0, window_bounds = array<i64: 128, 128>}, {pipeline_mode = #tpu.pipeline_mode<synchronous>, transform_indices = @transform_1, window_bounds = array<i64: 1, 128>}, {pipeline_mode = #tpu.pipeline_mode<synchronous>, transform_indices = @transform_2, window_bounds = array<i64: 1, 128>}, {transform_indices = @transform_3, window_bounds = array<i64: 128, 128>}, {transform_indices = @transform_4, window_bounds = array<i64: 128, 128>}]} {
    %c0 = arith.constant 0 : index
    %c0_0 = arith.constant 0 : index
    %0 = vector.load %arg1[%c0, %c0_0] : memref<128x128xbf16, #tpu.memory_space<vmem>>, vector<128x128xbf16>
    %1 = arith.extf %0 : vector<128x128xbf16> to vector<128x128xf32>
    %c0_1 = arith.constant 0 : index
    %c0_2 = arith.constant 0 : index
    %2 = vector.load %arg2[%c0_1, %c0_2] : memref<1x128xf32, #tpu.memory_space<vmem>>, vector<1x128xf32>
    %3 = vector.broadcast %2 : vector<1x128xf32> to vector<128x128xf32>
    %4 = arith.mulf %1, %3 : vector<128x128xf32>
    %c0_3 = arith.constant 0 : index
    %c0_4 = arith.constant 0 : index
    %5 = vector.load %arg3[%c0_3, %c0_4] : memref<1x128xf32, #tpu.memory_space<vmem>>, vector<1x128xf32>
    %6 = vector.broadcast %5 : vector<1x128xf32> to vector<128x128xf32>
    %7 = arith.addf %4, %6 : vector<128x128xf32>
    %cst = arith.constant 0.000000e+00 : f32
    %8 = vector.broadcast %cst : f32 to vector<128x128xf32>
    %9 = arith.maximumf %7, %8 : vector<128x128xf32>
    %c0_5 = arith.constant 0 : index
    %c0_6 = arith.constant 0 : index
    %10 = vector.load %arg4[%c0_5, %c0_6] : memref<128x128xbf16, #tpu.memory_space<vmem>>, vector<128x128xbf16>
    %11 = arith.extf %10 : vector<128x128xbf16> to vector<128x128xf32>
    %12 = arith.addf %9, %11 : vector<128x128xf32>
    %13 = arith.truncf %12 : vector<128x128xf32> to vector<128x128xbf16>
    %c0_7 = arith.constant 0 : index
    %c0_8 = arith.constant 0 : index
    %14 = vector.load %arg5[%c0_7, %c0_8] : memref<128x128xbf16, #tpu.memory_space<vmem>>, vector<128x128xbf16>
    tpu.vector_store %arg5[%c0_7, %c0_8], %13 {strides = array<i32>} : memref<128x128xbf16, #tpu.memory_space<vmem>>, vector<128x128xbf16>,
    return
  }
  func.func @transform_0(%arg0: i32) -> (i32, i32) {
    %c0_i32 = arith.constant 0 : i32
    %c0_i32_0 = arith.constant 0 : i32
    return %arg0, %c0_i32 : i32, i32
  }
  func.func @transform_1(%arg0: i32) -> (i32, i32) {
    %c0_i32 = arith.constant 0 : i32
    %c0_i32_0 = arith.constant 0 : i32
    %c0_i32_1 = arith.constant 0 : i32
    return %c0_i32, %c0_i32_0 : i32, i32
  }
  func.func @transform_2(%arg0: i32) -> (i32, i32) {
    %c0_i32 = arith.constant 0 : i32
    %c0_i32_0 = arith.constant 0 : i32
    %c0_i32_1 = arith.constant 0 : i32
    return %c0_i32, %c0_i32_0 : i32, i32
  }
  func.func @transform_3(%arg0: i32) -> (i32, i32) {
    %c0_i32 = arith.constant 0 : i32
    %c0_i32_0 = arith.constant 0 : i32
    return %arg0, %c0_i32 : i32, i32
  }
  func.func @transform_4(%arg0: i32) -> (i32, i32) {
    %c0_i32 = arith.constant 0 : i32
    %c0_i32_0 = arith.constant 0 : i32
    return %arg0, %c0_i32 : i32, i32
  }
}

module attributes {stable_mosaic.version = 11 : i64} {
  func.func @_bn_act_kernel(%arg0: i32, %arg1: memref<128x128xbf16, #tpu.memory_space<vmem>>, %arg2: memref<1x128xf32, #tpu.memory_space<vmem>>, %arg3: memref<1x128xf32, #tpu.memory_space<vmem>>, %arg4: memref<128x128xbf16, #tpu.memory_space<vmem>>) attributes {dimension_semantics = [#tpu.dimension_semantics<parallel>], iteration_bounds = array<i64: 1>, scalar_prefetch = 0 : i64, scratch_operands = 0 : i64, tpu.core_type = #tpu.core_type<tc>, window_params = [{transform_indices = @transform_0, window_bounds = array<i64: 128, 128>}, {pipeline_mode = #tpu.pipeline_mode<synchronous>, transform_indices = @transform_1, window_bounds = array<i64: 1, 128>}, {pipeline_mode = #tpu.pipeline_mode<synchronous>, transform_indices = @transform_2, window_bounds = array<i64: 1, 128>}, {transform_indices = @transform_3, window_bounds = array<i64: 128, 128>}]} {
    %c0 = arith.constant 0 : index
    %c0_0 = arith.constant 0 : index
    %0 = vector.load %arg1[%c0, %c0_0] : memref<128x128xbf16, #tpu.memory_space<vmem>>, vector<128x128xbf16>
    %1 = arith.extf %0 : vector<128x128xbf16> to vector<128x128xf32>
    %c0_1 = arith.constant 0 : index
    %c0_2 = arith.constant 0 : index
    %2 = vector.load %arg2[%c0_1, %c0_2] : memref<1x128xf32, #tpu.memory_space<vmem>>, vector<1x128xf32>
    %3 = vector.broadcast %2 : vector<1x128xf32> to vector<128x128xf32>
    %4 = arith.mulf %1, %3 : vector<128x128xf32>
    %c0_3 = arith.constant 0 : index
    %c0_4 = arith.constant 0 : index
    %5 = vector.load %arg3[%c0_3, %c0_4] : memref<1x128xf32, #tpu.memory_space<vmem>>, vector<1x128xf32>
    %6 = vector.broadcast %5 : vector<1x128xf32> to vector<128x128xf32>
    %7 = arith.addf %4, %6 : vector<128x128xf32>
    %cst = arith.constant 0.000000e+00 : f32
    %8 = vector.broadcast %cst : f32 to vector<128x128xf32>
    %9 = arith.maximumf %7, %8 : vector<128x128xf32>
    %10 = arith.truncf %9 : vector<128x128xf32> to vector<128x128xbf16>
    %c0_5 = arith.constant 0 : index
    %c0_6 = arith.constant 0 : index
    %11 = vector.load %arg4[%c0_5, %c0_6] : memref<128x128xbf16, #tpu.memory_space<vmem>>, vector<128x128xbf16>
    tpu.vector_store %arg4[%c0_5, %c0_6], %10 {strides = array<i32>} : memref<128x128xbf16, #tpu.memory_space<vmem>>, vector<128x128xbf16>,
    return
  }
  func.func @transform_0(%arg0: i32) -> (i32, i32) {
    %c0_i32 = arith.constant 0 : i32
    %c0_i32_0 = arith.constant 0 : i32
    return %arg0, %c0_i32 : i32, i32
  }
  func.func @transform_1(%arg0: i32) -> (i32, i32) {
    %c0_i32 = arith.constant 0 : i32
    %c0_i32_0 = arith.constant 0 : i32
    %c0_i32_1 = arith.constant 0 : i32
    return %c0_i32, %c0_i32_0 : i32, i32
  }
  func.func @transform_2(%arg0: i32) -> (i32, i32) {
    %c0_i32 = arith.constant 0 : i32
    %c0_i32_0 = arith.constant 0 : i32
    %c0_i32_1 = arith.constant 0 : i32
    return %c0_i32, %c0_i32_0 : i32, i32
  }
  func.func @transform_3(%arg0: i32) -> (i32, i32) {
    %c0_i32 = arith.constant 0 : i32
    %c0_i32_0 = arith.constant 0 : i32
    return %arg0, %c0_i32 : i32, i32
  }
}

module attributes {stable_mosaic.version = 11 : i64} {
  func.func @_gemm_stats_resident_kernel(%arg0: i32, %arg1: memref<32x128xbf16, #tpu.memory_space<vmem>>, %arg2: memref<128x128xbf16, #tpu.memory_space<vmem>>, %arg3: memref<32x128xbf16, #tpu.memory_space<vmem>>, %arg4: memref<8x128xf32, #tpu.memory_space<vmem>>, %arg5: memref<8x128xf32, #tpu.memory_space<vmem>>) attributes {dimension_semantics = [#tpu.dimension_semantics<parallel>], iteration_bounds = array<i64: 1>, scalar_prefetch = 0 : i64, scratch_operands = 0 : i64, tpu.core_type = #tpu.core_type<tc>, window_params = [{transform_indices = @transform_0, window_bounds = array<i64: 32, 128>}, {pipeline_mode = #tpu.pipeline_mode<synchronous>, transform_indices = @transform_1, window_bounds = array<i64: 128, 128>}, {transform_indices = @transform_2, window_bounds = array<i64: 32, 128>}, {transform_indices = @transform_3, window_bounds = array<i64: 8, 128>}, {transform_indices = @transform_4, window_bounds = array<i64: 8, 128>}]} {
    %c0 = arith.constant 0 : index
    %c0_0 = arith.constant 0 : index
    %0 = vector.load %arg1[%c0, %c0_0] : memref<32x128xbf16, #tpu.memory_space<vmem>>, vector<32x128xbf16>
    %c0_1 = arith.constant 0 : index
    %c0_2 = arith.constant 0 : index
    %1 = vector.load %arg2[%c0_1, %c0_2] : memref<128x128xbf16, #tpu.memory_space<vmem>>, vector<128x128xbf16>
    %cst = arith.constant dense<0.000000e+00> : vector<32x128xf32>
    %2 = tpu.matmul %0, %1, %cst {dimension_numbers = #tpu.dot_dimension_numbers<[1], [0], [0], [1], [0, 0, 1, 1], [], []>} : vector<32x128xbf16>, vector<128x128xbf16>, vector<32x128xf32> -> vector<32x128xf32>
    %3 = arith.truncf %2 : vector<32x128xf32> to vector<32x128xbf16>
    %c0_3 = arith.constant 0 : index
    %c0_4 = arith.constant 0 : index
    %4 = vector.load %arg3[%c0_3, %c0_4] : memref<32x128xbf16, #tpu.memory_space<vmem>>, vector<32x128xbf16>
    tpu.vector_store %arg3[%c0_3, %c0_4], %3 {strides = array<i32>} : memref<32x128xbf16, #tpu.memory_space<vmem>>, vector<32x128xbf16>,
    %cst_5 = arith.constant dense<0.000000e+00> : vector<128xf32>
    %5 = vector.multi_reduction <add>, %2, %cst_5 [0] : vector<32x128xf32> to vector<128xf32>
    %6 = vector.shape_cast %5 : vector<128xf32> to vector<1x128xf32>
    %7 = vector.shape_cast %6 : vector<1x128xf32> to vector<1x128xf32>
    %8 = vector.broadcast %7 : vector<1x128xf32> to vector<8x128xf32>
    %c0_6 = arith.constant 0 : index
    %c0_7 = arith.constant 0 : index
    %9 = vector.load %arg4[%c0_6, %c0_7] : memref<8x128xf32, #tpu.memory_space<vmem>>, vector<8x128xf32>
    tpu.vector_store %arg4[%c0_6, %c0_7], %8 {strides = array<i32>} : memref<8x128xf32, #tpu.memory_space<vmem>>, vector<8x128xf32>,
    %10 = arith.mulf %2, %2 : vector<32x128xf32>
    %cst_8 = arith.constant dense<0.000000e+00> : vector<128xf32>
    %11 = vector.multi_reduction <add>, %10, %cst_8 [0] : vector<32x128xf32> to vector<128xf32>
    %12 = vector.shape_cast %11 : vector<128xf32> to vector<1x128xf32>
    %13 = vector.shape_cast %12 : vector<1x128xf32> to vector<1x128xf32>
    %14 = vector.broadcast %13 : vector<1x128xf32> to vector<8x128xf32>
    %c0_9 = arith.constant 0 : index
    %c0_10 = arith.constant 0 : index
    %15 = vector.load %arg5[%c0_9, %c0_10] : memref<8x128xf32, #tpu.memory_space<vmem>>, vector<8x128xf32>
    tpu.vector_store %arg5[%c0_9, %c0_10], %14 {strides = array<i32>} : memref<8x128xf32, #tpu.memory_space<vmem>>, vector<8x128xf32>,
    return
  }
  func.func @transform_0(%arg0: i32) -> (i32, i32) {
    %c0_i32 = arith.constant 0 : i32
    %c0_i32_0 = arith.constant 0 : i32
    return %arg0, %c0_i32 : i32, i32
  }
  func.func @transform_1(%arg0: i32) -> (i32, i32) {
    %c0_i32 = arith.constant 0 : i32
    %c0_i32_0 = arith.constant 0 : i32
    %c0_i32_1 = arith.constant 0 : i32
    return %c0_i32, %c0_i32_0 : i32, i32
  }
  func.func @transform_2(%arg0: i32) -> (i32, i32) {
    %c0_i32 = arith.constant 0 : i32
    %c0_i32_0 = arith.constant 0 : i32
    return %arg0, %c0_i32 : i32, i32
  }
  func.func @transform_3(%arg0: i32) -> (i32, i32) {
    %c0_i32 = arith.constant 0 : i32
    %c0_i32_0 = arith.constant 0 : i32
    return %arg0, %c0_i32 : i32, i32
  }
  func.func @transform_4(%arg0: i32) -> (i32, i32) {
    %c0_i32 = arith.constant 0 : i32
    %c0_i32_0 = arith.constant 0 : i32
    return %arg0, %c0_i32 : i32, i32
  }
}

module attributes {stable_mosaic.version = 11 : i64} {
  func.func @_bn_act_kernel(%arg0: i32, %arg1: memref<32x128xbf16, #tpu.memory_space<vmem>>, %arg2: memref<1x128xf32, #tpu.memory_space<vmem>>, %arg3: memref<1x128xf32, #tpu.memory_space<vmem>>, %arg4: memref<32x128xbf16, #tpu.memory_space<vmem>>, %arg5: memref<32x128xbf16, #tpu.memory_space<vmem>>) attributes {dimension_semantics = [#tpu.dimension_semantics<parallel>], iteration_bounds = array<i64: 1>, scalar_prefetch = 0 : i64, scratch_operands = 0 : i64, tpu.core_type = #tpu.core_type<tc>, window_params = [{transform_indices = @transform_0, window_bounds = array<i64: 32, 128>}, {pipeline_mode = #tpu.pipeline_mode<synchronous>, transform_indices = @transform_1, window_bounds = array<i64: 1, 128>}, {pipeline_mode = #tpu.pipeline_mode<synchronous>, transform_indices = @transform_2, window_bounds = array<i64: 1, 128>}, {transform_indices = @transform_3, window_bounds = array<i64: 32, 128>}, {transform_indices = @transform_4, window_bounds = array<i64: 32, 128>}]} {
    %c0 = arith.constant 0 : index
    %c0_0 = arith.constant 0 : index
    %0 = vector.load %arg1[%c0, %c0_0] : memref<32x128xbf16, #tpu.memory_space<vmem>>, vector<32x128xbf16>
    %1 = arith.extf %0 : vector<32x128xbf16> to vector<32x128xf32>
    %c0_1 = arith.constant 0 : index
    %c0_2 = arith.constant 0 : index
    %2 = vector.load %arg2[%c0_1, %c0_2] : memref<1x128xf32, #tpu.memory_space<vmem>>, vector<1x128xf32>
    %3 = vector.broadcast %2 : vector<1x128xf32> to vector<32x128xf32>
    %4 = arith.mulf %1, %3 : vector<32x128xf32>
    %c0_3 = arith.constant 0 : index
    %c0_4 = arith.constant 0 : index
    %5 = vector.load %arg3[%c0_3, %c0_4] : memref<1x128xf32, #tpu.memory_space<vmem>>, vector<1x128xf32>
    %6 = vector.broadcast %5 : vector<1x128xf32> to vector<32x128xf32>
    %7 = arith.addf %4, %6 : vector<32x128xf32>
    %cst = arith.constant 0.000000e+00 : f32
    %8 = vector.broadcast %cst : f32 to vector<32x128xf32>
    %9 = arith.maximumf %7, %8 : vector<32x128xf32>
    %c0_5 = arith.constant 0 : index
    %c0_6 = arith.constant 0 : index
    %10 = vector.load %arg4[%c0_5, %c0_6] : memref<32x128xbf16, #tpu.memory_space<vmem>>, vector<32x128xbf16>
    %11 = arith.extf %10 : vector<32x128xbf16> to vector<32x128xf32>
    %12 = arith.addf %9, %11 : vector<32x128xf32>
    %13 = arith.truncf %12 : vector<32x128xf32> to vector<32x128xbf16>
    %c0_7 = arith.constant 0 : index
    %c0_8 = arith.constant 0 : index
    %14 = vector.load %arg5[%c0_7, %c0_8] : memref<32x128xbf16, #tpu.memory_space<vmem>>, vector<32x128xbf16>
    tpu.vector_store %arg5[%c0_7, %c0_8], %13 {strides = array<i32>} : memref<32x128xbf16, #tpu.memory_space<vmem>>, vector<32x128xbf16>,
    return
  }
  func.func @transform_0(%arg0: i32) -> (i32, i32) {
    %c0_i32 = arith.constant 0 : i32
    %c0_i32_0 = arith.constant 0 : i32
    return %arg0, %c0_i32 : i32, i32
  }
  func.func @transform_1(%arg0: i32) -> (i32, i32) {
    %c0_i32 = arith.constant 0 : i32
    %c0_i32_0 = arith.constant 0 : i32
    %c0_i32_1 = arith.constant 0 : i32
    return %c0_i32, %c0_i32_0 : i32, i32
  }
  func.func @transform_2(%arg0: i32) -> (i32, i32) {
    %c0_i32 = arith.constant 0 : i32
    %c0_i32_0 = arith.constant 0 : i32
    %c0_i32_1 = arith.constant 0 : i32
    return %c0_i32, %c0_i32_0 : i32, i32
  }
  func.func @transform_3(%arg0: i32) -> (i32, i32) {
    %c0_i32 = arith.constant 0 : i32
    %c0_i32_0 = arith.constant 0 : i32
    return %arg0, %c0_i32 : i32, i32
  }
  func.func @transform_4(%arg0: i32) -> (i32, i32) {
    %c0_i32 = arith.constant 0 : i32
    %c0_i32_0 = arith.constant 0 : i32
    return %arg0, %c0_i32 : i32, i32
  }
}

module attributes {stable_mosaic.version = 11 : i64} {
  func.func @_bn_act_kernel(%arg0: i32, %arg1: memref<32x128xbf16, #tpu.memory_space<vmem>>, %arg2: memref<1x128xf32, #tpu.memory_space<vmem>>, %arg3: memref<1x128xf32, #tpu.memory_space<vmem>>, %arg4: memref<32x128xbf16, #tpu.memory_space<vmem>>) attributes {dimension_semantics = [#tpu.dimension_semantics<parallel>], iteration_bounds = array<i64: 1>, scalar_prefetch = 0 : i64, scratch_operands = 0 : i64, tpu.core_type = #tpu.core_type<tc>, window_params = [{transform_indices = @transform_0, window_bounds = array<i64: 32, 128>}, {pipeline_mode = #tpu.pipeline_mode<synchronous>, transform_indices = @transform_1, window_bounds = array<i64: 1, 128>}, {pipeline_mode = #tpu.pipeline_mode<synchronous>, transform_indices = @transform_2, window_bounds = array<i64: 1, 128>}, {transform_indices = @transform_3, window_bounds = array<i64: 32, 128>}]} {
    %c0 = arith.constant 0 : index
    %c0_0 = arith.constant 0 : index
    %0 = vector.load %arg1[%c0, %c0_0] : memref<32x128xbf16, #tpu.memory_space<vmem>>, vector<32x128xbf16>
    %1 = arith.extf %0 : vector<32x128xbf16> to vector<32x128xf32>
    %c0_1 = arith.constant 0 : index
    %c0_2 = arith.constant 0 : index
    %2 = vector.load %arg2[%c0_1, %c0_2] : memref<1x128xf32, #tpu.memory_space<vmem>>, vector<1x128xf32>
    %3 = vector.broadcast %2 : vector<1x128xf32> to vector<32x128xf32>
    %4 = arith.mulf %1, %3 : vector<32x128xf32>
    %c0_3 = arith.constant 0 : index
    %c0_4 = arith.constant 0 : index
    %5 = vector.load %arg3[%c0_3, %c0_4] : memref<1x128xf32, #tpu.memory_space<vmem>>, vector<1x128xf32>
    %6 = vector.broadcast %5 : vector<1x128xf32> to vector<32x128xf32>
    %7 = arith.addf %4, %6 : vector<32x128xf32>
    %8 = arith.truncf %7 : vector<32x128xf32> to vector<32x128xbf16>
    %c0_5 = arith.constant 0 : index
    %c0_6 = arith.constant 0 : index
    %9 = vector.load %arg4[%c0_5, %c0_6] : memref<32x128xbf16, #tpu.memory_space<vmem>>, vector<32x128xbf16>
    tpu.vector_store %arg4[%c0_5, %c0_6], %8 {strides = array<i32>} : memref<32x128xbf16, #tpu.memory_space<vmem>>, vector<32x128xbf16>,
    return
  }
  func.func @transform_0(%arg0: i32) -> (i32, i32) {
    %c0_i32 = arith.constant 0 : i32
    %c0_i32_0 = arith.constant 0 : i32
    return %arg0, %c0_i32 : i32, i32
  }
  func.func @transform_1(%arg0: i32) -> (i32, i32) {
    %c0_i32 = arith.constant 0 : i32
    %c0_i32_0 = arith.constant 0 : i32
    %c0_i32_1 = arith.constant 0 : i32
    return %c0_i32, %c0_i32_0 : i32, i32
  }
  func.func @transform_2(%arg0: i32) -> (i32, i32) {
    %c0_i32 = arith.constant 0 : i32
    %c0_i32_0 = arith.constant 0 : i32
    %c0_i32_1 = arith.constant 0 : i32
    return %c0_i32, %c0_i32_0 : i32, i32
  }
  func.func @transform_3(%arg0: i32) -> (i32, i32) {
    %c0_i32 = arith.constant 0 : i32
    %c0_i32_0 = arith.constant 0 : i32
    return %arg0, %c0_i32 : i32, i32
  }
}

module attributes {stable_mosaic.version = 11 : i64} {
  func.func @_gemm_bias_resident_kernel(%arg0: i32, %arg1: memref<16x128xbf16, #tpu.memory_space<vmem>>, %arg2: memref<128x256xbf16, #tpu.memory_space<vmem>>, %arg3: memref<1x256xf32, #tpu.memory_space<vmem>>, %arg4: memref<16x256xbf16, #tpu.memory_space<vmem>>) attributes {dimension_semantics = [#tpu.dimension_semantics<parallel>], iteration_bounds = array<i64: 1>, scalar_prefetch = 0 : i64, scratch_operands = 0 : i64, tpu.core_type = #tpu.core_type<tc>, window_params = [{transform_indices = @transform_0, window_bounds = array<i64: 16, 128>}, {pipeline_mode = #tpu.pipeline_mode<synchronous>, transform_indices = @transform_1, window_bounds = array<i64: 128, 256>}, {pipeline_mode = #tpu.pipeline_mode<synchronous>, transform_indices = @transform_2, window_bounds = array<i64: 1, 256>}, {transform_indices = @transform_3, window_bounds = array<i64: 16, 256>}]} {
    %c0 = arith.constant 0 : index
    %c0_0 = arith.constant 0 : index
    %0 = vector.load %arg1[%c0, %c0_0] : memref<16x128xbf16, #tpu.memory_space<vmem>>, vector<16x128xbf16>
    %c0_1 = arith.constant 0 : index
    %c0_2 = arith.constant 0 : index
    %1 = vector.load %arg2[%c0_1, %c0_2] : memref<128x256xbf16, #tpu.memory_space<vmem>>, vector<128x256xbf16>
    %cst = arith.constant dense<0.000000e+00> : vector<16x256xf32>
    %2 = tpu.matmul %0, %1, %cst {dimension_numbers = #tpu.dot_dimension_numbers<[1], [0], [0], [1], [0, 0, 1, 1], [], []>} : vector<16x128xbf16>, vector<128x256xbf16>, vector<16x256xf32> -> vector<16x256xf32>
    %c0_3 = arith.constant 0 : index
    %c0_4 = arith.constant 0 : index
    %3 = vector.load %arg3[%c0_3, %c0_4] : memref<1x256xf32, #tpu.memory_space<vmem>>, vector<1x256xf32>
    %4 = vector.broadcast %3 : vector<1x256xf32> to vector<16x256xf32>
    %5 = arith.addf %2, %4 : vector<16x256xf32>
    %cst_5 = arith.constant 0.000000e+00 : f32
    %6 = vector.broadcast %cst_5 : f32 to vector<16x256xf32>
    %7 = arith.maximumf %5, %6 : vector<16x256xf32>
    %8 = arith.truncf %7 : vector<16x256xf32> to vector<16x256xbf16>
    %c0_6 = arith.constant 0 : index
    %c0_7 = arith.constant 0 : index
    %9 = vector.load %arg4[%c0_6, %c0_7] : memref<16x256xbf16, #tpu.memory_space<vmem>>, vector<16x256xbf16>
    tpu.vector_store %arg4[%c0_6, %c0_7], %8 {strides = array<i32>} : memref<16x256xbf16, #tpu.memory_space<vmem>>, vector<16x256xbf16>,
    return
  }
  func.func @transform_0(%arg0: i32) -> (i32, i32) {
    %c0_i32 = arith.constant 0 : i32
    %c0_i32_0 = arith.constant 0 : i32
    return %arg0, %c0_i32 : i32, i32
  }
  func.func @transform_1(%arg0: i32) -> (i32, i32) {
    %c0_i32 = arith.constant 0 : i32
    %c0_i32_0 = arith.constant 0 : i32
    %c0_i32_1 = arith.constant 0 : i32
    return %c0_i32, %c0_i32_0 : i32, i32
  }
  func.func @transform_2(%arg0: i32) -> (i32, i32) {
    %c0_i32 = arith.constant 0 : i32
    %c0_i32_0 = arith.constant 0 : i32
    %c0_i32_1 = arith.constant 0 : i32
    return %c0_i32, %c0_i32_0 : i32, i32
  }
  func.func @transform_3(%arg0: i32) -> (i32, i32) {
    %c0_i32 = arith.constant 0 : i32
    %c0_i32_0 = arith.constant 0 : i32
    return %arg0, %c0_i32 : i32, i32
  }
}

module attributes {stable_mosaic.version = 11 : i64} {
  func.func @_gemm_bias_resident_kernel(%arg0: i32, %arg1: memref<16x256xbf16, #tpu.memory_space<vmem>>, %arg2: memref<256x128xbf16, #tpu.memory_space<vmem>>, %arg3: memref<1x128xf32, #tpu.memory_space<vmem>>, %arg4: memref<16x128xf32, #tpu.memory_space<vmem>>) attributes {dimension_semantics = [#tpu.dimension_semantics<parallel>], iteration_bounds = array<i64: 1>, scalar_prefetch = 0 : i64, scratch_operands = 0 : i64, tpu.core_type = #tpu.core_type<tc>, window_params = [{transform_indices = @transform_0, window_bounds = array<i64: 16, 256>}, {pipeline_mode = #tpu.pipeline_mode<synchronous>, transform_indices = @transform_1, window_bounds = array<i64: 256, 128>}, {pipeline_mode = #tpu.pipeline_mode<synchronous>, transform_indices = @transform_2, window_bounds = array<i64: 1, 128>}, {transform_indices = @transform_3, window_bounds = array<i64: 16, 128>}]} {
    %c0 = arith.constant 0 : index
    %c0_0 = arith.constant 0 : index
    %0 = vector.load %arg1[%c0, %c0_0] : memref<16x256xbf16, #tpu.memory_space<vmem>>, vector<16x256xbf16>
    %c0_1 = arith.constant 0 : index
    %c0_2 = arith.constant 0 : index
    %1 = vector.load %arg2[%c0_1, %c0_2] : memref<256x128xbf16, #tpu.memory_space<vmem>>, vector<256x128xbf16>
    %cst = arith.constant dense<0.000000e+00> : vector<16x128xf32>
    %2 = tpu.matmul %0, %1, %cst {dimension_numbers = #tpu.dot_dimension_numbers<[1], [0], [0], [1], [0, 0, 1, 1], [], []>} : vector<16x256xbf16>, vector<256x128xbf16>, vector<16x128xf32> -> vector<16x128xf32>
    %c0_3 = arith.constant 0 : index
    %c0_4 = arith.constant 0 : index
    %3 = vector.load %arg3[%c0_3, %c0_4] : memref<1x128xf32, #tpu.memory_space<vmem>>, vector<1x128xf32>
    %4 = vector.broadcast %3 : vector<1x128xf32> to vector<16x128xf32>
    %5 = arith.addf %2, %4 : vector<16x128xf32>
    %c0_5 = arith.constant 0 : index
    %c0_6 = arith.constant 0 : index
    %6 = vector.load %arg4[%c0_5, %c0_6] : memref<16x128xf32, #tpu.memory_space<vmem>>, vector<16x128xf32>
    tpu.vector_store %arg4[%c0_5, %c0_6], %5 {strides = array<i32>} : memref<16x128xf32, #tpu.memory_space<vmem>>, vector<16x128xf32>,
    return
  }
  func.func @transform_0(%arg0: i32) -> (i32, i32) {
    %c0_i32 = arith.constant 0 : i32
    %c0_i32_0 = arith.constant 0 : i32
    return %arg0, %c0_i32 : i32, i32
  }
  func.func @transform_1(%arg0: i32) -> (i32, i32) {
    %c0_i32 = arith.constant 0 : i32
    %c0_i32_0 = arith.constant 0 : i32
    %c0_i32_1 = arith.constant 0 : i32
    return %c0_i32, %c0_i32_0 : i32, i32
  }
  func.func @transform_2(%arg0: i32) -> (i32, i32) {
    %c0_i32 = arith.constant 0 : i32
    %c0_i32_0 = arith.constant 0 : i32
    %c0_i32_1 = arith.constant 0 : i32
    return %c0_i32, %c0_i32_0 : i32, i32
  }
  func.func @transform_3(%arg0: i32) -> (i32, i32) {
    %c0_i32 = arith.constant 0 : i32
    %c0_i32_0 = arith.constant 0 : i32
    return %arg0, %c0_i32 : i32, i32
  }
}

</mosaic_0001>

<llo_original>
// kernel: wide_resnet_forward.17
$region0: #{wide_resnet_forward.17}
  #allocation0 [shape = 'u32[]', space=smem, size = 0x4, offset = 0x4, fixed_abs, tag = 'smem constant byte address 0x4 - core index']
  #allocation1 [shape = 'u32[144,128]{1,0:T(1,128)}', space=vmem, size = 0x12000, scoped, tag = 'internal scratch']
  %s0 = inlined_call_operand.vmem [shape: bf16[512,128], index: 0, kind: input, shape index: {}, may-alias: {0,3}]
  %s1 = inlined_call_operand.vmem [shape: f32[1,128], index: 1, kind: input, shape index: {}]
  %s2 = inlined_call_operand.vmem [shape: f32[1,128], index: 2, kind: input, shape index: {}]
  %s3 = inlined_call_operand.vmem [shape: bf16[512,128], index: 3, kind: output, shape index: {}, may-alias: {0,3}]
  %s4 = sld [smem:[#allocation0]]
  $region45: #{wide_resnet_forward.17} parent=0
    _
  %s6 = ssub.s32 1, %s4
  %s7 = scalar_select 0, %s6, %s4
  loop: start=0, step=1, limit=4
  $region2: #{wide_resnet_forward.17} parent=0 // loop_pre_header
    _
  $region3: #{wide_resnet_forward.17} parent=0 // loop_header
    %s9 = sphi 0, %s13
    %p10 = scmp.ge.s32.totalorder %s9, 4
    %s19 = sphi 0, %s21
    %s22 = sphi 0, %s19
    %s23 = sphi 0, %s22
    %s39 = sphi 0, %s23
    %s43 = sphi 0, %s43
    %s45 = sphi 0, %s43
    %s46 = sphi 0, %s45
    %s60 = sphi 0, %s46
    %s64 = sphi 0, %s64
    %s66 = sphi 0, %s64
    %s67 = sphi 0, %s66
    %s81 = sphi 0, %s67
    %s87 = sphi 0, %s89
    %s90 = sphi 0, %s87
    %s91 = sphi 0, %s90
    %s107 = sphi 0, %s91
  $region4: #{wide_resnet_forward.17} parent=0 // loop_header_branch
    %12 = sbr.rel (%p10) target = $region8
  $region5: #{wide_resnet_forward.17} parent=0 // loop_body
    %s14 = ssub.s32 %s9, 1
    %s15 = ssub.s32 %s9, 2
    %s16 = sadd.s32 %s9, 1
    %s17 = ssub.s32 %s9, %s16
    %p18 = scmp.eq.s32.totalorder %s17, 0
    %s20 = sadd.s32 %s19, 1
    %s21 = scalar_select %p18, %s19, %s20
    %p24 = pneg %p18
    %p25 = scmp.eq.s32.totalorder %s9, 1
    %p26 = por %p24, %p25
    %p27 = scmp.ne.s32.totalorder %s19, %s22
    %p28 = scmp.eq.s32.totalorder %s9, 0
    %p29 = por %p27, %p28
    %p30 = scmp.ne.s32.totalorder %s19, %s22
    %p31 = scmp.eq.s32.totalorder %s14, 1
    %p32 = por %p30, %p31
    %p33 = scmp.ne.s32.totalorder %s22, %s23
    %p34 = scmp.eq.s32.totalorder %s14, 0
    %p35 = por %p33, %p34
    %p36 = scmp.ne.s32.totalorder %s22, %s23
    %p37 = scmp.eq.s32.totalorder %s15, 1
    %p38 = por %p36, %p37
    %p40 = scmp.ne.s32.totalorder %s23, %s39
    %p41 = scmp.eq.s32.totalorder %s15, 0
    %p42 = por %p40, %p41
    %s44 = sadd.s32 %s43, 1
    %p47 = scmp.eq.s32.totalorder %s9, 1
    %p48 = scmp.ne.s32.totalorder %s43, %s45
    %p49 = scmp.eq.s32.totalorder %s9, 0
    %p50 = por %p48, %p49
    %p51 = scmp.ne.s32.totalorder %s43, %s45
    %p52 = scmp.eq.s32.totalorder %s14, 1
    %p53 = por %p51, %p52
    %p54 = scmp.ne.s32.totalorder %s45, %s46
    %p55 = scmp.eq.s32.totalorder %s14, 0
    %p56 = por %p54, %p55
    %p57 = scmp.ne.s32.totalorder %s45, %s46
    %p58 = scmp.eq.s32.totalorder %s15, 1
    %p59 = por %p57, %p58
    %p61 = scmp.ne.s32.totalorder %s46, %s60
    %p62 = scmp.eq.s32.totalorder %s15, 0
    %p63 = por %p61, %p62
    %s65 = sadd.s32 %s64, 1
    %p68 = scmp.eq.s32.totalorder %s9, 1
    %p69 = scmp.ne.s32.totalorder %s64, %s66
    %p70 = scmp.eq.s32.totalorder %s9, 0
    %p71 = por %p69, %p70
    %p72 = scmp.ne.s32.totalorder %s64, %s66
    %p73 = scmp.eq.s32.totalorder %s14, 1
    %p74 = por %p72, %p73
    %p75 = scmp.ne.s32.totalorder %s66, %s67
    %p76 = scmp.eq.s32.totalorder %s14, 0
    %p77 = por %p75, %p76
    %p78 = scmp.ne.s32.totalorder %s66, %s67
    %p79 = scmp.eq.s32.totalorder %s15, 1
    %p80 = por %p78, %p79
    %p82 = scmp.ne.s32.totalorder %s67, %s81
    %p83 = scmp.eq.s32.totalorder %s15, 0
    %p84 = por %p82, %p83
    %s85 = ssub.s32 %s9, %s16
    %p86 = scmp.eq.s32.totalorder %s85, 0
    %s88 = sadd.s32 %s87, 1
    %s89 = scalar_select %p86, %s87, %s88
    %p92 = pneg %p86
    %p93 = scmp.eq.s32.totalorder %s9, 1
    %p94 = por %p92, %p93
    %p95 = scmp.ne.s32.totalorder %s87, %s90
    %p96 = scmp.eq.s32.totalorder %s9, 0
    %p97 = por %p95, %p96
    %p98 = scmp.ne.s32.totalorder %s87, %s90
    %p99 = scmp.eq.s32.totalorder %s14, 1
    %p100 = por %p98, %p99
    %p101 = scmp.ne.s32.totalorder %s90, %s91
    %p102 = scmp.eq.s32.totalorder %s14, 0
    %p103 = por %p101, %p102
    %p104 = scmp.ne.s32.totalorder %s90, %s91
    %p105 = scmp.eq.s32.totalorder %s15, 1
    %p106 = por %p104, %p105
    %p108 = scmp.ne.s32.totalorder %s91, %s107
    %p109 = scmp.eq.s32.totalorder %s15, 0
    %p110 = por %p108, %p109
    %p111 = scmp.le.s32.totalorder 1, %s9
    %p112 = scmp.lt.s32.totalorder %s9, 3
    %p113 = pnand %p111, %p112
    %p114 = pneg %p113
    // Predicated region
    $region9: #{wide_resnet_forward.17} parent=5 // pred_check
      _
    $region10: #{wide_resnet_forward.17} parent=5 // pred_check_branch
      %116 = sbr.rel (%p113) target = $region12
    $region11: #{wide_resnet_forward.17} parent=5 // pred_region
      %s117 = ssub.s32 %s9, 1
      // Predicated region
      $region13: #{wide_resnet_forward.17} parent=11 // pred_check
        %p118 = pneg %p56
      $region14: #{wide_resnet_forward.17} parent=11 // pred_check_branch
        %120 = sbr.rel (%p118) target = $region16
      $region15: #{wide_resnet_forward.17} parent=11 // pred_region
        _
      $region16: #{wide_resnet_forward.17} parent=11 // pred_fallthru
        _
      // Predicated region
      $region17: #{wide_resnet_forward.17} parent=11 // pred_check
        %p121 = pneg %p77
      $region18: #{wide_resnet_forward.17} parent=11 // pred_check_branch
        %123 = sbr.rel (%p121) target = $region20
      $region19: #{wide_resnet_forward.17} parent=11 // pred_region
        _
      $region20: #{wide_resnet_forward.17} parent=11 // pred_fallthru
        _
    $region12: #{wide_resnet_forward.17} parent=5 // pred_fallthru
      _
    %p124 = scmp.lt.s32.totalorder %s9, 2
    // Predicated region
    $region21: #{wide_resnet_forward.17} parent=5 // pred_check
      %p125 = pneg %p124
    $region22: #{wide_resnet_forward.17} parent=5 // pred_check_branch
      %127 = sbr.rel (%p125) target = $region24
    $region23: #{wide_resnet_forward.17} parent=5 // pred_region
      // Predicated region
      $region25: #{wide_resnet_forward.17} parent=23 // pred_check
        %p128 = pneg %p29
      $region26: #{wide_resnet_forward.17} parent=23 // pred_check_branch
        %130 = sbr.rel (%p128) target = $region28
      $region27: #{wide_resnet_forward.17} parent=23 // pred_region
        %s131 = smul.u32 32, %s9
        %p132 = scmp.lt.s32.totalorder %s131, 63
        %s133 = scalar_select %p132, %s131, 63
        %s134 = smul.addr %s133, 4
        %s135 = scalar_lea.vmem %s0, %s134
        %s136 = smul.u32 32, %s9
      $region28: #{wide_resnet_forward.17} parent=23 // pred_fallthru
        _
    $region24: #{wide_resnet_forward.17} parent=5 // pred_fallthru
      _
    %p137 = scmp.le.s32.totalorder 1, %s9
    %p138 = scmp.lt.s32.totalorder %s9, 3
    %p139 = pnand %p137, %p138
    %p140 = pneg %p139
    // Predicated region
    $region29: #{wide_resnet_forward.17} parent=5 // pred_check
      _
    $region30: #{wide_resnet_forward.17} parent=5 // pred_check_branch
      %142 = sbr.rel (%p139) target = $region32
    $region31: #{wide_resnet_forward.17} parent=5 // pred_region
      %s143 = ssub.s32 %s9, 1
      %s144 = smul.u32 32, %s14
      %p145 = scmp.lt.s32.totalorder %s144, 63
      %s146 = scalar_select %p145, %s144, 63
      %s147 = smul.addr %s146, 4
      %s148 = scalar_lea.vmem %s0, %s147
      %p149 = pneg %p35
      %p150 = pneg %p32
      %p151 = pneg %p56
      %p152 = pneg %p53
      %p153 = pneg %p77
      %p154 = pneg %p74
      %p155 = pneg %p103
      %p156 = pneg %p100
      %s157 = smul.u32 32, %s14
      %p158 = scmp.lt.s32.totalorder %s157, 63
      %s159 = scalar_select %p158, %s157, 63
      %s160 = smul.addr %s159, 4
      %s161 = scalar_lea.vmem %s3, %s160
      %s162 = smul.u32 32, %s14
      %p163 = scmp.lt.s32.totalorder %s162, 63
      %s164 = scalar_select %p163, %s162, 63
      %s165 = smul.addr %s164, 4
      %s166 = scalar_lea.vmem %s0, %s165
      %s167 = smul.u32 32, %s14
      %s168 = smul.u32 32, %s14
      %p169 = scmp.lt.s32.totalorder %s168, 63
      %s170 = scalar_select %p169, %s168, 63
      %s171 = smul.addr %s170, 4
      %s172 = scalar_lea.vmem %s3, %s171
      %s173 = smul.u32 32, %s14
      %v174 = vld [vmem:[%s166] sm:$0xf]
      %v175 = vld [vmem:[%s166 + $0x4] sm:$0xf]
      %v176 = vld [vmem:[%s166 + $0x8] sm:$0xf]
      %v177 = vld [vmem:[%s166 + $0xc] sm:$0xf]
      %v178 = vld [vmem:[%s166 + $0x10] sm:$0xf]
      %v179 = vld [vmem:[%s166 + $0x14] sm:$0xf]
      %v180 = vld [vmem:[%s166 + $0x18] sm:$0xf]
      %v181 = vld [vmem:[%s166 + $0x1c] sm:$0xf]
      %v182 = vld [vmem:[%s166 + $0x20] sm:$0xf]
      %v183 = vld [vmem:[%s166 + $0x24] sm:$0xf]
      %v184 = vld [vmem:[%s166 + $0x28] sm:$0xf]
      %v185 = vld [vmem:[%s166 + $0x2c] sm:$0xf]
      %v186 = vld [vmem:[%s166 + $0x30] sm:$0xf]
      %v187 = vld [vmem:[%s166 + $0x34] sm:$0xf]
      %v188 = vld [vmem:[%s166 + $0x38] sm:$0xf]
      %v189 = vld [vmem:[%s166 + $0x3c] sm:$0xf]
      %v190 = vld [vmem:[%s166 + $0x40] sm:$0xf]
      %v191 = vld [vmem:[%s166 + $0x44] sm:$0xf]
      %v192 = vld [vmem:[%s166 + $0x48] sm:$0xf]
      %v193 = vld [vmem:[%s166 + $0x4c] sm:$0xf]
      %v194 = vld [vmem:[%s166 + $0x50] sm:$0xf]
      %v195 = vld [vmem:[%s166 + $0x54] sm:$0xf]
      %v196 = vld [vmem:[%s166 + $0x58] sm:$0xf]
      %v197 = vld [vmem:[%s166 + $0x5c] sm:$0xf]
      %v198 = vld [vmem:[%s166 + $0x60] sm:$0xf]
      %v199 = vld [vmem:[%s166 + $0x64] sm:$0xf]
      %v200 = vld [vmem:[%s166 + $0x68] sm:$0xf]
      %v201 = vld [vmem:[%s166 + $0x6c] sm:$0xf]
      %v202 = vld [vmem:[%s166 + $0x70] sm:$0xf]
      %v203 = vld [vmem:[%s166 + $0x74] sm:$0xf]
      %v204 = vld [vmem:[%s166 + $0x78] sm:$0xf]
      %v205 = vld [vmem:[%s166 + $0x7c] sm:$0xf]
      %v206 = vunpack.c.l.bf16 %v174
      %v207 = vunpack.c.l.bf16 %v175
      %v208 = vunpack.c.l.bf16 %v176
      %v209 = vunpack.c.l.bf16 %v177
      %v210 = vunpack.c.l.bf16 %v178
      %v211 = vunpack.c.l.bf16 %v179
      %v212 = vunpack.c.l.bf16 %v180
      %v213 = vunpack.c.l.bf16 %v181
      %v214 = vunpack.c.l.bf16 %v182
      %v215 = vunpack.c.l.bf16 %v183
      %v216 = vunpack.c.l.bf16 %v184
      %v217 = vunpack.c.l.bf16 %v185
      %v218 = vunpack.c.l.bf16 %v186
      %v219 = vunpack.c.l.bf16 %v187
      %v220 = vunpack.c.l.bf16 %v188
      %v221 = vunpack.c.l.bf16 %v189
      %v222 = vunpack.c.l.bf16 %v190
      %v223 = vunpack.c.l.bf16 %v191
      %v224 = vunpack.c.l.bf16 %v192
      %v225 = vunpack.c.l.bf16 %v193
      %v226 = vunpack.c.l.bf16 %v194
      %v227 = vunpack.c.l.bf16 %v195
      %v228 = vunpack.c.l.bf16 %v196
      %v229 = vunpack.c.l.bf16 %v197
      %v230 = vunpack.c.l.bf16 %v198
      %v231 = vunpack.c.l.bf16 %v199
      %v232 = vunpack.c.l.bf16 %v200
      %v233 = vunpack.c.l.bf16 %v201
      %v234 = vunpack.c.l.bf16 %v202
      %v235 = vunpack.c.l.bf16 %v203
      %v236 = vunpack.c.l.bf16 %v204
      %v237 = vunpack.c.l.bf16 %v205
      %v238 = vld [vmem:[%s1] sm:$0x1]
      %v240 = vlaneseq
      %v241 = vshrl.u32 %v240, 7
      %v242 = vsub.s32 0, %v241
      %v243 = vrot.slane %v238, %v242
      %v245 = vmul.f32 %v206, %v243
      %v246 = vmul.f32 %v207, %v243
      %v247 = vmul.f32 %v208, %v243
      %v248 = vmul.f32 %v209, %v243
      %v249 = vmul.f32 %v210, %v243
      %v250 = vmul.f32 %v211, %v243
      %v251 = vmul.f32 %v212, %v243
      %v252 = vmul.f32 %v213, %v243
      %v253 = vmul.f32 %v214, %v243
      %v254 = vmul.f32 %v215, %v243
      %v255 = vmul.f32 %v216, %v243
      %v256 = vmul.f32 %v217, %v243
      %v257 = vmul.f32 %v218, %v243
      %v258 = vmul.f32 %v219, %v243
      %v259 = vmul.f32 %v220, %v243
      %v260 = vmul.f32 %v221, %v243
      %v261 = vmul.f32 %v222, %v243
      %v262 = vmul.f32 %v223, %v243
      %v263 = vmul.f32 %v224, %v243
      %v264 = vmul.f32 %v225, %v243
      %v265 = vmul.f32 %v226, %v243
      %v266 = vmul.f32 %v227, %v243
      %v267 = vmul.f32 %v228, %v243
      %v268 = vmul.f32 %v229, %v243
      %v269 = vmul.f32 %v230, %v243
      %v270 = vmul.f32 %v231, %v243
      %v271 = vmul.f32 %v232, %v243
      %v272 = vmul.f32 %v233, %v243
      %v273 = vmul.f32 %v234, %v243
      %v274 = vmul.f32 %v235, %v243
      %v275 = vmul.f32 %v236, %v243
      %v276 = vmul.f32 %v237, %v243
      %v277 = vld [vmem:[%s2] sm:$0x1]
      %v279 = vlaneseq
      %v280 = vshrl.u32 %v279, 7
      %v281 = vsub.s32 0, %v280
      %v282 = vrot.slane %v277, %v281
      %v284 = vadd.f32 %v245, %v282
      %v285 = vadd.f32 %v246, %v282
      %v286 = vadd.f32 %v247, %v282
      %v287 = vadd.f32 %v248, %v282
      %v288 = vadd.f32 %v249, %v282
      %v289 = vadd.f32 %v250, %v282
      %v290 = vadd.f32 %v251, %v282
      %v291 = vadd.f32 %v252, %v282
      %v292 = vadd.f32 %v253, %v282
      %v293 = vadd.f32 %v254, %v282
      %v294 = vadd.f32 %v255, %v282
      %v295 = vadd.f32 %v256, %v282
      %v296 = vadd.f32 %v257, %v282
      %v297 = vadd.f32 %v258, %v282
      %v298 = vadd.f32 %v259, %v282
      %v299 = vadd.f32 %v260, %v282
      %v300 = vadd.f32 %v261, %v282
      %v301 = vadd.f32 %v262, %v282
      %v302 = vadd.f32 %v263, %v282
      %v303 = vadd.f32 %v264, %v282
      %v304 = vadd.f32 %v265, %v282
      %v305 = vadd.f32 %v266, %v282
      %v306 = vadd.f32 %v267, %v282
      %v307 = vadd.f32 %v268, %v282
      %v308 = vadd.f32 %v269, %v282
      %v309 = vadd.f32 %v270, %v282
      %v310 = vadd.f32 %v271, %v282
      %v311 = vadd.f32 %v272, %v282
      %v312 = vadd.f32 %v273, %v282
      %v313 = vadd.f32 %v274, %v282
      %v314 = vadd.f32 %v275, %v282
      %v315 = vadd.f32 %v276, %v282
      %v316 = vmax.f32 %v284, 0.0
      %v317 = vmax.f32 %v285, 0.0
      %v318 = vmax.f32 %v286, 0.0
      %v319 = vmax.f32 %v287, 0.0
      %v320 = vmax.f32 %v288, 0.0
      %v321 = vmax.f32 %v289, 0.0
      %v322 = vmax.f32 %v290, 0.0
      %v323 = vmax.f32 %v291, 0.0
      %v324 = vmax.f32 %v292, 0.0
      %v325 = vmax.f32 %v293, 0.0
      %v326 = vmax.f32 %v294, 0.0
      %v327 = vmax.f32 %v295, 0.0
      %v328 = vmax.f32 %v296, 0.0
      %v329 = vmax.f32 %v297, 0.0
      %v330 = vmax.f32 %v298, 0.0
      %v331 = vmax.f32 %v299, 0.0
      %v332 = vmax.f32 %v300, 0.0
      %v333 = vmax.f32 %v301, 0.0
      %v334 = vmax.f32 %v302, 0.0
      %v335 = vmax.f32 %v303, 0.0
      %v336 = vmax.f32 %v304, 0.0
      %v337 = vmax.f32 %v305, 0.0
      %v338 = vmax.f32 %v306, 0.0
      %v339 = vmax.f32 %v307, 0.0
      %v340 = vmax.f32 %v308, 0.0
      %v341 = vmax.f32 %v309, 0.0
      %v342 = vmax.f32 %v310, 0.0
      %v343 = vmax.f32 %v311, 0.0
      %v344 = vmax.f32 %v312, 0.0
      %v345 = vmax.f32 %v313, 0.0
      %v346 = vmax.f32 %v314, 0.0
      %v347 = vmax.f32 %v315, 0.0
      %v348 = vpack.c.bf16 %v317, %v316
      %v349 = vpack.c.bf16 %v319, %v318
      %v350 = vpack.c.bf16 %v321, %v320
      %v351 = vpack.c.bf16 %v323, %v322
      %v352 = vpack.c.bf16 %v325, %v324
      %v353 = vpack.c.bf16 %v327, %v326
      %v354 = vpack.c.bf16 %v329, %v328
      %v355 = vpack.c.bf16 %v331, %v330
      %v356 = vpack.c.bf16 %v333, %v332
      %v357 = vpack.c.bf16 %v335, %v334
      %v358 = vpack.c.bf16 %v337, %v336
      %v359 = vpack.c.bf16 %v339, %v338
      %v360 = vpack.c.bf16 %v341, %v340
      %v361 = vpack.c.bf16 %v343, %v342
      %v362 = vpack.c.bf16 %v345, %v344
      %v363 = vpack.c.bf16 %v347, %v346
      %v380 = vunpack.c.l.b16 %v348
      %v381 = vunpack.c.h.b16 %v348
      %v382 = vunpack.c.l.b16 %v349
      %v383 = vunpack.c.h.b16 %v349
      %v384 = vunpack.c.l.b16 %v350
      %v385 = vunpack.c.h.b16 %v350
      %v386 = vunpack.c.l.b16 %v351
      %v387 = vunpack.c.h.b16 %v351
      %v388 = vunpack.c.l.b16 %v352
      %v389 = vunpack.c.h.b16 %v352
      %v390 = vunpack.c.l.b16 %v353
      %v391 = vunpack.c.h.b16 %v353
      %v392 = vunpack.c.l.b16 %v354
      %v393 = vunpack.c.h.b16 %v354
      %v394 = vunpack.c.l.b16 %v355
      %v395 = vunpack.c.h.b16 %v355
      %v396 = vunpack.c.l.b16 %v356
      %v397 = vunpack.c.h.b16 %v356
      %v398 = vunpack.c.l.b16 %v357
      %v399 = vunpack.c.h.b16 %v357
      %v400 = vunpack.c.l.b16 %v358
      %v401 = vunpack.c.h.b16 %v358
      %v402 = vunpack.c.l.b16 %v359
      %v403 = vunpack.c.h.b16 %v359
      %v404 = vunpack.c.l.b16 %v360
      %v405 = vunpack.c.h.b16 %v360
      %v406 = vunpack.c.l.b16 %v361
      %v407 = vunpack.c.h.b16 %v361
      %v408 = vunpack.c.l.b16 %v362
      %v409 = vunpack.c.h.b16 %v362
      %v410 = vunpack.c.l.b16 %v363
      %v411 = vunpack.c.h.b16 %v363
      %v412 = vpack.c.b16 %v380, %v380
      %v413 = vpack.c.b16 %v381, %v381
      %v414 = vpack.c.b16 %v382, %v382
      %v415 = vpack.c.b16 %v383, %v383
      %v416 = vpack.c.b16 %v384, %v384
      %v417 = vpack.c.b16 %v385, %v385
      %v418 = vpack.c.b16 %v386, %v386
      %v419 = vpack.c.b16 %v387, %v387
      %v420 = vpack.c.b16 %v388, %v388
      %v421 = vpack.c.b16 %v389, %v389
      %v422 = vpack.c.b16 %v390, %v390
      %v423 = vpack.c.b16 %v391, %v391
      %v424 = vpack.c.b16 %v392, %v392
      %v425 = vpack.c.b16 %v393, %v393
      %v426 = vpack.c.b16 %v394, %v394
      %v427 = vpack.c.b16 %v395, %v395
      %v428 = vpack.c.b16 %v396, %v396
      %v429 = vpack.c.b16 %v397, %v397
      %v430 = vpack.c.b16 %v398, %v398
      %v431 = vpack.c.b16 %v399, %v399
      %v432 = vpack.c.b16 %v400, %v400
      %v433 = vpack.c.b16 %v401, %v401
      %v434 = vpack.c.b16 %v402, %v402
      %v435 = vpack.c.b16 %v403, %v403
      %v436 = vpack.c.b16 %v404, %v404
      %v437 = vpack.c.b16 %v405, %v405
      %v438 = vpack.c.b16 %v406, %v406
      %v439 = vpack.c.b16 %v407, %v407
      %v440 = vpack.c.b16 %v408, %v408
      %v441 = vpack.c.b16 %v409, %v409
      %v442 = vpack.c.b16 %v410, %v410
      %v443 = vpack.c.b16 %v411, %v411
      %476 = vst [vmem:[%s172] sm:$0xf] %v412
      %477 = vst [vmem:[%s172 + $0x4] sm:$0xf] %v413
      %478 = vst [vmem:[%s172 + $0x8] sm:$0xf] %v414
      %479 = vst [vmem:[%s172 + $0xc] sm:$0xf] %v415
      %480 = vst [vmem:[%s172 + $0x10] sm:$0xf] %v416
      %481 = vst [vmem:[%s172 + $0x14] sm:$0xf] %v417
      %482 = vst [vmem:[%s172 + $0x18] sm:$0xf] %v418
      %483 = vst [vmem:[%s172 + $0x1c] sm:$0xf] %v419
      %484 = vst [vmem:[%s172 + $0x20] sm:$0xf] %v420
      %485 = vst [vmem:[%s172 + $0x24] sm:$0xf] %v421
      %486 = vst [vmem:[%s172 + $0x28] sm:$0xf] %v422
      %487 = vst [vmem:[%s172 + $0x2c] sm:$0xf] %v423
      %488 = vst [vmem:[%s172 + $0x30] sm:$0xf] %v424
      %489 = vst [vmem:[%s172 + $0x34] sm:$0xf] %v425
      %490 = vst [vmem:[%s172 + $0x38] sm:$0xf] %v426
      %491 = vst [vmem:[%s172 + $0x3c] sm:$0xf] %v427
      %492 = vst [vmem:[%s172 + $0x40] sm:$0xf] %v428
      %493 = vst [vmem:[%s172 + $0x44] sm:$0xf] %v429
      %494 = vst [vmem:[%s172 + $0x48] sm:$0xf] %v430
      %495 = vst [vmem:[%s172 + $0x4c] sm:$0xf] %v431
      %496 = vst [vmem:[%s172 + $0x50] sm:$0xf] %v432
      %497 = vst [vmem:[%s172 + $0x54] sm:$0xf] %v433
      %498 = vst [vmem:[%s172 + $0x58] sm:$0xf] %v434
      %499 = vst [vmem:[%s172 + $0x5c] sm:$0xf] %v435
      %500 = vst [vmem:[%s172 + $0x60] sm:$0xf] %v436
      %501 = vst [vmem:[%s172 + $0x64] sm:$0xf] %v437
      %502 = vst [vmem:[%s172 + $0x68] sm:$0xf] %v438
      %503 = vst [vmem:[%s172 + $0x6c] sm:$0xf] %v439
      %504 = vst [vmem:[%s172 + $0x70] sm:$0xf] %v440
      %505 = vst [vmem:[%s172 + $0x74] sm:$0xf] %v441
      %506 = vst [vmem:[%s172 + $0x78] sm:$0xf] %v442
      %507 = vst [vmem:[%s172 + $0x7c] sm:$0xf] %v443
      %s508 = smul.u32 32, %s14
      %p509 = scmp.lt.s32.totalorder %s508, 63
      %s510 = scalar_select %p509, %s508, 63
      %s511 = smul.addr %s510, 4
      %s512 = scalar_lea.vmem %s3, %s511
      // Predicated region
      $region33: #{wide_resnet_forward.17} parent=31 // pred_check
        %p513 = pneg %p100
      $region34: #{wide_resnet_forward.17} parent=31 // pred_check_branch
        %515 = sbr.rel (%p513) target = $region36
      $region35: #{wide_resnet_forward.17} parent=31 // pred_region
        %s516 = smul.u32 32, %s14
      $region36: #{wide_resnet_forward.17} parent=31 // pred_fallthru
        _
    $region32: #{wide_resnet_forward.17} parent=5 // pred_fallthru
      _
    %p517 = scmp.le.s32.totalorder 2, %s9
    // Predicated region
    $region37: #{wide_resnet_forward.17} parent=5 // pred_check
      %p518 = pneg %p517
    $region38: #{wide_resnet_forward.17} parent=5 // pred_check_branch
      %520 = sbr.rel (%p518) target = $region40
    $region39: #{wide_resnet_forward.17} parent=5 // pred_region
      %s521 = ssub.s32 %s9, 2
      // Predicated region
      $region41: #{wide_resnet_forward.17} parent=39 // pred_check
        %p522 = pneg %p106
      $region42: #{wide_resnet_forward.17} parent=39 // pred_check_branch
        %524 = sbr.rel (%p522) target = $region44
      $region43: #{wide_resnet_forward.17} parent=39 // pred_region
        %s525 = smul.u32 32, %s15
        %p526 = scmp.lt.s32.totalorder %s525, 63
        %s527 = scalar_select %p526, %s525, 63
        %s528 = smul.addr %s527, 4
        %s529 = scalar_lea.vmem %s3, %s528
      $region44: #{wide_resnet_forward.17} parent=39 // pred_fallthru
        _
    $region40: #{wide_resnet_forward.17} parent=5 // pred_fallthru
      _
  $region6: #{wide_resnet_forward.17} parent=0 // loop_footer
    %s13 = sadd.s32 1, %s9
  $region7: #{wide_resnet_forward.17} parent=0 // loop_footer_branch
    %8 = sbr.rel target = $region3
  $region8: #{wide_resnet_forward.17} parent=0 // loop_exit
    _

// kernel: wide_resnet_forward.16
$region0: #{wide_resnet_forward.16}
  #allocation0 [shape = 'u32[]', space=smem, size = 0x4, offset = 0x4, fixed_abs, tag = 'smem constant byte address 0x4 - core index']
  #allocation1 [shape = 'u32[144,128]{1,0:T(1,128)}', space=vmem, size = 0x12000, scoped, tag = 'internal scratch']
  %s0 = inlined_call_operand.vmem [shape: bf16[512,128], index: 0, kind: input, shape index: {}]
  %s1 = inlined_call_operand.vmem [shape: bf16[128,128], index: 1, kind: input, shape index: {}]
  %s2 = inlined_call_operand.vmem [shape: bf16[512,128], index: 2, kind: output, shape index: {0}]
  %s3 = inlined_call_operand.vmem [shape: f32[16,128], index: 3, kind: output, shape index: {1}]
  %s4 = inlined_call_operand.vmem [shape: f32[16,128], index: 4, kind: output, shape index: {2}]
  %5 = xla_tuple %s2, %s3, %s4
  %s6 = sld [smem:[#allocation0]]
  $region57: #{wide_resnet_forward.16} parent=0
    _
  %s8 = ssub.s32 1, %s6
  %s9 = scalar_select 0, %s8, %s6
  loop: start=0, step=1, limit=4
  $region2: #{wide_resnet_forward.16} parent=0 // loop_pre_header
    _
  $region3: #{wide_resnet_forward.16} parent=0 // loop_header
    %s11 = sphi 0, %s15
    %p12 = scmp.ge.s32.totalorder %s11, 4
    %s21 = sphi 0, %s23
    %s24 = sphi 0, %s21
    %s25 = sphi 0, %s24
    %s41 = sphi 0, %s25
    %s45 = sphi 0, %s45
    %s47 = sphi 0, %s45
    %s48 = sphi 0, %s47
    %s62 = sphi 0, %s48
    %s68 = sphi 0, %s70
    %s71 = sphi 0, %s68
    %s72 = sphi 0, %s71
    %s88 = sphi 0, %s72
    %s94 = sphi 0, %s96
    %s97 = sphi 0, %s94
    %s98 = sphi 0, %s97
    %s114 = sphi 0, %s98
    %s120 = sphi 0, %s122
    %s123 = sphi 0, %s120
    %s124 = sphi 0, %s123
    %s140 = sphi 0, %s124
  $region4: #{wide_resnet_forward.16} parent=0 // loop_header_branch
    %14 = sbr.rel (%p12) target = $region8
  $region5: #{wide_resnet_forward.16} parent=0 // loop_body
    %s16 = ssub.s32 %s11, 1
    %s17 = ssub.s32 %s11, 2
    %s18 = sadd.s32 %s11, 1
    %s19 = ssub.s32 %s11, %s18
    %p20 = scmp.eq.s32.totalorder %s19, 0
    %s22 = sadd.s32 %s21, 1
    %s23 = scalar_select %p20, %s21, %s22
    %p26 = pneg %p20
    %p27 = scmp.eq.s32.totalorder %s11, 1
    %p28 = por %p26, %p27
    %p29 = scmp.ne.s32.totalorder %s21, %s24
    %p30 = scmp.eq.s32.totalorder %s11, 0
    %p31 = por %p29, %p30
    %p32 = scmp.ne.s32.totalorder %s21, %s24
    %p33 = scmp.eq.s32.totalorder %s16, 1
    %p34 = por %p32, %p33
    %p35 = scmp.ne.s32.totalorder %s24, %s25
    %p36 = scmp.eq.s32.totalorder %s16, 0
    %p37 = por %p35, %p36
    %p38 = scmp.ne.s32.totalorder %s24, %s25
    %p39 = scmp.eq.s32.totalorder %s17, 1
    %p40 = por %p38, %p39
    %p42 = scmp.ne.s32.totalorder %s25, %s41
    %p43 = scmp.eq.s32.totalorder %s17, 0
    %p44 = por %p42, %p43
    %s46 = sadd.s32 %s45, 1
    %p49 = scmp.eq.s32.totalorder %s11, 1
    %p50 = scmp.ne.s32.totalorder %s45, %s47
    %p51 = scmp.eq.s32.totalorder %s11, 0
    %p52 = por %p50, %p51
    %p53 = scmp.ne.s32.totalorder %s45, %s47
    %p54 = scmp.eq.s32.totalorder %s16, 1
    %p55 = por %p53, %p54
    %p56 = scmp.ne.s32.totalorder %s47, %s48
    %p57 = scmp.eq.s32.totalorder %s16, 0
    %p58 = por %p56, %p57
    %p59 = scmp.ne.s32.totalorder %s47, %s48
    %p60 = scmp.eq.s32.totalorder %s17, 1
    %p61 = por %p59, %p60
    %p63 = scmp.ne.s32.totalorder %s48, %s62
    %p64 = scmp.eq.s32.totalorder %s17, 0
    %p65 = por %p63, %p64
    %s66 = ssub.s32 %s11, %s18
    %p67 = scmp.eq.s32.totalorder %s66, 0
    %s69 = sadd.s32 %s68, 1
    %s70 = scalar_select %p67, %s68, %s69
    %p73 = pneg %p67
    %p74 = scmp.eq.s32.totalorder %s11, 1
    %p75 = por %p73, %p74
    %p76 = scmp.ne.s32.totalorder %s68, %s71
    %p77 = scmp.eq.s32.totalorder %s11, 0
    %p78 = por %p76, %p77
    %p79 = scmp.ne.s32.totalorder %s68, %s71
    %p80 = scmp.eq.s32.totalorder %s16, 1
    %p81 = por %p79, %p80
    %p82 = scmp.ne.s32.totalorder %s71, %s72
    %p83 = scmp.eq.s32.totalorder %s16, 0
    %p84 = por %p82, %p83
    %p85 = scmp.ne.s32.totalorder %s71, %s72
    %p86 = scmp.eq.s32.totalorder %s17, 1
    %p87 = por %p85, %p86
    %p89 = scmp.ne.s32.totalorder %s72, %s88
    %p90 = scmp.eq.s32.totalorder %s17, 0
    %p91 = por %p89, %p90
    %s92 = ssub.s32 %s11, %s18
    %p93 = scmp.eq.s32.totalorder %s92, 0
    %s95 = sadd.s32 %s94, 1
    %s96 = scalar_select %p93, %s94, %s95
    %p99 = pneg %p93
    %p100 = scmp.eq.s32.totalorder %s11, 1
    %p101 = por %p99, %p100
    %p102 = scmp.ne.s32.totalorder %s94, %s97
    %p103 = scmp.eq.s32.totalorder %s11, 0
    %p104 = por %p102, %p103
    %p105 = scmp.ne.s32.totalorder %s94, %s97
    %p106 = scmp.eq.s32.totalorder %s16, 1
    %p107 = por %p105, %p106
    %p108 = scmp.ne.s32.totalorder %s97, %s98
    %p109 = scmp.eq.s32.totalorder %s16, 0
    %p110 = por %p108, %p109
    %p111 = scmp.ne.s32.totalorder %s97, %s98
    %p112 = scmp.eq.s32.totalorder %s17, 1
    %p113 = por %p111, %p112
    %p115 = scmp.ne.s32.totalorder %s98, %s114
    %p116 = scmp.eq.s32.totalorder %s17, 0
    %p117 = por %p115, %p116
    %s118 = ssub.s32 %s11, %s18
    %p119 = scmp.eq.s32.totalorder %s118, 0
    %s121 = sadd.s32 %s120, 1
    %s122 = scalar_select %p119, %s120, %s121
    %p125 = pneg %p119
    %p126 = scmp.eq.s32.totalorder %s11, 1
    %p127 = por %p125, %p126
    %p128 = scmp.ne.s32.totalorder %s120, %s123
    %p129 = scmp.eq.s32.totalorder %s11, 0
    %p130 = por %p128, %p129
    %p131 = scmp.ne.s32.totalorder %s120, %s123
    %p132 = scmp.eq.s32.totalorder %s16, 1
    %p133 = por %p131, %p132
    %p134 = scmp.ne.s32.totalorder %s123, %s124
    %p135 = scmp.eq.s32.totalorder %s16, 0
    %p136 = por %p134, %p135
    %p137 = scmp.ne.s32.totalorder %s123, %s124
    %p138 = scmp.eq.s32.totalorder %s17, 1
    %p139 = por %p137, %p138
    %p141 = scmp.ne.s32.totalorder %s124, %s140
    %p142 = scmp.eq.s32.totalorder %s17, 0
    %p143 = por %p141, %p142
    %p144 = scmp.le.s32.totalorder 1, %s11
    %p145 = scmp.lt.s32.totalorder %s11, 3
    %p146 = pnand %p144, %p145
    %p147 = pneg %p146
    // Predicated region
    $region9: #{wide_resnet_forward.16} parent=5 // pred_check
      _
    $region10: #{wide_resnet_forward.16} parent=5 // pred_check_branch
      %149 = sbr.rel (%p146) target = $region12
    $region11: #{wide_resnet_forward.16} parent=5 // pred_region
      %s150 = ssub.s32 %s11, 1
      // Predicated region
      $region13: #{wide_resnet_forward.16} parent=11 // pred_check
        %p151 = pneg %p58
      $region14: #{wide_resnet_forward.16} parent=11 // pred_check_branch
        %153 = sbr.rel (%p151) target = $region16
      $region15: #{wide_resnet_forward.16} parent=11 // pred_region
        _
      $region16: #{wide_resnet_forward.16} parent=11 // pred_fallthru
        _
    $region12: #{wide_resnet_forward.16} parent=5 // pred_fallthru
      _
    %p154 = scmp.lt.s32.totalorder %s11, 2
    // Predicated region
    $region17: #{wide_resnet_forward.16} parent=5 // pred_check
      %p155 = pneg %p154
    $region18: #{wide_resnet_forward.16} parent=5 // pred_check_branch
      %157 = sbr.rel (%p155) target = $region20
    $region19: #{wide_resnet_forward.16} parent=5 // pred_region
      // Predicated region
      $region21: #{wide_resnet_forward.16} parent=19 // pred_check
        %p158 = pneg %p31
      $region22: #{wide_resnet_forward.16} parent=19 // pred_check_branch
        %160 = sbr.rel (%p158) target = $region24
      $region23: #{wide_resnet_forward.16} parent=19 // pred_region
        %s161 = smul.u32 32, %s11
        %p162 = scmp.lt.s32.totalorder %s161, 63
        %s163 = scalar_select %p162, %s161, 63
        %s164 = smul.addr %s163, 4
        %s165 = scalar_lea.vmem %s0, %s164
        %s166 = smul.u32 32, %s11
      $region24: #{wide_resnet_forward.16} parent=19 // pred_fallthru
        _
    $region20: #{wide_resnet_forward.16} parent=5 // pred_fallthru
      _
    %p167 = scmp.le.s32.totalorder 1, %s11
    %p168 = scmp.lt.s32.totalorder %s11, 3
    %p169 = pnand %p167, %p168
    %p170 = pneg %p169
    // Predicated region
    $region25: #{wide_resnet_forward.16} parent=5 // pred_check
      _
    $region26: #{wide_resnet_forward.16} parent=5 // pred_check_branch
      %172 = sbr.rel (%p169) target = $region28
    $region27: #{wide_resnet_forward.16} parent=5 // pred_region
      %s173 = ssub.s32 %s11, 1
      %s174 = smul.u32 32, %s16
      %p175 = scmp.lt.s32.totalorder %s174, 63
      %s176 = scalar_select %p175, %s174, 63
      %s177 = smul.addr %s176, 4
      %s178 = scalar_lea.vmem %s0, %s177
      %p179 = pneg %p37
      %p180 = pneg %p34
      %p181 = pneg %p58
      %p182 = pneg %p55
      %p183 = pneg %p84
      %p184 = pneg %p81
      %s185 = smul.u32 32, %s16
      %p186 = scmp.lt.s32.totalorder %s185, 63
      %s187 = scalar_select %p186, %s185, 63
      %s188 = smul.addr %s187, 4
      %s189 = scalar_lea.vmem %s2, %s188
      %p190 = pneg %p110
      %p191 = pneg %p107
      %p192 = scmp.lt.s32.totalorder %s16, 1
      %s193 = scalar_select %p192, %s16, 1
      %s194 = smul.addr %s193, 8
      %s195 = scalar_lea.vmem %s3, %s194
      %p196 = pneg %p136
      %p197 = pneg %p133
      %p198 = scmp.lt.s32.totalorder %s16, 1
      %s199 = scalar_select %p198, %s16, 1
      %s200 = smul.addr %s199, 8
      %s201 = scalar_lea.vmem %s4, %s200
      %s202 = smul.u32 32, %s16
      %p203 = scmp.lt.s32.totalorder %s202, 63
      %s204 = scalar_select %p203, %s202, 63
      %s205 = smul.addr %s204, 4
      %s206 = scalar_lea.vmem %s0, %s205
      %s207 = smul.u32 32, %s16
      %s208 = smul.u32 32, %s16
      %p209 = scmp.lt.s32.totalorder %s208, 63
      %s210 = scalar_select %p209, %s208, 63
      %s211 = smul.addr %s210, 4
      %s212 = scalar_lea.vmem %s2, %s211
      %s213 = smul.u32 32, %s16
      %p214 = scmp.lt.s32.totalorder %s16, 1
      %s215 = scalar_select %p214, %s16, 1
      %s216 = smul.addr %s215, 8
      %s217 = scalar_lea.vmem %s3, %s216
      %p218 = scmp.lt.s32.totalorder %s16, 1
      %s219 = scalar_select %p218, %s16, 1
      %s220 = smul.addr %s219, 8
      %s221 = scalar_lea.vmem %s4, %s220
      %v223 = vld [vmem:[%s206] sm:$0xf]
      %v224 = vld [vmem:[%s206 + $0x4] sm:$0xf]
      %v225 = vld [vmem:[%s206 + $0x8] sm:$0xf]
      %v226 = vld [vmem:[%s206 + $0xc] sm:$0xf]
      %v227 = vld [vmem:[%s206 + $0x10] sm:$0xf]
      %v228 = vld [vmem:[%s206 + $0x14] sm:$0xf]
      %v229 = vld [vmem:[%s206 + $0x18] sm:$0xf]
      %v230 = vld [vmem:[%s206 + $0x1c] sm:$0xf]
      %v231 = vld [vmem:[%s206 + $0x20] sm:$0xf]
      %v232 = vld [vmem:[%s206 + $0x24] sm:$0xf]
      %v233 = vld [vmem:[%s206 + $0x28] sm:$0xf]
      %v234 = vld [vmem:[%s206 + $0x2c] sm:$0xf]
      %v235 = vld [vmem:[%s206 + $0x30] sm:$0xf]
      %v236 = vld [vmem:[%s206 + $0x34] sm:$0xf]
      %v237 = vld [vmem:[%s206 + $0x38] sm:$0xf]
      %v238 = vld [vmem:[%s206 + $0x3c] sm:$0xf]
      %v239 = vld [vmem:[%s206 + $0x40] sm:$0xf]
      %v240 = vld [vmem:[%s206 + $0x44] sm:$0xf]
      %v241 = vld [vmem:[%s206 + $0x48] sm:$0xf]
      %v242 = vld [vmem:[%s206 + $0x4c] sm:$0xf]
      %v243 = vld [vmem:[%s206 + $0x50] sm:$0xf]
      %v244 = vld [vmem:[%s206 + $0x54] sm:$0xf]
      %v245 = vld [vmem:[%s206 + $0x58] sm:$0xf]
      %v246 = vld [vmem:[%s206 + $0x5c] sm:$0xf]
      %v247 = vld [vmem:[%s206 + $0x60] sm:$0xf]
      %v248 = vld [vmem:[%s206 + $0x64] sm:$0xf]
      %v249 = vld [vmem:[%s206 + $0x68] sm:$0xf]
      %v250 = vld [vmem:[%s206 + $0x6c] sm:$0xf]
      %v251 = vld [vmem:[%s206 + $0x70] sm:$0xf]
      %v252 = vld [vmem:[%s206 + $0x74] sm:$0xf]
      %v253 = vld [vmem:[%s206 + $0x78] sm:$0xf]
      %v254 = vld [vmem:[%s206 + $0x7c] sm:$0xf]
      %v255 = vld [vmem:[%s1] sm:$0xf]
      %v256 = vld [vmem:[%s1 + $0x4] sm:$0xf]
      %v257 = vld [vmem:[%s1 + $0x8] sm:$0xf]
      %v258 = vld [vmem:[%s1 + $0xc] sm:$0xf]
      %v259 = vld [vmem:[%s1 + $0x10] sm:$0xf]
      %v260 = vld [vmem:[%s1 + $0x14] sm:$0xf]
      %v261 = vld [vmem:[%s1 + $0x18] sm:$0xf]
      %v262 = vld [vmem:[%s1 + $0x1c] sm:$0xf]
      %v263 = vld [vmem:[%s1 + $0x20] sm:$0xf]
      %v264 = vld [vmem:[%s1 + $0x24] sm:$0xf]
      %v265 = vld [vmem:[%s1 + $0x28] sm:$0xf]
      %v266 = vld [vmem:[%s1 + $0x2c] sm:$0xf]
      %v267 = vld [vmem:[%s1 + $0x30] sm:$0xf]
      %v268 = vld [vmem:[%s1 + $0x34] sm:$0xf]
      %v269 = vld [vmem:[%s1 + $0x38] sm:$0xf]
      %v270 = vld [vmem:[%s1 + $0x3c] sm:$0xf]
      %v303 = vunpack.c.l.b16 %v223
      %v304 = vunpack.c.l.b16 %v224
      %v305 = vunpack.c.l.b16 %v225
      %v306 = vunpack.c.l.b16 %v226
      %v307 = vunpack.c.l.b16 %v227
      %v308 = vunpack.c.l.b16 %v228
      %v309 = vunpack.c.l.b16 %v229
      %v310 = vunpack.c.l.b16 %v230
      %v311 = vunpack.c.l.b16 %v231
      %v312 = vunpack.c.l.b16 %v232
      %v313 = vunpack.c.l.b16 %v233
      %v314 = vunpack.c.l.b16 %v234
      %v315 = vunpack.c.l.b16 %v235
      %v316 = vunpack.c.l.b16 %v236
      %v317 = vunpack.c.l.b16 %v237
      %v318 = vunpack.c.l.b16 %v238
      %v319 = vunpack.c.l.b16 %v239
      %v320 = vunpack.c.l.b16 %v240
      %v321 = vunpack.c.l.b16 %v241
      %v322 = vunpack.c.l.b16 %v242
      %v323 = vunpack.c.l.b16 %v243
      %v324 = vunpack.c.l.b16 %v244
      %v325 = vunpack.c.l.b16 %v245
      %v326 = vunpack.c.l.b16 %v246
      %v327 = vunpack.c.l.b16 %v247
      %v328 = vunpack.c.l.b16 %v248
      %v329 = vunpack.c.l.b16 %v249
      %v330 = vunpack.c.l.b16 %v250
      %v331 = vunpack.c.l.b16 %v251
      %v332 = vunpack.c.l.b16 %v252
      %v333 = vunpack.c.l.b16 %v253
      %v334 = vunpack.c.l.b16 %v254
      %v335 = vpack.c.b16 %v304, %v303
      %v336 = vpack.c.b16 %v306, %v305
      %v337 = vpack.c.b16 %v308, %v307
      %v338 = vpack.c.b16 %v310, %v309
      %v339 = vpack.c.b16 %v312, %v311
      %v340 = vpack.c.b16 %v314, %v313
      %v341 = vpack.c.b16 %v316, %v315
      %v342 = vpack.c.b16 %v318, %v317
      %v343 = vpack.c.b16 %v320, %v319
      %v344 = vpack.c.b16 %v322, %v321
      %v345 = vpack.c.b16 %v324, %v323
      %v346 = vpack.c.b16 %v326, %v325
      %v347 = vpack.c.b16 %v328, %v327
      %v348 = vpack.c.b16 %v330, %v329
      %v349 = vpack.c.b16 %v332, %v331
      %v350 = vpack.c.b16 %v334, %v333
      %v383 = vunpack.c.l.b16 %v255
      %v384 = vunpack.c.l.b16 %v256
      %v385 = vunpack.c.l.b16 %v257
      %v386 = vunpack.c.l.b16 %v258
      %v387 = vunpack.c.l.b16 %v259
      %v388 = vunpack.c.l.b16 %v260
      %v389 = vunpack.c.l.b16 %v261
      %v390 = vunpack.c.l.b16 %v262
      %v391 = vunpack.c.l.b16 %v263
      %v392 = vunpack.c.l.b16 %v264
      %v393 = vunpack.c.l.b16 %v265
      %v394 = vunpack.c.l.b16 %v266
      %v395 = vunpack.c.l.b16 %v267
      %v396 = vunpack.c.l.b16 %v268
      %v397 = vunpack.c.l.b16 %v269
      %v398 = vunpack.c.l.b16 %v270
      %v399 = vpack.c.b16 %v384, %v383
      %v400 = vpack.c.b16 %v386, %v385
      %v401 = vpack.c.b16 %v388, %v387
      %v402 = vpack.c.b16 %v390, %v389
      %v403 = vpack.c.b16 %v392, %v391
      %v404 = vpack.c.b16 %v394, %v393
      %v405 = vpack.c.b16 %v396, %v395
      %v406 = vpack.c.b16 %v398, %v397
      %415 = vmatprep.subr.bf16.mxu0 0
      %416 = vmatpush1.bf16.msra.mxu0 %v406
      %417 = vmatprep.subr.bf16.mxu0 0
      %418 = vmatpush1.bf16.msra.mxu0 %v405
      %419 = vmatprep.subr.bf16.mxu0 0
      %420 = vmatpush1.bf16.msra.mxu0 %v404
      %421 = vmatprep.subr.bf16.mxu0 0
      %422 = vmatpush1.bf16.msra.mxu0 %v403
      %423 = vmatprep.subr.bf16.mxu0 0
      %424 = vmatpush1.bf16.msra.mxu0 %v402
      %425 = vmatprep.subr.bf16.mxu0 0
      %426 = vmatpush1.bf16.msra.mxu0 %v401
      %427 = vmatprep.subr.bf16.mxu0 0
      %428 = vmatpush1.bf16.msra.mxu0 %v400
      %429 = vmatprep.subr.bf16.mxu0 0
      %430 = vmatpush1.bf16.msra.mxu0 %v399
      %431 = vmatprep.subr.bf16.mxu0 0
      %432 = vmatpush2.bf16.msra.mxu0 0
      %433 = vmatprep.subr.bf16.mxu0 0
      %434 = vmatpush2.bf16.msra.mxu0 0
      %435 = vmatprep.subr.bf16.mxu0 0
      %436 = vmatpush2.bf16.msra.mxu0 0
      %437 = vmatprep.subr.bf16.mxu0 0
      %438 = vmatpush2.bf16.msra.mxu0 0
      %439 = vmatprep.subr.bf16.mxu0 0
      %440 = vmatpush2.bf16.msra.mxu0 0
      %441 = vmatprep.subr.bf16.mxu0 0
      %442 = vmatpush2.bf16.msra.mxu0 0
      %443 = vmatprep.subr.bf16.mxu0 0
      %444 = vmatpush2.bf16.msra.mxu0 0
      %445 = vmatprep.subr.bf16.mxu0 0
      %446 = vmatpush2.bf16.msra.mxu0 0
      %447 = vmatprep.mubr.bf16.mxu0 0
      %448 = vmatmul.mubr.bf16.gmra.mxu0 %v335
      %v449 = vpop.f32.mrf.mxu0
      %v450 = vadd.f32 0.0, %v449
      %v451 = vpop.f32.mrf.mxu0
      %v452 = vpop.f32.mrf.mxu0
      %v453 = vadd.f32 0.0, %v452
      %v454 = vpop.f32.mrf.mxu0
      %455 = vmatprep.mubr.bf16.mxu0 0
      %456 = vmatmul.mubr.bf16.gmra.mxu0 %v336
      %v457 = vpop.f32.mrf.mxu0
      %v458 = vadd.f32 0.0, %v457
      %v459 = vpop.f32.mrf.mxu0
      %v460 = vpop.f32.mrf.mxu0
      %v461 = vadd.f32 0.0, %v460
      %v462 = vpop.f32.mrf.mxu0
      %463 = vmatprep.mubr.bf16.mxu0 0
      %464 = vmatmul.mubr.bf16.gmra.mxu0 %v337
      %v465 = vpop.f32.mrf.mxu0
      %v466 = vadd.f32 0.0, %v465
      %v467 = vpop.f32.mrf.mxu0
      %v468 = vpop.f32.mrf.mxu0
      %v469 = vadd.f32 0.0, %v468
      %v470 = vpop.f32.mrf.mxu0
      %471 = vmatprep.mubr.bf16.mxu0 0
      %472 = vmatmul.mubr.bf16.gmra.mxu0 %v338
      %v473 = vpop.f32.mrf.mxu0
      %v474 = vadd.f32 0.0, %v473
      %v475 = vpop.f32.mrf.mxu0
      %v476 = vpop.f32.mrf.mxu0
      %v477 = vadd.f32 0.0, %v476
      %v478 = vpop.f32.mrf.mxu0
      %479 = vmatprep.mubr.bf16.mxu0 0
      %480 = vmatmul.mubr.bf16.gmra.mxu0 %v339
      %v481 = vpop.f32.mrf.mxu0
      %v482 = vadd.f32 0.0, %v481
      %v483 = vpop.f32.mrf.mxu0
      %v484 = vpop.f32.mrf.mxu0
      %v485 = vadd.f32 0.0, %v484
      %v486 = vpop.f32.mrf.mxu0
      %487 = vmatprep.mubr.bf16.mxu0 0
      %488 = vmatmul.mubr.bf16.gmra.mxu0 %v340
      %v489 = vpop.f32.mrf.mxu0
      %v490 = vadd.f32 0.0, %v489
      %v491 = vpop.f32.mrf.mxu0
      %v492 = vpop.f32.mrf.mxu0
      %v493 = vadd.f32 0.0, %v492
      %v494 = vpop.f32.mrf.mxu0
      %495 = vmatprep.mubr.bf16.mxu0 0
      %496 = vmatmul.mubr.bf16.gmra.mxu0 %v341
      %v497 = vpop.f32.mrf.mxu0
      %v498 = vadd.f32 0.0, %v497
      %v499 = vpop.f32.mrf.mxu0
      %v500 = vpop.f32.mrf.mxu0
      %v501 = vadd.f32 0.0, %v500
      %v502 = vpop.f32.mrf.mxu0
      %503 = vmatprep.mubr.bf16.mxu0 0
      %504 = vmatmul.mubr.bf16.gmra.mxu0 %v342
      %v505 = vpop.f32.mrf.mxu0
      %v506 = vadd.f32 0.0, %v505
      %v507 = vpop.f32.mrf.mxu0
      %v508 = vpop.f32.mrf.mxu0
      %v509 = vadd.f32 0.0, %v508
      %v510 = vpop.f32.mrf.mxu0
      %511 = vmatprep.mubr.bf16.mxu0 0
      %512 = vmatmul.mubr.bf16.gmra.mxu0 %v343
      %v513 = vpop.f32.mrf.mxu0
      %v514 = vadd.f32 0.0, %v513
      %v515 = vpop.f32.mrf.mxu0
      %v516 = vpop.f32.mrf.mxu0
      %v517 = vadd.f32 0.0, %v516
      %v518 = vpop.f32.mrf.mxu0
      %519 = vmatprep.mubr.bf16.mxu0 0
      %520 = vmatmul.mubr.bf16.gmra.mxu0 %v344
      %v521 = vpop.f32.mrf.mxu0
      %v522 = vadd.f32 0.0, %v521
      %v523 = vpop.f32.mrf.mxu0
      %v524 = vpop.f32.mrf.mxu0
      %v525 = vadd.f32 0.0, %v524
      %v526 = vpop.f32.mrf.mxu0
      %527 = vmatprep.mubr.bf16.mxu0 0
      %528 = vmatmul.mubr.bf16.gmra.mxu0 %v345
      %v529 = vpop.f32.mrf.mxu0
      %v530 = vadd.f32 0.0, %v529
      %v531 = vpop.f32.mrf.mxu0
      %v532 = vpop.f32.mrf.mxu0
      %v533 = vadd.f32 0.0, %v532
      %v534 = vpop.f32.mrf.mxu0
      %535 = vmatprep.mubr.bf16.mxu0 0
      %536 = vmatmul.mubr.bf16.gmra.mxu0 %v346
      %v537 = vpop.f32.mrf.mxu0
      %v538 = vadd.f32 0.0, %v537
      %v539 = vpop.f32.mrf.mxu0
      %v540 = vpop.f32.mrf.mxu0
      %v541 = vadd.f32 0.0, %v540
      %v542 = vpop.f32.mrf.mxu0
      %543 = vmatprep.mubr.bf16.mxu0 0
      %544 = vmatmul.mubr.bf16.gmra.mxu0 %v347
      %v545 = vpop.f32.mrf.mxu0
      %v546 = vadd.f32 0.0, %v545
      %v547 = vpop.f32.mrf.mxu0
      %v548 = vpop.f32.mrf.mxu0
      %v549 = vadd.f32 0.0, %v548
      %v550 = vpop.f32.mrf.mxu0
      %551 = vmatprep.mubr.bf16.mxu0 0
      %552 = vmatmul.mubr.bf16.gmra.mxu0 %v348
      %v553 = vpop.f32.mrf.mxu0
      %v554 = vadd.f32 0.0, %v553
      %v555 = vpop.f32.mrf.mxu0
      %v556 = vpop.f32.mrf.mxu0
      %v557 = vadd.f32 0.0, %v556
      %v558 = vpop.f32.mrf.mxu0
      %559 = vmatprep.mubr.bf16.mxu0 0
      %560 = vmatmul.mubr.bf16.gmra.mxu0 %v349
      %v561 = vpop.f32.mrf.mxu0
      %v562 = vadd.f32 0.0, %v561
      %v563 = vpop.f32.mrf.mxu0
      %v564 = vpop.f32.mrf.mxu0
      %v565 = vadd.f32 0.0, %v564
      %v566 = vpop.f32.mrf.mxu0
      %567 = vmatprep.mubr.bf16.mxu0 0
      %568 = vmatmul.mubr.bf16.gmra.mxu0 %v350
      %v569 = vpop.f32.mrf.mxu0
      %v570 = vadd.f32 0.0, %v569
      %v571 = vpop.f32.mrf.mxu0
      %v572 = vpop.f32.mrf.mxu0
      %v573 = vadd.f32 0.0, %v572
      %v574 = vpop.f32.mrf.mxu0
      %575 = vdwg.mxu0
      %v576 = vpack.c.bf16 %v453, %v450
      %v577 = vpack.c.bf16 %v461, %v458
      %v578 = vpack.c.bf16 %v469, %v466
      %v579 = vpack.c.bf16 %v477, %v474
      %v580 = vpack.c.bf16 %v485, %v482
      %v581 = vpack.c.bf16 %v493, %v490
      %v582 = vpack.c.bf16 %v501, %v498
      %v583 = vpack.c.bf16 %v509, %v506
      %v584 = vpack.c.bf16 %v517, %v514
      %v585 = vpack.c.bf16 %v525, %v522
      %v586 = vpack.c.bf16 %v533, %v530
      %v587 = vpack.c.bf16 %v541, %v538
      %v588 = vpack.c.bf16 %v549, %v546
      %v589 = vpack.c.bf16 %v557, %v554
      %v590 = vpack.c.bf16 %v565, %v562
      %v591 = vpack.c.bf16 %v573, %v570
      %v608 = vunpack.c.l.b16 %v576
      %v609 = vunpack.c.h.b16 %v576
      %v610 = vunpack.c.l.b16 %v577
      %v611 = vunpack.c.h.b16 %v577
      %v612 = vunpack.c.l.b16 %v578
      %v613 = vunpack.c.h.b16 %v578
      %v614 = vunpack.c.l.b16 %v579
      %v615 = vunpack.c.h.b16 %v579
      %v616 = vunpack.c.l.b16 %v580
      %v617 = vunpack.c.h.b16 %v580
      %v618 = vunpack.c.l.b16 %v581
      %v619 = vunpack.c.h.b16 %v581
      %v620 = vunpack.c.l.b16 %v582
      %v621 = vunpack.c.h.b16 %v582
      %v622 = vunpack.c.l.b16 %v583
      %v623 = vunpack.c.h.b16 %v583
      %v624 = vunpack.c.l.b16 %v584
      %v625 = vunpack.c.h.b16 %v584
      %v626 = vunpack.c.l.b16 %v585
      %v627 = vunpack.c.h.b16 %v585
      %v628 = vunpack.c.l.b16 %v586
      %v629 = vunpack.c.h.b16 %v586
      %v630 = vunpack.c.l.b16 %v587
      %v631 = vunpack.c.h.b16 %v587
      %v632 = vunpack.c.l.b16 %v588
      %v633 = vunpack.c.h.b16 %v588
      %v634 = vunpack.c.l.b16 %v589
      %v635 = vunpack.c.h.b16 %v589
      %v636 = vunpack.c.l.b16 %v590
      %v637 = vunpack.c.h.b16 %v590
      %v638 = vunpack.c.l.b16 %v591
      %v639 = vunpack.c.h.b16 %v591
      %v640 = vpack.c.b16 %v608, %v608
      %v641 = vpack.c.b16 %v609, %v609
      %v642 = vpack.c.b16 %v610, %v610
      %v643 = vpack.c.b16 %v611, %v611
      %v644 = vpack.c.b16 %v612, %v612
      %v645 = vpack.c.b16 %v613, %v613
      %v646 = vpack.c.b16 %v614, %v614
      %v647 = vpack.c.b16 %v615, %v615
      %v648 = vpack.c.b16 %v616, %v616
      %v649 = vpack.c.b16 %v617, %v617
      %v650 = vpack.c.b16 %v618, %v618
      %v651 = vpack.c.b16 %v619, %v619
      %v652 = vpack.c.b16 %v620, %v620
      %v653 = vpack.c.b16 %v621, %v621
      %v654 = vpack.c.b16 %v622, %v622
      %v655 = vpack.c.b16 %v623, %v623
      %v656 = vpack.c.b16 %v624, %v624
      %v657 = vpack.c.b16 %v625, %v625
      %v658 = vpack.c.b16 %v626, %v626
      %v659 = vpack.c.b16 %v627, %v627
      %v660 = vpack.c.b16 %v628, %v628
      %v661 = vpack.c.b16 %v629, %v629
      %v662 = vpack.c.b16 %v630, %v630
      %v663 = vpack.c.b16 %v631, %v631
      %v664 = vpack.c.b16 %v632, %v632
      %v665 = vpack.c.b16 %v633, %v633
      %v666 = vpack.c.b16 %v634, %v634
      %v667 = vpack.c.b16 %v635, %v635
      %v668 = vpack.c.b16 %v636, %v636
      %v669 = vpack.c.b16 %v637, %v637
      %v670 = vpack.c.b16 %v638, %v638
      %v671 = vpack.c.b16 %v639, %v639
      %704 = vst [vmem:[%s212] sm:$0xf] %v640
      %705 = vst [vmem:[%s212 + $0x4] sm:$0xf] %v641
      %706 = vst [vmem:[%s212 + $0x8] sm:$0xf] %v642
      %707 = vst [vmem:[%s212 + $0xc] sm:$0xf] %v643
      %708 = vst [vmem:[%s212 + $0x10] sm:$0xf] %v644
      %709 = vst [vmem:[%s212 + $0x14] sm:$0xf] %v645
      %710 = vst [vmem:[%s212 + $0x18] sm:$0xf] %v646
      %711 = vst [vmem:[%s212 + $0x1c] sm:$0xf] %v647
      %712 = vst [vmem:[%s212 + $0x20] sm:$0xf] %v648
      %713 = vst [vmem:[%s212 + $0x24] sm:$0xf] %v649
      %714 = vst [vmem:[%s212 + $0x28] sm:$0xf] %v650
      %715 = vst [vmem:[%s212 + $0x2c] sm:$0xf] %v651
      %716 = vst [vmem:[%s212 + $0x30] sm:$0xf] %v652
      %717 = vst [vmem:[%s212 + $0x34] sm:$0xf] %v653
      %718 = vst [vmem:[%s212 + $0x38] sm:$0xf] %v654
      %719 = vst [vmem:[%s212 + $0x3c] sm:$0xf] %v655
      %720 = vst [vmem:[%s212 + $0x40] sm:$0xf] %v656
      %721 = vst [vmem:[%s212 + $0x44] sm:$0xf] %v657
      %722 = vst [vmem:[%s212 + $0x48] sm:$0xf] %v658
      %723 = vst [vmem:[%s212 + $0x4c] sm:$0xf] %v659
      %724 = vst [vmem:[%s212 + $0x50] sm:$0xf] %v660
      %725 = vst [vmem:[%s212 + $0x54] sm:$0xf] %v661
      %726 = vst [vmem:[%s212 + $0x58] sm:$0xf] %v662
      %727 = vst [vmem:[%s212 + $0x5c] sm:$0xf] %v663
      %728 = vst [vmem:[%s212 + $0x60] sm:$0xf] %v664
      %729 = vst [vmem:[%s212 + $0x64] sm:$0xf] %v665
      %730 = vst [vmem:[%s212 + $0x68] sm:$0xf] %v666
      %731 = vst [vmem:[%s212 + $0x6c] sm:$0xf] %v667
      %732 = vst [vmem:[%s212 + $0x70] sm:$0xf] %v668
      %733 = vst [vmem:[%s212 + $0x74] sm:$0xf] %v669
      %734 = vst [vmem:[%s212 + $0x78] sm:$0xf] %v670
      %735 = vst [vmem:[%s212 + $0x7c] sm:$0xf] %v671
      %v736 = vadd.f32 %v450, %v453
      %v737 = vadd.f32 %v736, %v458
      %v738 = vadd.f32 %v737, %v461
      %v739 = vadd.f32 %v738, %v466
      %v740 = vadd.f32 %v739, %v469
      %v741 = vadd.f32 %v740, %v474
      %v742 = vadd.f32 %v741, %v477
      %v743 = vadd.f32 %v742, %v482
      %v744 = vadd.f32 %v743, %v485
      %v745 = vadd.f32 %v744, %v490
      %v746 = vadd.f32 %v745, %v493
      %v747 = vadd.f32 %v746, %v498
      %v748 = vadd.f32 %v747, %v501
      %v749 = vadd.f32 %v748, %v506
      %v750 = vadd.f32 %v749, %v509
      %v751 = vadd.f32 %v750, %v514
      %v752 = vadd.f32 %v751, %v517
      %v753 = vadd.f32 %v752, %v522
      %v754 = vadd.f32 %v753, %v525
      %v755 = vadd.f32 %v754, %v530
      %v756 = vadd.f32 %v755, %v533
      %v757 = vadd.f32 %v756, %v538
      %v758 = vadd.f32 %v757, %v541
      %v759 = vadd.f32 %v758, %v546
      %v760 = vadd.f32 %v759, %v549
      %v761 = vadd.f32 %v760, %v554
      %v762 = vadd.f32 %v761, %v557
      %v763 = vadd.f32 %v762, %v562
      %v764 = vadd.f32 %v763, %v565
      %v765 = vadd.f32 %v764, %v570
      %v766 = vadd.f32 %v765, %v573
      %v767 = vrot.slane %v766, 4
      %v768 = vadd.f32 %v766, %v767
      %v769 = vrot.slane %v768, 2
      %v770 = vadd.f32 %v768, %v769
      %v771 = vrot.slane %v770, 1
      %v772 = vadd.f32 %v770, %v771
      %773 = vst [vmem:[%s217] sm:$0xff] %v772
      %v774 = vmul.f32 %v450, %v450
      %v775 = vmul.f32 %v453, %v453
      %v776 = vmul.f32 %v458, %v458
      %v777 = vmul.f32 %v461, %v461
      %v778 = vmul.f32 %v466, %v466
      %v779 = vmul.f32 %v469, %v469
      %v780 = vmul.f32 %v474, %v474
      %v781 = vmul.f32 %v477, %v477
      %v782 = vmul.f32 %v482, %v482
      %v783 = vmul.f32 %v485, %v485
      %v784 = vmul.f32 %v490, %v490
      %v785 = vmul.f32 %v493, %v493
      %v786 = vmul.f32 %v498, %v498
      %v787 = vmul.f32 %v501, %v501
      %v788 = vmul.f32 %v506, %v506
      %v789 = vmul.f32 %v509, %v509
      %v790 = vmul.f32 %v514, %v514
      %v791 = vmul.f32 %v517, %v517
      %v792 = vmul.f32 %v522, %v522
      %v793 = vmul.f32 %v525, %v525
      %v794 = vmul.f32 %v530, %v530
      %v795 = vmul.f32 %v533, %v533
      %v796 = vmul.f32 %v538, %v538
      %v797 = vmul.f32 %v541, %v541
      %v798 = vmul.f32 %v546, %v546
      %v799 = vmul.f32 %v549, %v549
      %v800 = vmul.f32 %v554, %v554
      %v801 = vmul.f32 %v557, %v557
      %v802 = vmul.f32 %v562, %v562
      %v803 = vmul.f32 %v565, %v565
      %v804 = vmul.f32 %v570, %v570
      %v805 = vmul.f32 %v573, %v573
      %v806 = vadd.f32 %v774, %v775
      %v807 = vadd.f32 %v806, %v776
      %v808 = vadd.f32 %v807, %v777
      %v809 = vadd.f32 %v808, %v778
      %v810 = vadd.f32 %v809, %v779
      %v811 = vadd.f32 %v810, %v780
      %v812 = vadd.f32 %v811, %v781
      %v813 = vadd.f32 %v812, %v782
      %v814 = vadd.f32 %v813, %v783
      %v815 = vadd.f32 %v814, %v784
      %v816 = vadd.f32 %v815, %v785
      %v817 = vadd.f32 %v816, %v786
      %v818 = vadd.f32 %v817, %v787
      %v819 = vadd.f32 %v818, %v788
      %v820 = vadd.f32 %v819, %v789
      %v821 = vadd.f32 %v820, %v790
      %v822 = vadd.f32 %v821, %v791
      %v823 = vadd.f32 %v822, %v792
      %v824 = vadd.f32 %v823, %v793
      %v825 = vadd.f32 %v824, %v794
      %v826 = vadd.f32 %v825, %v795
      %v827 = vadd.f32 %v826, %v796
      %v828 = vadd.f32 %v827, %v797
      %v829 = vadd.f32 %v828, %v798
      %v830 = vadd.f32 %v829, %v799
      %v831 = vadd.f32 %v830, %v800
      %v832 = vadd.f32 %v831, %v801
      %v833 = vadd.f32 %v832, %v802
      %v834 = vadd.f32 %v833, %v803
      %v835 = vadd.f32 %v834, %v804
      %v836 = vadd.f32 %v835, %v805
      %v837 = vrot.slane %v836, 4
      %v838 = vadd.f32 %v836, %v837
      %v839 = vrot.slane %v838, 2
      %v840 = vadd.f32 %v838, %v839
      %v841 = vrot.slane %v840, 1
      %v842 = vadd.f32 %v840, %v841
      %843 = vst [vmem:[%s221] sm:$0xff] %v842
      %s844 = smul.u32 32, %s16
      %p845 = scmp.lt.s32.totalorder %s844, 63
      %s846 = scalar_select %p845, %s844, 63
      %s847 = smul.addr %s846, 4
      %s848 = scalar_lea.vmem %s2, %s847
      %p849 = scmp.lt.s32.totalorder %s16, 1
      %s850 = scalar_select %p849, %s16, 1
      %s851 = smul.addr %s850, 8
      %s852 = scalar_lea.vmem %s3, %s851
      %p853 = scmp.lt.s32.totalorder %s16, 1
      %s854 = scalar_select %p853, %s16, 1
      %s855 = smul.addr %s854, 8
      %s856 = scalar_lea.vmem %s4, %s855
      // Predicated region
      $region29: #{wide_resnet_forward.16} parent=27 // pred_check
        %p857 = pneg %p81
      $region30: #{wide_resnet_forward.16} parent=27 // pred_check_branch
        %859 = sbr.rel (%p857) target = $region32
      $region31: #{wide_resnet_forward.16} parent=27 // pred_region
        %s860 = smul.u32 32, %s16
      $region32: #{wide_resnet_forward.16} parent=27 // pred_fallthru
        _
      // Predicated region
      $region33: #{wide_resnet_forward.16} parent=27 // pred_check
        %p861 = pneg %p107
      $region34: #{wide_resnet_forward.16} parent=27 // pred_check_branch
        %863 = sbr.rel (%p861) target = $region36
      $region35: #{wide_resnet_forward.16} parent=27 // pred_region
        _
      $region36: #{wide_resnet_forward.16} parent=27 // pred_fallthru
        _
      // Predicated region
      $region37: #{wide_resnet_forward.16} parent=27 // pred_check
        %p864 = pneg %p133
      $region38: #{wide_resnet_forward.16} parent=27 // pred_check_branch
        %866 = sbr.rel (%p864) target = $region40
      $region39: #{wide_resnet_forward.16} parent=27 // pred_region
        _
      $region40: #{wide_resnet_forward.16} parent=27 // pred_fallthru
        _
    $region28: #{wide_resnet_forward.16} parent=5 // pred_fallthru
      _
    %p867 = scmp.le.s32.totalorder 2, %s11
    // Predicated region
    $region41: #{wide_resnet_forward.16} parent=5 // pred_check
      %p868 = pneg %p867
    $region42: #{wide_resnet_forward.16} parent=5 // pred_check_branch
      %870 = sbr.rel (%p868) target = $region44
    $region43: #{wide_resnet_forward.16} parent=5 // pred_region
      %s871 = ssub.s32 %s11, 2
      // Predicated region
      $region45: #{wide_resnet_forward.16} parent=43 // pred_check
        %p872 = pneg %p87
      $region46: #{wide_resnet_forward.16} parent=43 // pred_check_branch
        %874 = sbr.rel (%p872) target = $region48
      $region47: #{wide_resnet_forward.16} parent=43 // pred_region
        %s875 = smul.u32 32, %s17
        %p876 = scmp.lt.s32.totalorder %s875, 63
        %s877 = scalar_select %p876, %s875, 63
        %s878 = smul.addr %s877, 4
        %s879 = scalar_lea.vmem %s2, %s878
      $region48: #{wide_resnet_forward.16} parent=43 // pred_fallthru
        _
      // Predicated region
      $region49: #{wide_resnet_forward.16} parent=43 // pred_check
        %p880 = pneg %p113
      $region50: #{wide_resnet_forward.16} parent=43 // pred_check_branch
        %882 = sbr.rel (%p880) target = $region52
      $region51: #{wide_resnet_forward.16} parent=43 // pred_region
        %p883 = scmp.lt.s32.totalorder %s17, 1
        %s884 = scalar_select %p883, %s17, 1
        %s885 = smul.addr %s884, 8
        %s886 = scalar_lea.vmem %s3, %s885
      $region52: #{wide_resnet_forward.16} parent=43 // pred_fallthru
        _
      // Predicated region
      $region53: #{wide_resnet_forward.16} parent=43 // pred_check
        %p887 = pneg %p139
      $region54: #{wide_resnet_forward.16} parent=43 // pred_check_branch
        %889 = sbr.rel (%p887) target = $region56
      $region55: #{wide_resnet_forward.16} parent=43 // pred_region
        %p890 = scmp.lt.s32.totalorder %s17, 1
        %s891 = scalar_select %p890, %s17, 1
        %s892 = smul.addr %s891, 8
        %s893 = scalar_lea.vmem %s4, %s892
      $region56: #{wide_resnet_forward.16} parent=43 // pred_fallthru
        _
    $region44: #{wide_resnet_forward.16} parent=5 // pred_fallthru
      _
  $region6: #{wide_resnet_forward.16} parent=0 // loop_footer
    %s15 = sadd.s32 1, %s11
  $region7: #{wide_resnet_forward.16} parent=0 // loop_footer_branch
    %10 = sbr.rel target = $region3
  $region8: #{wide_resnet_forward.16} parent=0 // loop_exit
    _

// kernel: wide_resnet_forward.21
$region0: #{wide_resnet_forward.21}
  #allocation0 [shape = 'u32[]', space=smem, size = 0x4, offset = 0x4, fixed_abs, tag = 'smem constant byte address 0x4 - core index']
  #allocation1 [shape = 'u32[144,128]{1,0:T(1,128)}', space=vmem, size = 0x12000, scoped, tag = 'internal scratch']
  %s0 = inlined_call_operand.vmem [shape: bf16[128,128], index: 0, kind: input, shape index: {}, may-alias: {0,3}]
  %s1 = inlined_call_operand.vmem [shape: f32[1,128], index: 1, kind: input, shape index: {}]
  %s2 = inlined_call_operand.vmem [shape: f32[1,128], index: 2, kind: input, shape index: {}]
  %s3 = inlined_call_operand.vmem [shape: bf16[128,128], index: 3, kind: output, shape index: {}, may-alias: {0,3}]
  %s4 = sld [smem:[#allocation0]]
  $region22: #{wide_resnet_forward.21} parent=0
    _
  %s6 = ssub.s32 1, %s4
  %s7 = scalar_select 0, %s6, %s4
  // Predicated region
  $region2: #{wide_resnet_forward.21} parent=0 // pred_check
    _
  $region3: #{wide_resnet_forward.21} parent=0 // pred_check_branch
    %9 = sbr.rel (0) target = $region5
  $region4: #{wide_resnet_forward.21} parent=0 // pred_region
    _
  $region5: #{wide_resnet_forward.21} parent=0 // pred_fallthru
    _
  // Predicated region
  $region6: #{wide_resnet_forward.21} parent=0 // pred_check
    _
  $region7: #{wide_resnet_forward.21} parent=0 // pred_check_branch
    %11 = sbr.rel (0) target = $region9
  $region8: #{wide_resnet_forward.21} parent=0 // pred_region
    _
  $region9: #{wide_resnet_forward.21} parent=0 // pred_fallthru
    _
  // Predicated region
  $region10: #{wide_resnet_forward.21} parent=0 // pred_check
    _
  $region11: #{wide_resnet_forward.21} parent=0 // pred_check_branch
    %13 = sbr.rel (0) target = $region13
  $region12: #{wide_resnet_forward.21} parent=0 // pred_region
    _
  $region13: #{wide_resnet_forward.21} parent=0 // pred_fallthru
    _
  %v14 = vld [vmem:[%s0] sm:$0xf]
  %v15 = vld [vmem:[%s0 + $0x4] sm:$0xf]
  %v16 = vld [vmem:[%s0 + $0x8] sm:$0xf]
  %v17 = vld [vmem:[%s0 + $0xc] sm:$0xf]
  %v18 = vld [vmem:[%s0 + $0x10] sm:$0xf]
  %v19 = vld [vmem:[%s0 + $0x14] sm:$0xf]
  %v20 = vld [vmem:[%s0 + $0x18] sm:$0xf]
  %v21 = vld [vmem:[%s0 + $0x1c] sm:$0xf]
  %v22 = vld [vmem:[%s0 + $0x20] sm:$0xf]
  %v23 = vld [vmem:[%s0 + $0x24] sm:$0xf]
  %v24 = vld [vmem:[%s0 + $0x28] sm:$0xf]
  %v25 = vld [vmem:[%s0 + $0x2c] sm:$0xf]
  %v26 = vld [vmem:[%s0 + $0x30] sm:$0xf]
  %v27 = vld [vmem:[%s0 + $0x34] sm:$0xf]
  %v28 = vld [vmem:[%s0 + $0x38] sm:$0xf]
  %v29 = vld [vmem:[%s0 + $0x3c] sm:$0xf]
  %v30 = vunpack.c.l.bf16 %v14
  %v31 = vunpack.c.l.bf16 %v15
  %v32 = vunpack.c.l.bf16 %v16
  %v33 = vunpack.c.l.bf16 %v17
  %v34 = vunpack.c.l.bf16 %v18
  %v35 = vunpack.c.l.bf16 %v19
  %v36 = vunpack.c.l.bf16 %v20
  %v37 = vunpack.c.l.bf16 %v21
  %v38 = vunpack.c.l.bf16 %v22
  %v39 = vunpack.c.l.bf16 %v23
  %v40 = vunpack.c.l.bf16 %v24
  %v41 = vunpack.c.l.bf16 %v25
  %v42 = vunpack.c.l.bf16 %v26
  %v43 = vunpack.c.l.bf16 %v27
  %v44 = vunpack.c.l.bf16 %v28
  %v45 = vunpack.c.l.bf16 %v29
  %v46 = vld [vmem:[%s1] sm:$0x1]
  %v48 = vlaneseq
  %v49 = vshrl.u32 %v48, 7
  %v50 = vsub.s32 0, %v49
  %v51 = vrot.slane %v46, %v50
  %v53 = vmul.f32 %v30, %v51
  %v54 = vmul.f32 %v31, %v51
  %v55 = vmul.f32 %v32, %v51
  %v56 = vmul.f32 %v33, %v51
  %v57 = vmul.f32 %v34, %v51
  %v58 = vmul.f32 %v35, %v51
  %v59 = vmul.f32 %v36, %v51
  %v60 = vmul.f32 %v37, %v51
  %v61 = vmul.f32 %v38, %v51
  %v62 = vmul.f32 %v39, %v51
  %v63 = vmul.f32 %v40, %v51
  %v64 = vmul.f32 %v41, %v51
  %v65 = vmul.f32 %v42, %v51
  %v66 = vmul.f32 %v43, %v51
  %v67 = vmul.f32 %v44, %v51
  %v68 = vmul.f32 %v45, %v51
  %v69 = vld [vmem:[%s2] sm:$0x1]
  %v71 = vlaneseq
  %v72 = vshrl.u32 %v71, 7
  %v73 = vsub.s32 0, %v72
  %v74 = vrot.slane %v69, %v73
  %v76 = vadd.f32 %v53, %v74
  %v77 = vadd.f32 %v54, %v74
  %v78 = vadd.f32 %v55, %v74
  %v79 = vadd.f32 %v56, %v74
  %v80 = vadd.f32 %v57, %v74
  %v81 = vadd.f32 %v58, %v74
  %v82 = vadd.f32 %v59, %v74
  %v83 = vadd.f32 %v60, %v74
  %v84 = vadd.f32 %v61, %v74
  %v85 = vadd.f32 %v62, %v74
  %v86 = vadd.f32 %v63, %v74
  %v87 = vadd.f32 %v64, %v74
  %v88 = vadd.f32 %v65, %v74
  %v89 = vadd.f32 %v66, %v74
  %v90 = vadd.f32 %v67, %v74
  %v91 = vadd.f32 %v68, %v74
  %v92 = vpack.c.bf16 %v77, %v76
  %v93 = vpack.c.bf16 %v79, %v78
  %v94 = vpack.c.bf16 %v81, %v80
  %v95 = vpack.c.bf16 %v83, %v82
  %v96 = vpack.c.bf16 %v85, %v84
  %v97 = vpack.c.bf16 %v87, %v86
  %v98 = vpack.c.bf16 %v89, %v88
  %v99 = vpack.c.bf16 %v91, %v90
  %v108 = vunpack.c.l.b16 %v92
  %v109 = vunpack.c.h.b16 %v92
  %v110 = vunpack.c.l.b16 %v93
  %v111 = vunpack.c.h.b16 %v93
  %v112 = vunpack.c.l.b16 %v94
  %v113 = vunpack.c.h.b16 %v94
  %v114 = vunpack.c.l.b16 %v95
  %v115 = vunpack.c.h.b16 %v95
  %v116 = vunpack.c.l.b16 %v96
  %v117 = vunpack.c.h.b16 %v96
  %v118 = vunpack.c.l.b16 %v97
  %v119 = vunpack.c.h.b16 %v97
  %v120 = vunpack.c.l.b16 %v98
  %v121 = vunpack.c.h.b16 %v98
  %v122 = vunpack.c.l.b16 %v99
  %v123 = vunpack.c.h.b16 %v99
  %v124 = vpack.c.b16 %v108, %v108
  %v125 = vpack.c.b16 %v109, %v109
  %v126 = vpack.c.b16 %v110, %v110
  %v127 = vpack.c.b16 %v111, %v111
  %v128 = vpack.c.b16 %v112, %v112
  %v129 = vpack.c.b16 %v113, %v113
  %v130 = vpack.c.b16 %v114, %v114
  %v131 = vpack.c.b16 %v115, %v115
  %v132 = vpack.c.b16 %v116, %v116
  %v133 = vpack.c.b16 %v117, %v117
  %v134 = vpack.c.b16 %v118, %v118
  %v135 = vpack.c.b16 %v119, %v119
  %v136 = vpack.c.b16 %v120, %v120
  %v137 = vpack.c.b16 %v121, %v121
  %v138 = vpack.c.b16 %v122, %v122
  %v139 = vpack.c.b16 %v123, %v123
  %156 = vst [vmem:[%s3] sm:$0xf] %v124
  %157 = vst [vmem:[%s3 + $0x4] sm:$0xf] %v125
  %158 = vst [vmem:[%s3 + $0x8] sm:$0xf] %v126
  %159 = vst [vmem:[%s3 + $0xc] sm:$0xf] %v127
  %160 = vst [vmem:[%s3 + $0x10] sm:$0xf] %v128
  %161 = vst [vmem:[%s3 + $0x14] sm:$0xf] %v129
  %162 = vst [vmem:[%s3 + $0x18] sm:$0xf] %v130
  %163 = vst [vmem:[%s3 + $0x1c] sm:$0xf] %v131
  %164 = vst [vmem:[%s3 + $0x20] sm:$0xf] %v132
  %165 = vst [vmem:[%s3 + $0x24] sm:$0xf] %v133
  %166 = vst [vmem:[%s3 + $0x28] sm:$0xf] %v134
  %167 = vst [vmem:[%s3 + $0x2c] sm:$0xf] %v135
  %168 = vst [vmem:[%s3 + $0x30] sm:$0xf] %v136
  %169 = vst [vmem:[%s3 + $0x34] sm:$0xf] %v137
  %170 = vst [vmem:[%s3 + $0x38] sm:$0xf] %v138
  %171 = vst [vmem:[%s3 + $0x3c] sm:$0xf] %v139
  // Predicated region
  $region14: #{wide_resnet_forward.21} parent=0 // pred_check
    _
  $region15: #{wide_resnet_forward.21} parent=0 // pred_check_branch
    %173 = sbr.rel (0) target = $region17
  $region16: #{wide_resnet_forward.21} parent=0 // pred_region
    _
  $region17: #{wide_resnet_forward.21} parent=0 // pred_fallthru
    _
  // Predicated region
  $region18: #{wide_resnet_forward.21} parent=0 // pred_check
    _
  $region19: #{wide_resnet_forward.21} parent=0 // pred_check_branch
    %175 = sbr.rel (0) target = $region21
  $region20: #{wide_resnet_forward.21} parent=0 // pred_region
    _
  $region21: #{wide_resnet_forward.21} parent=0 // pred_fallthru
    _

// kernel: wide_resnet_forward.22
$region0: #{wide_resnet_forward.22}
  #allocation0 [shape = 'u32[]', space=smem, size = 0x4, offset = 0x4, fixed_abs, tag = 'smem constant byte address 0x4 - core index']
  #allocation1 [shape = 'u32[144,128]{1,0:T(1,128)}', space=vmem, size = 0x12000, scoped, tag = 'internal scratch']
  %s0 = inlined_call_operand.vmem [shape: bf16[128,128], index: 0, kind: input, shape index: {}]
  %s1 = inlined_call_operand.vmem [shape: bf16[128,128], index: 1, kind: input, shape index: {}]
  %s2 = inlined_call_operand.vmem [shape: bf16[128,128], index: 2, kind: output, shape index: {0}]
  %s3 = inlined_call_operand.vmem [shape: f32[8,128], index: 3, kind: output, shape index: {1}]
  %s4 = inlined_call_operand.vmem [shape: f32[8,128], index: 4, kind: output, shape index: {2}]
  %5 = xla_tuple %s2, %s3, %s4
  %s6 = sld [smem:[#allocation0]]
  $region34: #{wide_resnet_forward.22} parent=0
    _
  %s8 = ssub.s32 1, %s6
  %s9 = scalar_select 0, %s8, %s6
  // Predicated region
  $region2: #{wide_resnet_forward.22} parent=0 // pred_check
    _
  $region3: #{wide_resnet_forward.22} parent=0 // pred_check_branch
    %11 = sbr.rel (0) target = $region5
  $region4: #{wide_resnet_forward.22} parent=0 // pred_region
    _
  $region5: #{wide_resnet_forward.22} parent=0 // pred_fallthru
    _
  // Predicated region
  $region6: #{wide_resnet_forward.22} parent=0 // pred_check
    _
  $region7: #{wide_resnet_forward.22} parent=0 // pred_check_branch
    %13 = sbr.rel (0) target = $region9
  $region8: #{wide_resnet_forward.22} parent=0 // pred_region
    _
  $region9: #{wide_resnet_forward.22} parent=0 // pred_fallthru
    _
  %v15 = vld [vmem:[%s0] sm:$0xf]
  %v16 = vld [vmem:[%s0 + $0x4] sm:$0xf]
  %v17 = vld [vmem:[%s0 + $0x8] sm:$0xf]
  %v18 = vld [vmem:[%s0 + $0xc] sm:$0xf]
  %v19 = vld [vmem:[%s0 + $0x10] sm:$0xf]
  %v20 = vld [vmem:[%s0 + $0x14] sm:$0xf]
  %v21 = vld [vmem:[%s0 + $0x18] sm:$0xf]
  %v22 = vld [vmem:[%s0 + $0x1c] sm:$0xf]
  %v23 = vld [vmem:[%s0 + $0x20] sm:$0xf]
  %v24 = vld [vmem:[%s0 + $0x24] sm:$0xf]
  %v25 = vld [vmem:[%s0 + $0x28] sm:$0xf]
  %v26 = vld [vmem:[%s0 + $0x2c] sm:$0xf]
  %v27 = vld [vmem:[%s0 + $0x30] sm:$0xf]
  %v28 = vld [vmem:[%s0 + $0x34] sm:$0xf]
  %v29 = vld [vmem:[%s0 + $0x38] sm:$0xf]
  %v30 = vld [vmem:[%s0 + $0x3c] sm:$0xf]
  %v31 = vld [vmem:[%s1] sm:$0xf]
  %v32 = vld [vmem:[%s1 + $0x4] sm:$0xf]
  %v33 = vld [vmem:[%s1 + $0x8] sm:$0xf]
  %v34 = vld [vmem:[%s1 + $0xc] sm:$0xf]
  %v35 = vld [vmem:[%s1 + $0x10] sm:$0xf]
  %v36 = vld [vmem:[%s1 + $0x14] sm:$0xf]
  %v37 = vld [vmem:[%s1 + $0x18] sm:$0xf]
  %v38 = vld [vmem:[%s1 + $0x1c] sm:$0xf]
  %v39 = vld [vmem:[%s1 + $0x20] sm:$0xf]
  %v40 = vld [vmem:[%s1 + $0x24] sm:$0xf]
  %v41 = vld [vmem:[%s1 + $0x28] sm:$0xf]
  %v42 = vld [vmem:[%s1 + $0x2c] sm:$0xf]
  %v43 = vld [vmem:[%s1 + $0x30] sm:$0xf]
  %v44 = vld [vmem:[%s1 + $0x34] sm:$0xf]
  %v45 = vld [vmem:[%s1 + $0x38] sm:$0xf]
  %v46 = vld [vmem:[%s1 + $0x3c] sm:$0xf]
  %v63 = vunpack.c.l.b16 %v15
  %v64 = vunpack.c.l.b16 %v16
  %v65 = vunpack.c.l.b16 %v17
  %v66 = vunpack.c.l.b16 %v18
  %v67 = vunpack.c.l.b16 %v19
  %v68 = vunpack.c.l.b16 %v20
  %v69 = vunpack.c.l.b16 %v21
  %v70 = vunpack.c.l.b16 %v22
  %v71 = vunpack.c.l.b16 %v23
  %v72 = vunpack.c.l.b16 %v24
  %v73 = vunpack.c.l.b16 %v25
  %v74 = vunpack.c.l.b16 %v26
  %v75 = vunpack.c.l.b16 %v27
  %v76 = vunpack.c.l.b16 %v28
  %v77 = vunpack.c.l.b16 %v29
  %v78 = vunpack.c.l.b16 %v30
  %v79 = vpack.c.b16 %v64, %v63
  %v80 = vpack.c.b16 %v66, %v65
  %v81 = vpack.c.b16 %v68, %v67
  %v82 = vpack.c.b16 %v70, %v69
  %v83 = vpack.c.b16 %v72, %v71
  %v84 = vpack.c.b16 %v74, %v73
  %v85 = vpack.c.b16 %v76, %v75
  %v86 = vpack.c.b16 %v78, %v77
  %v111 = vunpack.c.l.b16 %v31
  %v112 = vunpack.c.l.b16 %v32
  %v113 = vunpack.c.l.b16 %v33
  %v114 = vunpack.c.l.b16 %v34
  %v115 = vunpack.c.l.b16 %v35
  %v116 = vunpack.c.l.b16 %v36
  %v117 = vunpack.c.l.b16 %v37
  %v118 = vunpack.c.l.b16 %v38
  %v119 = vunpack.c.l.b16 %v39
  %v120 = vunpack.c.l.b16 %v40
  %v121 = vunpack.c.l.b16 %v41
  %v122 = vunpack.c.l.b16 %v42
  %v123 = vunpack.c.l.b16 %v43
  %v124 = vunpack.c.l.b16 %v44
  %v125 = vunpack.c.l.b16 %v45
  %v126 = vunpack.c.l.b16 %v46
  %v127 = vpack.c.b16 %v112, %v111
  %v128 = vpack.c.b16 %v114, %v113
  %v129 = vpack.c.b16 %v116, %v115
  %v130 = vpack.c.b16 %v118, %v117
  %v131 = vpack.c.b16 %v120, %v119
  %v132 = vpack.c.b16 %v122, %v121
  %v133 = vpack.c.b16 %v124, %v123
  %v134 = vpack.c.b16 %v126, %v125
  %143 = vmatprep.subr.bf16.mxu0 0
  %144 = vmatpush1.bf16.msra.mxu0 %v134
  %145 = vmatprep.subr.bf16.mxu0 0
  %146 = vmatpush1.bf16.msra.mxu0 %v133
  %147 = vmatprep.subr.bf16.mxu0 0
  %148 = vmatpush1.bf16.msra.mxu0 %v132
  %149 = vmatprep.subr.bf16.mxu0 0
  %150 = vmatpush1.bf16.msra.mxu0 %v131
  %151 = vmatprep.subr.bf16.mxu0 0
  %152 = vmatpush1.bf16.msra.mxu0 %v130
  %153 = vmatprep.subr.bf16.mxu0 0
  %154 = vmatpush1.bf16.msra.mxu0 %v129
  %155 = vmatprep.subr.bf16.mxu0 0
  %156 = vmatpush1.bf16.msra.mxu0 %v128
  %157 = vmatprep.subr.bf16.mxu0 0
  %158 = vmatpush1.bf16.msra.mxu0 %v127
  %159 = vmatprep.subr.bf16.mxu0 0
  %160 = vmatpush2.bf16.msra.mxu0 0
  %161 = vmatprep.subr.bf16.mxu0 0
  %162 = vmatpush2.bf16.msra.mxu0 0
  %163 = vmatprep.subr.bf16.mxu0 0
  %164 = vmatpush2.bf16.msra.mxu0 0
  %165 = vmatprep.subr.bf16.mxu0 0
  %166 = vmatpush2.bf16.msra.mxu0 0
  %167 = vmatprep.subr.bf16.mxu0 0
  %168 = vmatpush2.bf16.msra.mxu0 0
  %169 = vmatprep.subr.bf16.mxu0 0
  %170 = vmatpush2.bf16.msra.mxu0 0
  %171 = vmatprep.subr.bf16.mxu0 0
  %172 = vmatpush2.bf16.msra.mxu0 0
  %173 = vmatprep.subr.bf16.mxu0 0
  %174 = vmatpush2.bf16.msra.mxu0 0
  %175 = vmatprep.mubr.bf16.mxu0 0
  %176 = vmatmul.mubr.bf16.gmra.mxu0 %v79
  %v177 = vpop.f32.mrf.mxu0
  %v178 = vadd.f32 0.0, %v177
  %v179 = vpop.f32.mrf.mxu0
  %v180 = vpop.f32.mrf.mxu0
  %v181 = vadd.f32 0.0, %v180
  %v182 = vpop.f32.mrf.mxu0
  %183 = vmatprep.mubr.bf16.mxu0 0
  %184 = vmatmul.mubr.bf16.gmra.mxu0 %v80
  %v185 = vpop.f32.mrf.mxu0
  %v186 = vadd.f32 0.0, %v185
  %v187 = vpop.f32.mrf.mxu0
  %v188 = vpop.f32.mrf.mxu0
  %v189 = vadd.f32 0.0, %v188
  %v190 = vpop.f32.mrf.mxu0
  %191 = vmatprep.mubr.bf16.mxu0 0
  %192 = vmatmul.mubr.bf16.gmra.mxu0 %v81
  %v193 = vpop.f32.mrf.mxu0
  %v194 = vadd.f32 0.0, %v193
  %v195 = vpop.f32.mrf.mxu0
  %v196 = vpop.f32.mrf.mxu0
  %v197 = vadd.f32 0.0, %v196
  %v198 = vpop.f32.mrf.mxu0
  %199 = vmatprep.mubr.bf16.mxu0 0
  %200 = vmatmul.mubr.bf16.gmra.mxu0 %v82
  %v201 = vpop.f32.mrf.mxu0
  %v202 = vadd.f32 0.0, %v201
  %v203 = vpop.f32.mrf.mxu0
  %v204 = vpop.f32.mrf.mxu0
  %v205 = vadd.f32 0.0, %v204
  %v206 = vpop.f32.mrf.mxu0
  %207 = vmatprep.mubr.bf16.mxu0 0
  %208 = vmatmul.mubr.bf16.gmra.mxu0 %v83
  %v209 = vpop.f32.mrf.mxu0
  %v210 = vadd.f32 0.0, %v209
  %v211 = vpop.f32.mrf.mxu0
  %v212 = vpop.f32.mrf.mxu0
  %v213 = vadd.f32 0.0, %v212
  %v214 = vpop.f32.mrf.mxu0
  %215 = vmatprep.mubr.bf16.mxu0 0
  %216 = vmatmul.mubr.bf16.gmra.mxu0 %v84
  %v217 = vpop.f32.mrf.mxu0
  %v218 = vadd.f32 0.0, %v217
  %v219 = vpop.f32.mrf.mxu0
  %v220 = vpop.f32.mrf.mxu0
  %v221 = vadd.f32 0.0, %v220
  %v222 = vpop.f32.mrf.mxu0
  %223 = vmatprep.mubr.bf16.mxu0 0
  %224 = vmatmul.mubr.bf16.gmra.mxu0 %v85
  %v225 = vpop.f32.mrf.mxu0
  %v226 = vadd.f32 0.0, %v225
  %v227 = vpop.f32.mrf.mxu0
  %v228 = vpop.f32.mrf.mxu0
  %v229 = vadd.f32 0.0, %v228
  %v230 = vpop.f32.mrf.mxu0
  %231 = vmatprep.mubr.bf16.mxu0 0
  %232 = vmatmul.mubr.bf16.gmra.mxu0 %v86
  %v233 = vpop.f32.mrf.mxu0
  %v234 = vadd.f32 0.0, %v233
  %v235 = vpop.f32.mrf.mxu0
  %v236 = vpop.f32.mrf.mxu0
  %v237 = vadd.f32 0.0, %v236
  %v238 = vpop.f32.mrf.mxu0
  %239 = vdwg.mxu0
  %v240 = vpack.c.bf16 %v181, %v178
  %v241 = vpack.c.bf16 %v189, %v186
  %v242 = vpack.c.bf16 %v197, %v194
  %v243 = vpack.c.bf16 %v205, %v202
  %v244 = vpack.c.bf16 %v213, %v210
  %v245 = vpack.c.bf16 %v221, %v218
  %v246 = vpack.c.bf16 %v229, %v226
  %v247 = vpack.c.bf16 %v237, %v234
  %v256 = vunpack.c.l.b16 %v240
  %v257 = vunpack.c.h.b16 %v240
  %v258 = vunpack.c.l.b16 %v241
  %v259 = vunpack.c.h.b16 %v241
  %v260 = vunpack.c.l.b16 %v242
  %v261 = vunpack.c.h.b16 %v242
  %v262 = vunpack.c.l.b16 %v243
  %v263 = vunpack.c.h.b16 %v243
  %v264 = vunpack.c.l.b16 %v244
  %v265 = vunpack.c.h.b16 %v244
  %v266 = vunpack.c.l.b16 %v245
  %v267 = vunpack.c.h.b16 %v245
  %v268 = vunpack.c.l.b16 %v246
  %v269 = vunpack.c.h.b16 %v246
  %v270 = vunpack.c.l.b16 %v247
  %v271 = vunpack.c.h.b16 %v247
  %v272 = vpack.c.b16 %v256, %v256
  %v273 = vpack.c.b16 %v257, %v257
  %v274 = vpack.c.b16 %v258, %v258
  %v275 = vpack.c.b16 %v259, %v259
  %v276 = vpack.c.b16 %v260, %v260
  %v277 = vpack.c.b16 %v261, %v261
  %v278 = vpack.c.b16 %v262, %v262
  %v279 = vpack.c.b16 %v263, %v263
  %v280 = vpack.c.b16 %v264, %v264
  %v281 = vpack.c.b16 %v265, %v265
  %v282 = vpack.c.b16 %v266, %v266
  %v283 = vpack.c.b16 %v267, %v267
  %v284 = vpack.c.b16 %v268, %v268
  %v285 = vpack.c.b16 %v269, %v269
  %v286 = vpack.c.b16 %v270, %v270
  %v287 = vpack.c.b16 %v271, %v271
  %304 = vst [vmem:[%s2] sm:$0xf] %v272
  %305 = vst [vmem:[%s2 + $0x4] sm:$0xf] %v273
  %306 = vst [vmem:[%s2 + $0x8] sm:$0xf] %v274
  %307 = vst [vmem:[%s2 + $0xc] sm:$0xf] %v275
  %308 = vst [vmem:[%s2 + $0x10] sm:$0xf] %v276
  %309 = vst [vmem:[%s2 + $0x14] sm:$0xf] %v277
  %310 = vst [vmem:[%s2 + $0x18] sm:$0xf] %v278
  %311 = vst [vmem:[%s2 + $0x1c] sm:$0xf] %v279
  %312 = vst [vmem:[%s2 + $0x20] sm:$0xf] %v280
  %313 = vst [vmem:[%s2 + $0x24] sm:$0xf] %v281
  %314 = vst [vmem:[%s2 + $0x28] sm:$0xf] %v282
  %315 = vst [vmem:[%s2 + $0x2c] sm:$0xf] %v283
  %316 = vst [vmem:[%s2 + $0x30] sm:$0xf] %v284
  %317 = vst [vmem:[%s2 + $0x34] sm:$0xf] %v285
  %318 = vst [vmem:[%s2 + $0x38] sm:$0xf] %v286
  %319 = vst [vmem:[%s2 + $0x3c] sm:$0xf] %v287
  %v320 = vadd.f32 %v178, %v181
  %v321 = vadd.f32 %v320, %v186
  %v322 = vadd.f32 %v321, %v189
  %v323 = vadd.f32 %v322, %v194
  %v324 = vadd.f32 %v323, %v197
  %v325 = vadd.f32 %v324, %v202
  %v326 = vadd.f32 %v325, %v205
  %v327 = vadd.f32 %v326, %v210
  %v328 = vadd.f32 %v327, %v213
  %v329 = vadd.f32 %v328, %v218
  %v330 = vadd.f32 %v329, %v221
  %v331 = vadd.f32 %v330, %v226
  %v332 = vadd.f32 %v331, %v229
  %v333 = vadd.f32 %v332, %v234
  %v334 = vadd.f32 %v333, %v237
  %v335 = vrot.slane %v334, 4
  %v336 = vadd.f32 %v334, %v335
  %v337 = vrot.slane %v336, 2
  %v338 = vadd.f32 %v336, %v337
  %v339 = vrot.slane %v338, 1
  %v340 = vadd.f32 %v338, %v339
  %341 = vst [vmem:[%s3] sm:$0xff] %v340
  %v342 = vmul.f32 %v178, %v178
  %v343 = vmul.f32 %v181, %v181
  %v344 = vmul.f32 %v186, %v186
  %v345 = vmul.f32 %v189, %v189
  %v346 = vmul.f32 %v194, %v194
  %v347 = vmul.f32 %v197, %v197
  %v348 = vmul.f32 %v202, %v202
  %v349 = vmul.f32 %v205, %v205
  %v350 = vmul.f32 %v210, %v210
  %v351 = vmul.f32 %v213, %v213
  %v352 = vmul.f32 %v218, %v218
  %v353 = vmul.f32 %v221, %v221
  %v354 = vmul.f32 %v226, %v226
  %v355 = vmul.f32 %v229, %v229
  %v356 = vmul.f32 %v234, %v234
  %v357 = vmul.f32 %v237, %v237
  %v358 = vadd.f32 %v342, %v343
  %v359 = vadd.f32 %v358, %v344
  %v360 = vadd.f32 %v359, %v345
  %v361 = vadd.f32 %v360, %v346
  %v362 = vadd.f32 %v361, %v347
  %v363 = vadd.f32 %v362, %v348
  %v364 = vadd.f32 %v363, %v349
  %v365 = vadd.f32 %v364, %v350
  %v366 = vadd.f32 %v365, %v351
  %v367 = vadd.f32 %v366, %v352
  %v368 = vadd.f32 %v367, %v353
  %v369 = vadd.f32 %v368, %v354
  %v370 = vadd.f32 %v369, %v355
  %v371 = vadd.f32 %v370, %v356
  %v372 = vadd.f32 %v371, %v357
  %v373 = vrot.slane %v372, 4
  %v374 = vadd.f32 %v372, %v373
  %v375 = vrot.slane %v374, 2
  %v376 = vadd.f32 %v374, %v375
  %v377 = vrot.slane %v376, 1
  %v378 = vadd.f32 %v376, %v377
  %379 = vst [vmem:[%s4] sm:$0xff] %v378
  // Predicated region
  $region10: #{wide_resnet_forward.22} parent=0 // pred_check
    _
  $region11: #{wide_resnet_forward.22} parent=0 // pred_check_branch
    %381 = sbr.rel (0) target = $region13
  $region12: #{wide_resnet_forward.22} parent=0 // pred_region
    _
  $region13: #{wide_resnet_forward.22} parent=0 // pred_fallthru
    _
  // Predicated region
  $region14: #{wide_resnet_forward.22} parent=0 // pred_check
    _
  $region15: #{wide_resnet_forward.22} parent=0 // pred_check_branch
    %383 = sbr.rel (0) target = $region17
  $region16: #{wide_resnet_forward.22} parent=0 // pred_region
    _
  $region17: #{wide_resnet_forward.22} parent=0 // pred_fallthru
    _
  // Predicated region
  $region18: #{wide_resnet_forward.22} parent=0 // pred_check
    _
  $region19: #{wide_resnet_forward.22} parent=0 // pred_check_branch
    %385 = sbr.rel (0) target = $region21
  $region20: #{wide_resnet_forward.22} parent=0 // pred_region
    _
  $region21: #{wide_resnet_forward.22} parent=0 // pred_fallthru
    _
  // Predicated region
  $region22: #{wide_resnet_forward.22} parent=0 // pred_check
    _
  $region23: #{wide_resnet_forward.22} parent=0 // pred_check_branch
    %387 = sbr.rel (0) target = $region25
  $region24: #{wide_resnet_forward.22} parent=0 // pred_region
    _
  $region25: #{wide_resnet_forward.22} parent=0 // pred_fallthru
    _
  // Predicated region
  $region26: #{wide_resnet_forward.22} parent=0 // pred_check
    _
  $region27: #{wide_resnet_forward.22} parent=0 // pred_check_branch
    %389 = sbr.rel (0) target = $region29
  $region28: #{wide_resnet_forward.22} parent=0 // pred_region
    _
  $region29: #{wide_resnet_forward.22} parent=0 // pred_fallthru
    _
  // Predicated region
  $region30: #{wide_resnet_forward.22} parent=0 // pred_check
    _
  $region31: #{wide_resnet_forward.22} parent=0 // pred_check_branch
    %391 = sbr.rel (0) target = $region33
  $region32: #{wide_resnet_forward.22} parent=0 // pred_region
    _
  $region33: #{wide_resnet_forward.22} parent=0 // pred_fallthru
    _

// kernel: wide_resnet_forward.25
$region0: #{wide_resnet_forward.25}
  #allocation0 [shape = 'u32[]', space=smem, size = 0x4, offset = 0x4, fixed_abs, tag = 'smem constant byte address 0x4 - core index']
  #allocation1 [shape = 'u32[144,128]{1,0:T(1,128)}', space=vmem, size = 0x12000, scoped, tag = 'internal scratch']
  %s0 = inlined_call_operand.vmem [shape: bf16[128,128], index: 0, kind: input, shape index: {}, may-alias: {0,3}]
  %s1 = inlined_call_operand.vmem [shape: f32[1,128], index: 1, kind: input, shape index: {}]
  %s2 = inlined_call_operand.vmem [shape: f32[1,128], index: 2, kind: input, shape index: {}]
  %s3 = inlined_call_operand.vmem [shape: bf16[128,128], index: 3, kind: output, shape index: {}, may-alias: {0,3}]
  %s4 = sld [smem:[#allocation0]]
  $region22: #{wide_resnet_forward.25} parent=0
    _
  %s6 = ssub.s32 1, %s4
  %s7 = scalar_select 0, %s6, %s4
  // Predicated region
  $region2: #{wide_resnet_forward.25} parent=0 // pred_check
    _
  $region3: #{wide_resnet_forward.25} parent=0 // pred_check_branch
    %9 = sbr.rel (0) target = $region5
  $region4: #{wide_resnet_forward.25} parent=0 // pred_region
    _
  $region5: #{wide_resnet_forward.25} parent=0 // pred_fallthru
    _
  // Predicated region
  $region6: #{wide_resnet_forward.25} parent=0 // pred_check
    _
  $region7: #{wide_resnet_forward.25} parent=0 // pred_check_branch
    %11 = sbr.rel (0) target = $region9
  $region8: #{wide_resnet_forward.25} parent=0 // pred_region
    _
  $region9: #{wide_resnet_forward.25} parent=0 // pred_fallthru
    _
  // Predicated region
  $region10: #{wide_resnet_forward.25} parent=0 // pred_check
    _
  $region11: #{wide_resnet_forward.25} parent=0 // pred_check_branch
    %13 = sbr.rel (0) target = $region13
  $region12: #{wide_resnet_forward.25} parent=0 // pred_region
    _
  $region13: #{wide_resnet_forward.25} parent=0 // pred_fallthru
    _
  %v14 = vld [vmem:[%s0] sm:$0xf]
  %v15 = vld [vmem:[%s0 + $0x4] sm:$0xf]
  %v16 = vld [vmem:[%s0 + $0x8] sm:$0xf]
  %v17 = vld [vmem:[%s0 + $0xc] sm:$0xf]
  %v18 = vld [vmem:[%s0 + $0x10] sm:$0xf]
  %v19 = vld [vmem:[%s0 + $0x14] sm:$0xf]
  %v20 = vld [vmem:[%s0 + $0x18] sm:$0xf]
  %v21 = vld [vmem:[%s0 + $0x1c] sm:$0xf]
  %v22 = vld [vmem:[%s0 + $0x20] sm:$0xf]
  %v23 = vld [vmem:[%s0 + $0x24] sm:$0xf]
  %v24 = vld [vmem:[%s0 + $0x28] sm:$0xf]
  %v25 = vld [vmem:[%s0 + $0x2c] sm:$0xf]
  %v26 = vld [vmem:[%s0 + $0x30] sm:$0xf]
  %v27 = vld [vmem:[%s0 + $0x34] sm:$0xf]
  %v28 = vld [vmem:[%s0 + $0x38] sm:$0xf]
  %v29 = vld [vmem:[%s0 + $0x3c] sm:$0xf]
  %v30 = vunpack.c.l.bf16 %v14
  %v31 = vunpack.c.l.bf16 %v15
  %v32 = vunpack.c.l.bf16 %v16
  %v33 = vunpack.c.l.bf16 %v17
  %v34 = vunpack.c.l.bf16 %v18
  %v35 = vunpack.c.l.bf16 %v19
  %v36 = vunpack.c.l.bf16 %v20
  %v37 = vunpack.c.l.bf16 %v21
  %v38 = vunpack.c.l.bf16 %v22
  %v39 = vunpack.c.l.bf16 %v23
  %v40 = vunpack.c.l.bf16 %v24
  %v41 = vunpack.c.l.bf16 %v25
  %v42 = vunpack.c.l.bf16 %v26
  %v43 = vunpack.c.l.bf16 %v27
  %v44 = vunpack.c.l.bf16 %v28
  %v45 = vunpack.c.l.bf16 %v29
  %v46 = vld [vmem:[%s1] sm:$0x1]
  %v48 = vlaneseq
  %v49 = vshrl.u32 %v48, 7
  %v50 = vsub.s32 0, %v49
  %v51 = vrot.slane %v46, %v50
  %v53 = vmul.f32 %v30, %v51
  %v54 = vmul.f32 %v31, %v51
  %v55 = vmul.f32 %v32, %v51
  %v56 = vmul.f32 %v33, %v51
  %v57 = vmul.f32 %v34, %v51
  %v58 = vmul.f32 %v35, %v51
  %v59 = vmul.f32 %v36, %v51
  %v60 = vmul.f32 %v37, %v51
  %v61 = vmul.f32 %v38, %v51
  %v62 = vmul.f32 %v39, %v51
  %v63 = vmul.f32 %v40, %v51
  %v64 = vmul.f32 %v41, %v51
  %v65 = vmul.f32 %v42, %v51
  %v66 = vmul.f32 %v43, %v51
  %v67 = vmul.f32 %v44, %v51
  %v68 = vmul.f32 %v45, %v51
  %v69 = vld [vmem:[%s2] sm:$0x1]
  %v71 = vlaneseq
  %v72 = vshrl.u32 %v71, 7
  %v73 = vsub.s32 0, %v72
  %v74 = vrot.slane %v69, %v73
  %v76 = vadd.f32 %v53, %v74
  %v77 = vadd.f32 %v54, %v74
  %v78 = vadd.f32 %v55, %v74
  %v79 = vadd.f32 %v56, %v74
  %v80 = vadd.f32 %v57, %v74
  %v81 = vadd.f32 %v58, %v74
  %v82 = vadd.f32 %v59, %v74
  %v83 = vadd.f32 %v60, %v74
  %v84 = vadd.f32 %v61, %v74
  %v85 = vadd.f32 %v62, %v74
  %v86 = vadd.f32 %v63, %v74
  %v87 = vadd.f32 %v64, %v74
  %v88 = vadd.f32 %v65, %v74
  %v89 = vadd.f32 %v66, %v74
  %v90 = vadd.f32 %v67, %v74
  %v91 = vadd.f32 %v68, %v74
  %v92 = vmax.f32 %v76, 0.0
  %v93 = vmax.f32 %v77, 0.0
  %v94 = vmax.f32 %v78, 0.0
  %v95 = vmax.f32 %v79, 0.0
  %v96 = vmax.f32 %v80, 0.0
  %v97 = vmax.f32 %v81, 0.0
  %v98 = vmax.f32 %v82, 0.0
  %v99 = vmax.f32 %v83, 0.0
  %v100 = vmax.f32 %v84, 0.0
  %v101 = vmax.f32 %v85, 0.0
  %v102 = vmax.f32 %v86, 0.0
  %v103 = vmax.f32 %v87, 0.0
  %v104 = vmax.f32 %v88, 0.0
  %v105 = vmax.f32 %v89, 0.0
  %v106 = vmax.f32 %v90, 0.0
  %v107 = vmax.f32 %v91, 0.0
  %v108 = vpack.c.bf16 %v93, %v92
  %v109 = vpack.c.bf16 %v95, %v94
  %v110 = vpack.c.bf16 %v97, %v96
  %v111 = vpack.c.bf16 %v99, %v98
  %v112 = vpack.c.bf16 %v101, %v100
  %v113 = vpack.c.bf16 %v103, %v102
  %v114 = vpack.c.bf16 %v105, %v104
  %v115 = vpack.c.bf16 %v107, %v106
  %v124 = vunpack.c.l.b16 %v108
  %v125 = vunpack.c.h.b16 %v108
  %v126 = vunpack.c.l.b16 %v109
  %v127 = vunpack.c.h.b16 %v109
  %v128 = vunpack.c.l.b16 %v110
  %v129 = vunpack.c.h.b16 %v110
  %v130 = vunpack.c.l.b16 %v111
  %v131 = vunpack.c.h.b16 %v111
  %v132 = vunpack.c.l.b16 %v112
  %v133 = vunpack.c.h.b16 %v112
  %v134 = vunpack.c.l.b16 %v113
  %v135 = vunpack.c.h.b16 %v113
  %v136 = vunpack.c.l.b16 %v114
  %v137 = vunpack.c.h.b16 %v114
  %v138 = vunpack.c.l.b16 %v115
  %v139 = vunpack.c.h.b16 %v115
  %v140 = vpack.c.b16 %v124, %v124
  %v141 = vpack.c.b16 %v125, %v125
  %v142 = vpack.c.b16 %v126, %v126
  %v143 = vpack.c.b16 %v127, %v127
  %v144 = vpack.c.b16 %v128, %v128
  %v145 = vpack.c.b16 %v129, %v129
  %v146 = vpack.c.b16 %v130, %v130
  %v147 = vpack.c.b16 %v131, %v131
  %v148 = vpack.c.b16 %v132, %v132
  %v149 = vpack.c.b16 %v133, %v133
  %v150 = vpack.c.b16 %v134, %v134
  %v151 = vpack.c.b16 %v135, %v135
  %v152 = vpack.c.b16 %v136, %v136
  %v153 = vpack.c.b16 %v137, %v137
  %v154 = vpack.c.b16 %v138, %v138
  %v155 = vpack.c.b16 %v139, %v139
  %172 = vst [vmem:[%s3] sm:$0xf] %v140
  %173 = vst [vmem:[%s3 + $0x4] sm:$0xf] %v141
  %174 = vst [vmem:[%s3 + $0x8] sm:$0xf] %v142
  %175 = vst [vmem:[%s3 + $0xc] sm:$0xf] %v143
  %176 = vst [vmem:[%s3 + $0x10] sm:$0xf] %v144
  %177 = vst [vmem:[%s3 + $0x14] sm:$0xf] %v145
  %178 = vst [vmem:[%s3 + $0x18] sm:$0xf] %v146
  %179 = vst [vmem:[%s3 + $0x1c] sm:$0xf] %v147
  %180 = vst [vmem:[%s3 + $0x20] sm:$0xf] %v148
  %181 = vst [vmem:[%s3 + $0x24] sm:$0xf] %v149
  %182 = vst [vmem:[%s3 + $0x28] sm:$0xf] %v150
  %183 = vst [vmem:[%s3 + $0x2c] sm:$0xf] %v151
  %184 = vst [vmem:[%s3 + $0x30] sm:$0xf] %v152
  %185 = vst [vmem:[%s3 + $0x34] sm:$0xf] %v153
  %186 = vst [vmem:[%s3 + $0x38] sm:$0xf] %v154
  %187 = vst [vmem:[%s3 + $0x3c] sm:$0xf] %v155
  // Predicated region
  $region14: #{wide_resnet_forward.25} parent=0 // pred_check
    _
  $region15: #{wide_resnet_forward.25} parent=0 // pred_check_branch
    %189 = sbr.rel (0) target = $region17
  $region16: #{wide_resnet_forward.25} parent=0 // pred_region
    _
  $region17: #{wide_resnet_forward.25} parent=0 // pred_fallthru
    _
  // Predicated region
  $region18: #{wide_resnet_forward.25} parent=0 // pred_check
    _
  $region19: #{wide_resnet_forward.25} parent=0 // pred_check_branch
    %191 = sbr.rel (0) target = $region21
  $region20: #{wide_resnet_forward.25} parent=0 // pred_region
    _
  $region21: #{wide_resnet_forward.25} parent=0 // pred_fallthru
    _

// kernel: wide_resnet_forward.23
$region0: #{wide_resnet_forward.23}
  #allocation0 [shape = 'u32[]', space=smem, size = 0x4, offset = 0x4, fixed_abs, tag = 'smem constant byte address 0x4 - core index']
  #allocation1 [shape = 'u32[144,128]{1,0:T(1,128)}', space=vmem, size = 0x12000, scoped, tag = 'internal scratch']
  %s0 = inlined_call_operand.vmem [shape: bf16[128,128], index: 0, kind: input, shape index: {}, may-alias: {0,4}]
  %s1 = inlined_call_operand.vmem [shape: f32[1,128], index: 1, kind: input, shape index: {}]
  %s2 = inlined_call_operand.vmem [shape: f32[1,128], index: 2, kind: input, shape index: {}]
  %s3 = inlined_call_operand.vmem [shape: bf16[128,128], index: 3, kind: input, shape index: {}]
  %s4 = inlined_call_operand.vmem [shape: bf16[128,128], index: 4, kind: output, shape index: {}, may-alias: {0,4}]
  %s5 = sld [smem:[#allocation0]]
  $region26: #{wide_resnet_forward.23} parent=0
    _
  %s7 = ssub.s32 1, %s5
  %s8 = scalar_select 0, %s7, %s5
  // Predicated region
  $region2: #{wide_resnet_forward.23} parent=0 // pred_check
    _
  $region3: #{wide_resnet_forward.23} parent=0 // pred_check_branch
    %10 = sbr.rel (0) target = $region5
  $region4: #{wide_resnet_forward.23} parent=0 // pred_region
    _
  $region5: #{wide_resnet_forward.23} parent=0 // pred_fallthru
    _
  // Predicated region
  $region6: #{wide_resnet_forward.23} parent=0 // pred_check
    _
  $region7: #{wide_resnet_forward.23} parent=0 // pred_check_branch
    %12 = sbr.rel (0) target = $region9
  $region8: #{wide_resnet_forward.23} parent=0 // pred_region
    _
  $region9: #{wide_resnet_forward.23} parent=0 // pred_fallthru
    _
  // Predicated region
  $region10: #{wide_resnet_forward.23} parent=0 // pred_check
    _
  $region11: #{wide_resnet_forward.23} parent=0 // pred_check_branch
    %14 = sbr.rel (0) target = $region13
  $region12: #{wide_resnet_forward.23} parent=0 // pred_region
    _
  $region13: #{wide_resnet_forward.23} parent=0 // pred_fallthru
    _
  // Predicated region
  $region14: #{wide_resnet_forward.23} parent=0 // pred_check
    _
  $region15: #{wide_resnet_forward.23} parent=0 // pred_check_branch
    %16 = sbr.rel (0) target = $region17
  $region16: #{wide_resnet_forward.23} parent=0 // pred_region
    _
  $region17: #{wide_resnet_forward.23} parent=0 // pred_fallthru
    _
  %v17 = vld [vmem:[%s0] sm:$0xf]
  %v18 = vld [vmem:[%s0 + $0x4] sm:$0xf]
  %v19 = vld [vmem:[%s0 + $0x8] sm:$0xf]
  %v20 = vld [vmem:[%s0 + $0xc] sm:$0xf]
  %v21 = vld [vmem:[%s0 + $0x10] sm:$0xf]
  %v22 = vld [vmem:[%s0 + $0x14] sm:$0xf]
  %v23 = vld [vmem:[%s0 + $0x18] sm:$0xf]
  %v24 = vld [vmem:[%s0 + $0x1c] sm:$0xf]
  %v25 = vld [vmem:[%s0 + $0x20] sm:$0xf]
  %v26 = vld [vmem:[%s0 + $0x24] sm:$0xf]
  %v27 = vld [vmem:[%s0 + $0x28] sm:$0xf]
  %v28 = vld [vmem:[%s0 + $0x2c] sm:$0xf]
  %v29 = vld [vmem:[%s0 + $0x30] sm:$0xf]
  %v30 = vld [vmem:[%s0 + $0x34] sm:$0xf]
  %v31 = vld [vmem:[%s0 + $0x38] sm:$0xf]
  %v32 = vld [vmem:[%s0 + $0x3c] sm:$0xf]
  %v33 = vunpack.c.l.bf16 %v17
  %v34 = vunpack.c.l.bf16 %v18
  %v35 = vunpack.c.l.bf16 %v19
  %v36 = vunpack.c.l.bf16 %v20
  %v37 = vunpack.c.l.bf16 %v21
  %v38 = vunpack.c.l.bf16 %v22
  %v39 = vunpack.c.l.bf16 %v23
  %v40 = vunpack.c.l.bf16 %v24
  %v41 = vunpack.c.l.bf16 %v25
  %v42 = vunpack.c.l.bf16 %v26
  %v43 = vunpack.c.l.bf16 %v27
  %v44 = vunpack.c.l.bf16 %v28
  %v45 = vunpack.c.l.bf16 %v29
  %v46 = vunpack.c.l.bf16 %v30
  %v47 = vunpack.c.l.bf16 %v31
  %v48 = vunpack.c.l.bf16 %v32
  %v49 = vld [vmem:[%s1] sm:$0x1]
  %v51 = vlaneseq
  %v52 = vshrl.u32 %v51, 7
  %v53 = vsub.s32 0, %v52
  %v54 = vrot.slane %v49, %v53
  %v56 = vmul.f32 %v33, %v54
  %v57 = vmul.f32 %v34, %v54
  %v58 = vmul.f32 %v35, %v54
  %v59 = vmul.f32 %v36, %v54
  %v60 = vmul.f32 %v37, %v54
  %v61 = vmul.f32 %v38, %v54
  %v62 = vmul.f32 %v39, %v54
  %v63 = vmul.f32 %v40, %v54
  %v64 = vmul.f32 %v41, %v54
  %v65 = vmul.f32 %v42, %v54
  %v66 = vmul.f32 %v43, %v54
  %v67 = vmul.f32 %v44, %v54
  %v68 = vmul.f32 %v45, %v54
  %v69 = vmul.f32 %v46, %v54
  %v70 = vmul.f32 %v47, %v54
  %v71 = vmul.f32 %v48, %v54
  %v72 = vld [vmem:[%s2] sm:$0x1]
  %v74 = vlaneseq
  %v75 = vshrl.u32 %v74, 7
  %v76 = vsub.s32 0, %v75
  %v77 = vrot.slane %v72, %v76
  %v79 = vadd.f32 %v56, %v77
  %v80 = vadd.f32 %v57, %v77
  %v81 = vadd.f32 %v58, %v77
  %v82 = vadd.f32 %v59, %v77
  %v83 = vadd.f32 %v60, %v77
  %v84 = vadd.f32 %v61, %v77
  %v85 = vadd.f32 %v62, %v77
  %v86 = vadd.f32 %v63, %v77
  %v87 = vadd.f32 %v64, %v77
  %v88 = vadd.f32 %v65, %v77
  %v89 = vadd.f32 %v66, %v77
  %v90 = vadd.f32 %v67, %v77
  %v91 = vadd.f32 %v68, %v77
  %v92 = vadd.f32 %v69, %v77
  %v93 = vadd.f32 %v70, %v77
  %v94 = vadd.f32 %v71, %v77
  %v95 = vmax.f32 %v79, 0.0
  %v96 = vmax.f32 %v80, 0.0
  %v97 = vmax.f32 %v81, 0.0
  %v98 = vmax.f32 %v82, 0.0
  %v99 = vmax.f32 %v83, 0.0
  %v100 = vmax.f32 %v84, 0.0
  %v101 = vmax.f32 %v85, 0.0
  %v102 = vmax.f32 %v86, 0.0
  %v103 = vmax.f32 %v87, 0.0
  %v104 = vmax.f32 %v88, 0.0
  %v105 = vmax.f32 %v89, 0.0
  %v106 = vmax.f32 %v90, 0.0
  %v107 = vmax.f32 %v91, 0.0
  %v108 = vmax.f32 %v92, 0.0
  %v109 = vmax.f32 %v93, 0.0
  %v110 = vmax.f32 %v94, 0.0
  %v111 = vld [vmem:[%s3] sm:$0xf]
  %v112 = vld [vmem:[%s3 + $0x4] sm:$0xf]
  %v113 = vld [vmem:[%s3 + $0x8] sm:$0xf]
  %v114 = vld [vmem:[%s3 + $0xc] sm:$0xf]
  %v115 = vld [vmem:[%s3 + $0x10] sm:$0xf]
  %v116 = vld [vmem:[%s3 + $0x14] sm:$0xf]
  %v117 = vld [vmem:[%s3 + $0x18] sm:$0xf]
  %v118 = vld [vmem:[%s3 + $0x1c] sm:$0xf]
  %v119 = vld [vmem:[%s3 + $0x20] sm:$0xf]
  %v120 = vld [vmem:[%s3 + $0x24] sm:$0xf]
  %v121 = vld [vmem:[%s3 + $0x28] sm:$0xf]
  %v122 = vld [vmem:[%s3 + $0x2c] sm:$0xf]
  %v123 = vld [vmem:[%s3 + $0x30] sm:$0xf]
  %v124 = vld [vmem:[%s3 + $0x34] sm:$0xf]
  %v125 = vld [vmem:[%s3 + $0x38] sm:$0xf]
  %v126 = vld [vmem:[%s3 + $0x3c] sm:$0xf]
  %v127 = vunpack.c.l.bf16 %v111
  %v128 = vunpack.c.l.bf16 %v112
  %v129 = vunpack.c.l.bf16 %v113
  %v130 = vunpack.c.l.bf16 %v114
  %v131 = vunpack.c.l.bf16 %v115
  %v132 = vunpack.c.l.bf16 %v116
  %v133 = vunpack.c.l.bf16 %v117
  %v134 = vunpack.c.l.bf16 %v118
  %v135 = vunpack.c.l.bf16 %v119
  %v136 = vunpack.c.l.bf16 %v120
  %v137 = vunpack.c.l.bf16 %v121
  %v138 = vunpack.c.l.bf16 %v122
  %v139 = vunpack.c.l.bf16 %v123
  %v140 = vunpack.c.l.bf16 %v124
  %v141 = vunpack.c.l.bf16 %v125
  %v142 = vunpack.c.l.bf16 %v126
  %v143 = vadd.f32 %v95, %v127
  %v144 = vadd.f32 %v96, %v128
  %v145 = vadd.f32 %v97, %v129
  %v146 = vadd.f32 %v98, %v130
  %v147 = vadd.f32 %v99, %v131
  %v148 = vadd.f32 %v100, %v132
  %v149 = vadd.f32 %v101, %v133
  %v150 = vadd.f32 %v102, %v134
  %v151 = vadd.f32 %v103, %v135
  %v152 = vadd.f32 %v104, %v136
  %v153 = vadd.f32 %v105, %v137
  %v154 = vadd.f32 %v106, %v138
  %v155 = vadd.f32 %v107, %v139
  %v156 = vadd.f32 %v108, %v140
  %v157 = vadd.f32 %v109, %v141
  %v158 = vadd.f32 %v110, %v142
  %v159 = vpack.c.bf16 %v144, %v143
  %v160 = vpack.c.bf16 %v146, %v145
  %v161 = vpack.c.bf16 %v148, %v147
  %v162 = vpack.c.bf16 %v150, %v149
  %v163 = vpack.c.bf16 %v152, %v151
  %v164 = vpack.c.bf16 %v154, %v153
  %v165 = vpack.c.bf16 %v156, %v155
  %v166 = vpack.c.bf16 %v158, %v157
  %v175 = vunpack.c.l.b16 %v159
  %v176 = vunpack.c.h.b16 %v159
  %v177 = vunpack.c.l.b16 %v160
  %v178 = vunpack.c.h.b16 %v160
  %v179 = vunpack.c.l.b16 %v161
  %v180 = vunpack.c.h.b16 %v161
  %v181 = vunpack.c.l.b16 %v162
  %v182 = vunpack.c.h.b16 %v162
  %v183 = vunpack.c.l.b16 %v163
  %v184 = vunpack.c.h.b16 %v163
  %v185 = vunpack.c.l.b16 %v164
  %v186 = vunpack.c.h.b16 %v164
  %v187 = vunpack.c.l.b16 %v165
  %v188 = vunpack.c.h.b16 %v165
  %v189 = vunpack.c.l.b16 %v166
  %v190 = vunpack.c.h.b16 %v166
  %v191 = vpack.c.b16 %v175, %v175
  %v192 = vpack.c.b16 %v176, %v176
  %v193 = vpack.c.b16 %v177, %v177
  %v194 = vpack.c.b16 %v178, %v178
  %v195 = vpack.c.b16 %v179, %v179
  %v196 = vpack.c.b16 %v180, %v180
  %v197 = vpack.c.b16 %v181, %v181
  %v198 = vpack.c.b16 %v182, %v182
  %v199 = vpack.c.b16 %v183, %v183
  %v200 = vpack.c.b16 %v184, %v184
  %v201 = vpack.c.b16 %v185, %v185
  %v202 = vpack.c.b16 %v186, %v186
  %v203 = vpack.c.b16 %v187, %v187
  %v204 = vpack.c.b16 %v188, %v188
  %v205 = vpack.c.b16 %v189, %v189
  %v206 = vpack.c.b16 %v190, %v190
  %223 = vst [vmem:[%s4] sm:$0xf] %v191
  %224 = vst [vmem:[%s4 + $0x4] sm:$0xf] %v192
  %225 = vst [vmem:[%s4 + $0x8] sm:$0xf] %v193
  %226 = vst [vmem:[%s4 + $0xc] sm:$0xf] %v194
  %227 = vst [vmem:[%s4 + $0x10] sm:$0xf] %v195
  %228 = vst [vmem:[%s4 + $0x14] sm:$0xf] %v196
  %229 = vst [vmem:[%s4 + $0x18] sm:$0xf] %v197
  %230 = vst [vmem:[%s4 + $0x1c] sm:$0xf] %v198
  %231 = vst [vmem:[%s4 + $0x20] sm:$0xf] %v199
  %232 = vst [vmem:[%s4 + $0x24] sm:$0xf] %v200
  %233 = vst [vmem:[%s4 + $0x28] sm:$0xf] %v201
  %234 = vst [vmem:[%s4 + $0x2c] sm:$0xf] %v202
  %235 = vst [vmem:[%s4 + $0x30] sm:$0xf] %v203
  %236 = vst [vmem:[%s4 + $0x34] sm:$0xf] %v204
  %237 = vst [vmem:[%s4 + $0x38] sm:$0xf] %v205
  %238 = vst [vmem:[%s4 + $0x3c] sm:$0xf] %v206
  // Predicated region
  $region18: #{wide_resnet_forward.23} parent=0 // pred_check
    _
  $region19: #{wide_resnet_forward.23} parent=0 // pred_check_branch
    %240 = sbr.rel (0) target = $region21
  $region20: #{wide_resnet_forward.23} parent=0 // pred_region
    _
  $region21: #{wide_resnet_forward.23} parent=0 // pred_fallthru
    _
  // Predicated region
  $region22: #{wide_resnet_forward.23} parent=0 // pred_check
    _
  $region23: #{wide_resnet_forward.23} parent=0 // pred_check_branch
    %242 = sbr.rel (0) target = $region25
  $region24: #{wide_resnet_forward.23} parent=0 // pred_region
    _
  $region25: #{wide_resnet_forward.23} parent=0 // pred_fallthru
    _

// kernel: wide_resnet_forward.28
$region0: #{wide_resnet_forward.28}
  #allocation0 [shape = 'u32[]', space=smem, size = 0x4, offset = 0x4, fixed_abs, tag = 'smem constant byte address 0x4 - core index']
  #allocation1 [shape = 'u32[144,128]{1,0:T(1,128)}', space=vmem, size = 0x12000, scoped, tag = 'internal scratch']
  %s0 = inlined_call_operand.vmem [shape: bf16[32,128], index: 0, kind: input, shape index: {}]
  %s1 = inlined_call_operand.vmem [shape: bf16[128,128], index: 1, kind: input, shape index: {}]
  %s2 = inlined_call_operand.vmem [shape: bf16[32,128], index: 2, kind: output, shape index: {0}]
  %s3 = inlined_call_operand.vmem [shape: f32[8,128], index: 3, kind: output, shape index: {1}]
  %s4 = inlined_call_operand.vmem [shape: f32[8,128], index: 4, kind: output, shape index: {2}]
  %5 = xla_tuple %s2, %s3, %s4
  %s6 = sld [smem:[#allocation0]]
  $region34: #{wide_resnet_forward.28} parent=0
    _
  %s8 = ssub.s32 1, %s6
  %s9 = scalar_select 0, %s8, %s6
  // Predicated region
  $region2: #{wide_resnet_forward.28} parent=0 // pred_check
    _
  $region3: #{wide_resnet_forward.28} parent=0 // pred_check_branch
    %11 = sbr.rel (0) target = $region5
  $region4: #{wide_resnet_forward.28} parent=0 // pred_region
    _
  $region5: #{wide_resnet_forward.28} parent=0 // pred_fallthru
    _
  // Predicated region
  $region6: #{wide_resnet_forward.28} parent=0 // pred_check
    _
  $region7: #{wide_resnet_forward.28} parent=0 // pred_check_branch
    %13 = sbr.rel (0) target = $region9
  $region8: #{wide_resnet_forward.28} parent=0 // pred_region
    _
  $region9: #{wide_resnet_forward.28} parent=0 // pred_fallthru
    _
  %v15 = vld [vmem:[%s0] sm:$0xf]
  %v16 = vld [vmem:[%s0 + $0x4] sm:$0xf]
  %v17 = vld [vmem:[%s0 + $0x8] sm:$0xf]
  %v18 = vld [vmem:[%s0 + $0xc] sm:$0xf]
  %v19 = vld [vmem:[%s1] sm:$0xf]
  %v20 = vld [vmem:[%s1 + $0x4] sm:$0xf]
  %v21 = vld [vmem:[%s1 + $0x8] sm:$0xf]
  %v22 = vld [vmem:[%s1 + $0xc] sm:$0xf]
  %v23 = vld [vmem:[%s1 + $0x10] sm:$0xf]
  %v24 = vld [vmem:[%s1 + $0x14] sm:$0xf]
  %v25 = vld [vmem:[%s1 + $0x18] sm:$0xf]
  %v26 = vld [vmem:[%s1 + $0x1c] sm:$0xf]
  %v27 = vld [vmem:[%s1 + $0x20] sm:$0xf]
  %v28 = vld [vmem:[%s1 + $0x24] sm:$0xf]
  %v29 = vld [vmem:[%s1 + $0x28] sm:$0xf]
  %v30 = vld [vmem:[%s1 + $0x2c] sm:$0xf]
  %v31 = vld [vmem:[%s1 + $0x30] sm:$0xf]
  %v32 = vld [vmem:[%s1 + $0x34] sm:$0xf]
  %v33 = vld [vmem:[%s1 + $0x38] sm:$0xf]
  %v34 = vld [vmem:[%s1 + $0x3c] sm:$0xf]
  %v39 = vunpack.c.l.b16 %v15
  %v40 = vunpack.c.l.b16 %v16
  %v41 = vunpack.c.l.b16 %v17
  %v42 = vunpack.c.l.b16 %v18
  %v43 = vpack.c.b16 %v40, %v39
  %v44 = vpack.c.b16 %v42, %v41
  %v63 = vunpack.c.l.b16 %v19
  %v64 = vunpack.c.l.b16 %v20
  %v65 = vunpack.c.l.b16 %v21
  %v66 = vunpack.c.l.b16 %v22
  %v67 = vunpack.c.l.b16 %v23
  %v68 = vunpack.c.l.b16 %v24
  %v69 = vunpack.c.l.b16 %v25
  %v70 = vunpack.c.l.b16 %v26
  %v71 = vunpack.c.l.b16 %v27
  %v72 = vunpack.c.l.b16 %v28
  %v73 = vunpack.c.l.b16 %v29
  %v74 = vunpack.c.l.b16 %v30
  %v75 = vunpack.c.l.b16 %v31
  %v76 = vunpack.c.l.b16 %v32
  %v77 = vunpack.c.l.b16 %v33
  %v78 = vunpack.c.l.b16 %v34
  %v79 = vpack.c.b16 %v64, %v63
  %v80 = vpack.c.b16 %v66, %v65
  %v81 = vpack.c.b16 %v68, %v67
  %v82 = vpack.c.b16 %v70, %v69
  %v83 = vpack.c.b16 %v72, %v71
  %v84 = vpack.c.b16 %v74, %v73
  %v85 = vpack.c.b16 %v76, %v75
  %v86 = vpack.c.b16 %v78, %v77
  %95 = vmatprep.subr.bf16.mxu0 0
  %96 = vmatpush1.bf16.msra.mxu0 %v86
  %97 = vmatprep.subr.bf16.mxu0 0
  %98 = vmatpush1.bf16.msra.mxu0 %v85
  %99 = vmatprep.subr.bf16.mxu0 0
  %100 = vmatpush1.bf16.msra.mxu0 %v84
  %101 = vmatprep.subr.bf16.mxu0 0
  %102 = vmatpush1.bf16.msra.mxu0 %v83
  %103 = vmatprep.subr.bf16.mxu0 0
  %104 = vmatpush1.bf16.msra.mxu0 %v82
  %105 = vmatprep.subr.bf16.mxu0 0
  %106 = vmatpush1.bf16.msra.mxu0 %v81
  %107 = vmatprep.subr.bf16.mxu0 0
  %108 = vmatpush1.bf16.msra.mxu0 %v80
  %109 = vmatprep.subr.bf16.mxu0 0
  %110 = vmatpush1.bf16.msra.mxu0 %v79
  %111 = vmatprep.subr.bf16.mxu0 0
  %112 = vmatpush2.bf16.msra.mxu0 0
  %113 = vmatprep.subr.bf16.mxu0 0
  %114 = vmatpush2.bf16.msra.mxu0 0
  %115 = vmatprep.subr.bf16.mxu0 0
  %116 = vmatpush2.bf16.msra.mxu0 0
  %117 = vmatprep.subr.bf16.mxu0 0
  %118 = vmatpush2.bf16.msra.mxu0 0
  %119 = vmatprep.subr.bf16.mxu0 0
  %120 = vmatpush2.bf16.msra.mxu0 0
  %121 = vmatprep.subr.bf16.mxu0 0
  %122 = vmatpush2.bf16.msra.mxu0 0
  %123 = vmatprep.subr.bf16.mxu0 0
  %124 = vmatpush2.bf16.msra.mxu0 0
  %125 = vmatprep.subr.bf16.mxu0 0
  %126 = vmatpush2.bf16.msra.mxu0 0
  %127 = vmatprep.mubr.bf16.mxu0 0
  %128 = vmatmul.mubr.bf16.gmra.mxu0 %v43
  %v129 = vpop.f32.mrf.mxu0
  %v130 = vadd.f32 0.0, %v129
  %v131 = vpop.f32.mrf.mxu0
  %v132 = vpop.f32.mrf.mxu0
  %v133 = vadd.f32 0.0, %v132
  %v134 = vpop.f32.mrf.mxu0
  %135 = vmatprep.mubr.bf16.mxu0 0
  %136 = vmatmul.mubr.bf16.gmra.mxu0 %v44
  %v137 = vpop.f32.mrf.mxu0
  %v138 = vadd.f32 0.0, %v137
  %v139 = vpop.f32.mrf.mxu0
  %v140 = vpop.f32.mrf.mxu0
  %v141 = vadd.f32 0.0, %v140
  %v142 = vpop.f32.mrf.mxu0
  %143 = vdwg.mxu0
  %v144 = vpack.c.bf16 %v133, %v130
  %v145 = vpack.c.bf16 %v141, %v138
  %v148 = vunpack.c.l.b16 %v144
  %v149 = vunpack.c.h.b16 %v144
  %v150 = vunpack.c.l.b16 %v145
  %v151 = vunpack.c.h.b16 %v145
  %v152 = vpack.c.b16 %v148, %v148
  %v153 = vpack.c.b16 %v149, %v149
  %v154 = vpack.c.b16 %v150, %v150
  %v155 = vpack.c.b16 %v151, %v151
  %160 = vst [vmem:[%s2] sm:$0xf] %v152
  %161 = vst [vmem:[%s2 + $0x4] sm:$0xf] %v153
  %162 = vst [vmem:[%s2 + $0x8] sm:$0xf] %v154
  %163 = vst [vmem:[%s2 + $0xc] sm:$0xf] %v155
  %v164 = vadd.f32 %v130, %v133
  %v165 = vadd.f32 %v164, %v138
  %v166 = vadd.f32 %v165, %v141
  %v167 = vrot.slane %v166, 4
  %v168 = vadd.f32 %v166, %v167
  %v169 = vrot.slane %v168, 2
  %v170 = vadd.f32 %v168, %v169
  %v171 = vrot.slane %v170, 1
  %v172 = vadd.f32 %v170, %v171
  %173 = vst [vmem:[%s3] sm:$0xff] %v172
  %v174 = vmul.f32 %v130, %v130
  %v175 = vmul.f32 %v133, %v133
  %v176 = vmul.f32 %v138, %v138
  %v177 = vmul.f32 %v141, %v141
  %v178 = vadd.f32 %v174, %v175
  %v179 = vadd.f32 %v178, %v176
  %v180 = vadd.f32 %v179, %v177
  %v181 = vrot.slane %v180, 4
  %v182 = vadd.f32 %v180, %v181
  %v183 = vrot.slane %v182, 2
  %v184 = vadd.f32 %v182, %v183
  %v185 = vrot.slane %v184, 1
  %v186 = vadd.f32 %v184, %v185
  %187 = vst [vmem:[%s4] sm:$0xff] %v186
  // Predicated region
  $region10: #{wide_resnet_forward.28} parent=0 // pred_check
    _
  $region11: #{wide_resnet_forward.28} parent=0 // pred_check_branch
    %189 = sbr.rel (0) target = $region13
  $region12: #{wide_resnet_forward.28} parent=0 // pred_region
    _
  $region13: #{wide_resnet_forward.28} parent=0 // pred_fallthru
    _
  // Predicated region
  $region14: #{wide_resnet_forward.28} parent=0 // pred_check
    _
  $region15: #{wide_resnet_forward.28} parent=0 // pred_check_branch
    %191 = sbr.rel (0) target = $region17
  $region16: #{wide_resnet_forward.28} parent=0 // pred_region
    _
  $region17: #{wide_resnet_forward.28} parent=0 // pred_fallthru
    _
  // Predicated region
  $region18: #{wide_resnet_forward.28} parent=0 // pred_check
    _
  $region19: #{wide_resnet_forward.28} parent=0 // pred_check_branch
    %193 = sbr.rel (0) target = $region21
  $region20: #{wide_resnet_forward.28} parent=0 // pred_region
    _
  $region21: #{wide_resnet_forward.28} parent=0 // pred_fallthru
    _
  // Predicated region
  $region22: #{wide_resnet_forward.28} parent=0 // pred_check
    _
  $region23: #{wide_resnet_forward.28} parent=0 // pred_check_branch
    %195 = sbr.rel (0) target = $region25
  $region24: #{wide_resnet_forward.28} parent=0 // pred_region
    _
  $region25: #{wide_resnet_forward.28} parent=0 // pred_fallthru
    _
  // Predicated region
  $region26: #{wide_resnet_forward.28} parent=0 // pred_check
    _
  $region27: #{wide_resnet_forward.28} parent=0 // pred_check_branch
    %197 = sbr.rel (0) target = $region29
  $region28: #{wide_resnet_forward.28} parent=0 // pred_region
    _
  $region29: #{wide_resnet_forward.28} parent=0 // pred_fallthru
    _
  // Predicated region
  $region30: #{wide_resnet_forward.28} parent=0 // pred_check
    _
  $region31: #{wide_resnet_forward.28} parent=0 // pred_check_branch
    %199 = sbr.rel (0) target = $region33
  $region32: #{wide_resnet_forward.28} parent=0 // pred_region
    _
  $region33: #{wide_resnet_forward.28} parent=0 // pred_fallthru
    _

// kernel: wide_resnet_forward.29
$region0: #{wide_resnet_forward.29}
  #allocation0 [shape = 'u32[]', space=smem, size = 0x4, offset = 0x4, fixed_abs, tag = 'smem constant byte address 0x4 - core index']
  #allocation1 [shape = 'u32[144,128]{1,0:T(1,128)}', space=vmem, size = 0x12000, scoped, tag = 'internal scratch']
  %s0 = inlined_call_operand.vmem [shape: bf16[32,128], index: 0, kind: input, shape index: {}, may-alias: {0,4}]
  %s1 = inlined_call_operand.vmem [shape: f32[1,128], index: 1, kind: input, shape index: {}]
  %s2 = inlined_call_operand.vmem [shape: f32[1,128], index: 2, kind: input, shape index: {}]
  %s3 = inlined_call_operand.vmem [shape: bf16[32,128], index: 3, kind: input, shape index: {}]
  %s4 = inlined_call_operand.vmem [shape: bf16[32,128], index: 4, kind: output, shape index: {}, may-alias: {0,4}]
  %s5 = sld [smem:[#allocation0]]
  $region26: #{wide_resnet_forward.29} parent=0
    _
  %s7 = ssub.s32 1, %s5
  %s8 = scalar_select 0, %s7, %s5
  // Predicated region
  $region2: #{wide_resnet_forward.29} parent=0 // pred_check
    _
  $region3: #{wide_resnet_forward.29} parent=0 // pred_check_branch
    %10 = sbr.rel (0) target = $region5
  $region4: #{wide_resnet_forward.29} parent=0 // pred_region
    _
  $region5: #{wide_resnet_forward.29} parent=0 // pred_fallthru
    _
  // Predicated region
  $region6: #{wide_resnet_forward.29} parent=0 // pred_check
    _
  $region7: #{wide_resnet_forward.29} parent=0 // pred_check_branch
    %12 = sbr.rel (0) target = $region9
  $region8: #{wide_resnet_forward.29} parent=0 // pred_region
    _
  $region9: #{wide_resnet_forward.29} parent=0 // pred_fallthru
    _
  // Predicated region
  $region10: #{wide_resnet_forward.29} parent=0 // pred_check
    _
  $region11: #{wide_resnet_forward.29} parent=0 // pred_check_branch
    %14 = sbr.rel (0) target = $region13
  $region12: #{wide_resnet_forward.29} parent=0 // pred_region
    _
  $region13: #{wide_resnet_forward.29} parent=0 // pred_fallthru
    _
  // Predicated region
  $region14: #{wide_resnet_forward.29} parent=0 // pred_check
    _
  $region15: #{wide_resnet_forward.29} parent=0 // pred_check_branch
    %16 = sbr.rel (0) target = $region17
  $region16: #{wide_resnet_forward.29} parent=0 // pred_region
    _
  $region17: #{wide_resnet_forward.29} parent=0 // pred_fallthru
    _
  %v17 = vld [vmem:[%s0] sm:$0xf]
  %v18 = vld [vmem:[%s0 + $0x4] sm:$0xf]
  %v19 = vld [vmem:[%s0 + $0x8] sm:$0xf]
  %v20 = vld [vmem:[%s0 + $0xc] sm:$0xf]
  %v21 = vunpack.c.l.bf16 %v17
  %v22 = vunpack.c.l.bf16 %v18
  %v23 = vunpack.c.l.bf16 %v19
  %v24 = vunpack.c.l.bf16 %v20
  %v25 = vld [vmem:[%s1] sm:$0x1]
  %v27 = vlaneseq
  %v28 = vshrl.u32 %v27, 7
  %v29 = vsub.s32 0, %v28
  %v30 = vrot.slane %v25, %v29
  %v32 = vmul.f32 %v21, %v30
  %v33 = vmul.f32 %v22, %v30
  %v34 = vmul.f32 %v23, %v30
  %v35 = vmul.f32 %v24, %v30
  %v36 = vld [vmem:[%s2] sm:$0x1]
  %v38 = vlaneseq
  %v39 = vshrl.u32 %v38, 7
  %v40 = vsub.s32 0, %v39
  %v41 = vrot.slane %v36, %v40
  %v43 = vadd.f32 %v32, %v41
  %v44 = vadd.f32 %v33, %v41
  %v45 = vadd.f32 %v34, %v41
  %v46 = vadd.f32 %v35, %v41
  %v47 = vmax.f32 %v43, 0.0
  %v48 = vmax.f32 %v44, 0.0
  %v49 = vmax.f32 %v45, 0.0
  %v50 = vmax.f32 %v46, 0.0
  %v51 = vld [vmem:[%s3] sm:$0xf]
  %v52 = vld [vmem:[%s3 + $0x4] sm:$0xf]
  %v53 = vld [vmem:[%s3 + $0x8] sm:$0xf]
  %v54 = vld [vmem:[%s3 + $0xc] sm:$0xf]
  %v55 = vunpack.c.l.bf16 %v51
  %v56 = vunpack.c.l.bf16 %v52
  %v57 = vunpack.c.l.bf16 %v53
  %v58 = vunpack.c.l.bf16 %v54
  %v59 = vadd.f32 %v47, %v55
  %v60 = vadd.f32 %v48, %v56
  %v61 = vadd.f32 %v49, %v57
  %v62 = vadd.f32 %v50, %v58
  %v63 = vpack.c.bf16 %v60, %v59
  %v64 = vpack.c.bf16 %v62, %v61
  %v67 = vunpack.c.l.b16 %v63
  %v68 = vunpack.c.h.b16 %v63
  %v69 = vunpack.c.l.b16 %v64
  %v70 = vunpack.c.h.b16 %v64
  %v71 = vpack.c.b16 %v67, %v67
  %v72 = vpack.c.b16 %v68, %v68
  %v73 = vpack.c.b16 %v69, %v69
  %v74 = vpack.c.b16 %v70, %v70
  %79 = vst [vmem:[%s4] sm:$0xf] %v71
  %80 = vst [vmem:[%s4 + $0x4] sm:$0xf] %v72
  %81 = vst [vmem:[%s4 + $0x8] sm:$0xf] %v73
  %82 = vst [vmem:[%s4 + $0xc] sm:$0xf] %v74
  // Predicated region
  $region18: #{wide_resnet_forward.29} parent=0 // pred_check
    _
  $region19: #{wide_resnet_forward.29} parent=0 // pred_check_branch
    %84 = sbr.rel (0) target = $region21
  $region20: #{wide_resnet_forward.29} parent=0 // pred_region
    _
  $region21: #{wide_resnet_forward.29} parent=0 // pred_fallthru
    _
  // Predicated region
  $region22: #{wide_resnet_forward.29} parent=0 // pred_check
    _
  $region23: #{wide_resnet_forward.29} parent=0 // pred_check_branch
    %86 = sbr.rel (0) target = $region25
  $region24: #{wide_resnet_forward.29} parent=0 // pred_region
    _
  $region25: #{wide_resnet_forward.29} parent=0 // pred_fallthru
    _

// kernel: wide_resnet_forward.27
$region0: #{wide_resnet_forward.27}
  #allocation0 [shape = 'u32[]', space=smem, size = 0x4, offset = 0x4, fixed_abs, tag = 'smem constant byte address 0x4 - core index']
  #allocation1 [shape = 'u32[144,128]{1,0:T(1,128)}', space=vmem, size = 0x12000, scoped, tag = 'internal scratch']
  %s0 = inlined_call_operand.vmem [shape: bf16[32,128], index: 0, kind: input, shape index: {}, may-alias: {0,3}]
  %s1 = inlined_call_operand.vmem [shape: f32[1,128], index: 1, kind: input, shape index: {}]
  %s2 = inlined_call_operand.vmem [shape: f32[1,128], index: 2, kind: input, shape index: {}]
  %s3 = inlined_call_operand.vmem [shape: bf16[32,128], index: 3, kind: output, shape index: {}, may-alias: {0,3}]
  %s4 = sld [smem:[#allocation0]]
  $region22: #{wide_resnet_forward.27} parent=0
    _
  %s6 = ssub.s32 1, %s4
  %s7 = scalar_select 0, %s6, %s4
  // Predicated region
  $region2: #{wide_resnet_forward.27} parent=0 // pred_check
    _
  $region3: #{wide_resnet_forward.27} parent=0 // pred_check_branch
    %9 = sbr.rel (0) target = $region5
  $region4: #{wide_resnet_forward.27} parent=0 // pred_region
    _
  $region5: #{wide_resnet_forward.27} parent=0 // pred_fallthru
    _
  // Predicated region
  $region6: #{wide_resnet_forward.27} parent=0 // pred_check
    _
  $region7: #{wide_resnet_forward.27} parent=0 // pred_check_branch
    %11 = sbr.rel (0) target = $region9
  $region8: #{wide_resnet_forward.27} parent=0 // pred_region
    _
  $region9: #{wide_resnet_forward.27} parent=0 // pred_fallthru
    _
  // Predicated region
  $region10: #{wide_resnet_forward.27} parent=0 // pred_check
    _
  $region11: #{wide_resnet_forward.27} parent=0 // pred_check_branch
    %13 = sbr.rel (0) target = $region13
  $region12: #{wide_resnet_forward.27} parent=0 // pred_region
    _
  $region13: #{wide_resnet_forward.27} parent=0 // pred_fallthru
    _
  %v14 = vld [vmem:[%s0] sm:$0xf]
  %v15 = vld [vmem:[%s0 + $0x4] sm:$0xf]
  %v16 = vld [vmem:[%s0 + $0x8] sm:$0xf]
  %v17 = vld [vmem:[%s0 + $0xc] sm:$0xf]
  %v18 = vunpack.c.l.bf16 %v14
  %v19 = vunpack.c.l.bf16 %v15
  %v20 = vunpack.c.l.bf16 %v16
  %v21 = vunpack.c.l.bf16 %v17
  %v22 = vld [vmem:[%s1] sm:$0x1]
  %v24 = vlaneseq
  %v25 = vshrl.u32 %v24, 7
  %v26 = vsub.s32 0, %v25
  %v27 = vrot.slane %v22, %v26
  %v29 = vmul.f32 %v18, %v27
  %v30 = vmul.f32 %v19, %v27
  %v31 = vmul.f32 %v20, %v27
  %v32 = vmul.f32 %v21, %v27
  %v33 = vld [vmem:[%s2] sm:$0x1]
  %v35 = vlaneseq
  %v36 = vshrl.u32 %v35, 7
  %v37 = vsub.s32 0, %v36
  %v38 = vrot.slane %v33, %v37
  %v40 = vadd.f32 %v29, %v38
  %v41 = vadd.f32 %v30, %v38
  %v42 = vadd.f32 %v31, %v38
  %v43 = vadd.f32 %v32, %v38
  %v44 = vpack.c.bf16 %v41, %v40
  %v45 = vpack.c.bf16 %v43, %v42
  %v48 = vunpack.c.l.b16 %v44
  %v49 = vunpack.c.h.b16 %v44
  %v50 = vunpack.c.l.b16 %v45
  %v51 = vunpack.c.h.b16 %v45
  %v52 = vpack.c.b16 %v48, %v48
  %v53 = vpack.c.b16 %v49, %v49
  %v54 = vpack.c.b16 %v50, %v50
  %v55 = vpack.c.b16 %v51, %v51
  %60 = vst [vmem:[%s3] sm:$0xf] %v52
  %61 = vst [vmem:[%s3 + $0x4] sm:$0xf] %v53
  %62 = vst [vmem:[%s3 + $0x8] sm:$0xf] %v54
  %63 = vst [vmem:[%s3 + $0xc] sm:$0xf] %v55
  // Predicated region
  $region14: #{wide_resnet_forward.27} parent=0 // pred_check
    _
  $region15: #{wide_resnet_forward.27} parent=0 // pred_check_branch
    %65 = sbr.rel (0) target = $region17
  $region16: #{wide_resnet_forward.27} parent=0 // pred_region
    _
  $region17: #{wide_resnet_forward.27} parent=0 // pred_fallthru
    _
  // Predicated region
  $region18: #{wide_resnet_forward.27} parent=0 // pred_check
    _
  $region19: #{wide_resnet_forward.27} parent=0 // pred_check_branch
    %67 = sbr.rel (0) target = $region21
  $region20: #{wide_resnet_forward.27} parent=0 // pred_region
    _
  $region21: #{wide_resnet_forward.27} parent=0 // pred_fallthru
    _

// kernel: wide_resnet_forward.30
$region0: #{wide_resnet_forward.30}
  #allocation0 [shape = 'u32[]', space=smem, size = 0x4, offset = 0x4, fixed_abs, tag = 'smem constant byte address 0x4 - core index']
  #allocation1 [shape = 'u32[144,128]{1,0:T(1,128)}', space=vmem, size = 0x12000, scoped, tag = 'internal scratch']
  %s0 = inlined_call_operand.vmem [shape: bf16[16,128], index: 0, kind: input, shape index: {}]
  %s1 = inlined_call_operand.vmem [shape: bf16[128,256], index: 1, kind: input, shape index: {}]
  %s2 = inlined_call_operand.vmem [shape: f32[1,256], index: 2, kind: input, shape index: {}]
  %s3 = inlined_call_operand.vmem [shape: bf16[16,256], index: 3, kind: output, shape index: {}]
  %s4 = sld [smem:[#allocation0]]
  $region22: #{wide_resnet_forward.30} parent=0
    _
  %s6 = ssub.s32 1, %s4
  %s7 = scalar_select 0, %s6, %s4
  // Predicated region
  $region2: #{wide_resnet_forward.30} parent=0 // pred_check
    _
  $region3: #{wide_resnet_forward.30} parent=0 // pred_check_branch
    %9 = sbr.rel (0) target = $region5
  $region4: #{wide_resnet_forward.30} parent=0 // pred_region
    _
  $region5: #{wide_resnet_forward.30} parent=0 // pred_fallthru
    _
  // Predicated region
  $region6: #{wide_resnet_forward.30} parent=0 // pred_check
    _
  $region7: #{wide_resnet_forward.30} parent=0 // pred_check_branch
    %11 = sbr.rel (0) target = $region9
  $region8: #{wide_resnet_forward.30} parent=0 // pred_region
    _
  $region9: #{wide_resnet_forward.30} parent=0 // pred_fallthru
    _
  // Predicated region
  $region10: #{wide_resnet_forward.30} parent=0 // pred_check
    _
  $region11: #{wide_resnet_forward.30} parent=0 // pred_check_branch
    %13 = sbr.rel (0) target = $region13
  $region12: #{wide_resnet_forward.30} parent=0 // pred_region
    _
  $region13: #{wide_resnet_forward.30} parent=0 // pred_fallthru
    _
  %v15 = vld [vmem:[%s0] sm:$0xf]
  %v16 = vld [vmem:[%s0 + $0x4] sm:$0xf]
  %v17 = vld [vmem:[%s1] sm:$0xff]
  %v18 = vld [vmem:[%s1 + $0x8] sm:$0xff]
  %v19 = vld [vmem:[%s1 + $0x10] sm:$0xff]
  %v20 = vld [vmem:[%s1 + $0x18] sm:$0xff]
  %v21 = vld [vmem:[%s1 + $0x20] sm:$0xff]
  %v22 = vld [vmem:[%s1 + $0x28] sm:$0xff]
  %v23 = vld [vmem:[%s1 + $0x30] sm:$0xff]
  %v24 = vld [vmem:[%s1 + $0x38] sm:$0xff]
  %v25 = vld [vmem:[%s1 + $0x40] sm:$0xff]
  %v26 = vld [vmem:[%s1 + $0x48] sm:$0xff]
  %v27 = vld [vmem:[%s1 + $0x50] sm:$0xff]
  %v28 = vld [vmem:[%s1 + $0x58] sm:$0xff]
  %v29 = vld [vmem:[%s1 + $0x60] sm:$0xff]
  %v30 = vld [vmem:[%s1 + $0x68] sm:$0xff]
  %v31 = vld [vmem:[%s1 + $0x70] sm:$0xff]
  %v32 = vld [vmem:[%s1 + $0x78] sm:$0xff]
  %v33 = vld [vmem:[%s2] sm:$0x3]
  %v35 = vlaneseq
  %v36 = vshrl.u32 %v35, 7
  %v37 = vsub.s32 0, %v36
  %v38 = vrot.slane %v33, %v37
  %v39 = vlaneseq
  %v40 = vshrl.u32 %v39, 7
  %v41 = vsub.s32 1, %v40
  %v42 = vrot.slane %v33, %v41
  %v47 = vunpack.c.l.b16 %v15
  %v48 = vunpack.c.l.b16 %v16
  %v49 = vpack.c.b16 %v48, %v47
  %v67 = vunpack.c.l.b16 %v17
  %v68 = vunpack.c.h.b16 %v17
  %v69 = vunpack.c.l.b16 %v18
  %v70 = vunpack.c.h.b16 %v18
  %v71 = vunpack.c.l.b16 %v19
  %v72 = vunpack.c.h.b16 %v19
  %v73 = vunpack.c.l.b16 %v20
  %v74 = vunpack.c.h.b16 %v20
  %v75 = vunpack.c.l.b16 %v21
  %v76 = vunpack.c.h.b16 %v21
  %v77 = vunpack.c.l.b16 %v22
  %v78 = vunpack.c.h.b16 %v22
  %v79 = vunpack.c.l.b16 %v23
  %v80 = vunpack.c.h.b16 %v23
  %v81 = vunpack.c.l.b16 %v24
  %v82 = vunpack.c.h.b16 %v24
  %v83 = vunpack.c.l.b16 %v25
  %v84 = vunpack.c.h.b16 %v25
  %v85 = vunpack.c.l.b16 %v26
  %v86 = vunpack.c.h.b16 %v26
  %v87 = vunpack.c.l.b16 %v27
  %v88 = vunpack.c.h.b16 %v27
  %v89 = vunpack.c.l.b16 %v28
  %v90 = vunpack.c.h.b16 %v28
  %v91 = vunpack.c.l.b16 %v29
  %v92 = vunpack.c.h.b16 %v29
  %v93 = vunpack.c.l.b16 %v30
  %v94 = vunpack.c.h.b16 %v30
  %v95 = vunpack.c.l.b16 %v31
  %v96 = vunpack.c.h.b16 %v31
  %v97 = vunpack.c.l.b16 %v32
  %v98 = vunpack.c.h.b16 %v32
  %v99 = vpack.c.b16 %v69, %v67
  %v100 = vpack.c.b16 %v70, %v68
  %v101 = vpack.c.b16 %v73, %v71
  %v102 = vpack.c.b16 %v74, %v72
  %v103 = vpack.c.b16 %v77, %v75
  %v104 = vpack.c.b16 %v78, %v76
  %v105 = vpack.c.b16 %v81, %v79
  %v106 = vpack.c.b16 %v82, %v80
  %v107 = vpack.c.b16 %v85, %v83
  %v108 = vpack.c.b16 %v86, %v84
  %v109 = vpack.c.b16 %v89, %v87
  %v110 = vpack.c.b16 %v90, %v88
  %v111 = vpack.c.b16 %v93, %v91
  %v112 = vpack.c.b16 %v94, %v92
  %v113 = vpack.c.b16 %v97, %v95
  %v114 = vpack.c.b16 %v98, %v96
  %131 = vmatprep.subr.bf16.mxu0 %v114
  %132 = vmatpush1.bf16.msra.mxu0 %v113
  %133 = vmatprep.subr.bf16.mxu0 %v112
  %134 = vmatpush1.bf16.msra.mxu0 %v111
  %135 = vmatprep.subr.bf16.mxu0 %v110
  %136 = vmatpush1.bf16.msra.mxu0 %v109
  %137 = vmatprep.subr.bf16.mxu0 %v108
  %138 = vmatpush1.bf16.msra.mxu0 %v107
  %139 = vmatprep.subr.bf16.mxu0 %v106
  %140 = vmatpush1.bf16.msra.mxu0 %v105
  %141 = vmatprep.subr.bf16.mxu0 %v104
  %142 = vmatpush1.bf16.msra.mxu0 %v103
  %143 = vmatprep.subr.bf16.mxu0 %v102
  %144 = vmatpush1.bf16.msra.mxu0 %v101
  %145 = vmatprep.subr.bf16.mxu0 %v100
  %146 = vmatpush1.bf16.msra.mxu0 %v99
  %147 = vmatprep.subr.bf16.mxu0 0
  %148 = vmatpush2.bf16.msra.mxu0 0
  %149 = vmatprep.subr.bf16.mxu0 0
  %150 = vmatpush2.bf16.msra.mxu0 0
  %151 = vmatprep.subr.bf16.mxu0 0
  %152 = vmatpush2.bf16.msra.mxu0 0
  %153 = vmatprep.subr.bf16.mxu0 0
  %154 = vmatpush2.bf16.msra.mxu0 0
  %155 = vmatprep.subr.bf16.mxu0 0
  %156 = vmatpush2.bf16.msra.mxu0 0
  %157 = vmatprep.subr.bf16.mxu0 0
  %158 = vmatpush2.bf16.msra.mxu0 0
  %159 = vmatprep.subr.bf16.mxu0 0
  %160 = vmatpush2.bf16.msra.mxu0 0
  %161 = vmatprep.subr.bf16.mxu0 0
  %162 = vmatpush2.bf16.msra.mxu0 0
  %163 = vmatprep.mubr.bf16.mxu0 0
  %164 = vmatmul.mubr.bf16.gmra.mxu0 %v49
  %v165 = vpop.f32.mrf.mxu0
  %v166 = vadd.f32 %v38, %v165
  %v167 = vpop.f32.mrf.mxu0
  %v168 = vadd.f32 %v42, %v167
  %v169 = vpop.f32.mrf.mxu0
  %v170 = vadd.f32 %v38, %v169
  %v171 = vpop.f32.mrf.mxu0
  %v172 = vadd.f32 %v42, %v171
  %173 = vdwg.mxu0
  %v174 = vmax.f32 %v166, 0.0
  %v175 = vmax.f32 %v168, 0.0
  %v176 = vmax.f32 %v170, 0.0
  %v177 = vmax.f32 %v172, 0.0
  %v178 = vpack.c.bf16 %v176, %v174
  %v179 = vpack.c.bf16 %v177, %v175
  %v182 = vunpack.c.l.b16 %v178
  %v183 = vunpack.c.l.b16 %v179
  %v184 = vunpack.c.h.b16 %v178
  %v185 = vunpack.c.h.b16 %v179
  %v186 = vpack.c.b16 %v183, %v182
  %v187 = vpack.c.b16 %v185, %v184
  %190 = vst [vmem:[%s3] sm:$0xff] %v186
  %191 = vst [vmem:[%s3 + $0x8] sm:$0xff] %v187
  // Predicated region
  $region14: #{wide_resnet_forward.30} parent=0 // pred_check
    _
  $region15: #{wide_resnet_forward.30} parent=0 // pred_check_branch
    %193 = sbr.rel (0) target = $region17
  $region16: #{wide_resnet_forward.30} parent=0 // pred_region
    _
  $region17: #{wide_resnet_forward.30} parent=0 // pred_fallthru
    _
  // Predicated region
  $region18: #{wide_resnet_forward.30} parent=0 // pred_check
    _
  $region19: #{wide_resnet_forward.30} parent=0 // pred_check_branch
    %195 = sbr.rel (0) target = $region21
  $region20: #{wide_resnet_forward.30} parent=0 // pred_region
    _
  $region21: #{wide_resnet_forward.30} parent=0 // pred_fallthru
    _

// kernel: wide_resnet_forward.31
$region0: #{wide_resnet_forward.31}
  #allocation0 [shape = 'u32[]', space=smem, size = 0x4, offset = 0x4, fixed_abs, tag = 'smem constant byte address 0x4 - core index']
  #allocation1 [shape = 'u32[144,128]{1,0:T(1,128)}', space=vmem, size = 0x12000, scoped, tag = 'internal scratch']
  %s0 = inlined_call_operand.vmem [shape: bf16[16,256], index: 0, kind: input, shape index: {}]
  %s1 = inlined_call_operand.vmem [shape: bf16[256,128], index: 1, kind: input, shape index: {}]
  %s2 = inlined_call_operand.vmem [shape: f32[1,128], index: 2, kind: input, shape index: {}]
  %s3 = inlined_call_operand.vmem [shape: f32[16,128], index: 3, kind: output, shape index: {}]
  %s4 = sld [smem:[#allocation0]]
  $region22: #{wide_resnet_forward.31} parent=0
    _
  %s6 = ssub.s32 1, %s4
  %s7 = scalar_select 0, %s6, %s4
  // Predicated region
  $region2: #{wide_resnet_forward.31} parent=0 // pred_check
    _
  $region3: #{wide_resnet_forward.31} parent=0 // pred_check_branch
    %9 = sbr.rel (0) target = $region5
  $region4: #{wide_resnet_forward.31} parent=0 // pred_region
    _
  $region5: #{wide_resnet_forward.31} parent=0 // pred_fallthru
    _
  // Predicated region
  $region6: #{wide_resnet_forward.31} parent=0 // pred_check
    _
  $region7: #{wide_resnet_forward.31} parent=0 // pred_check_branch
    %11 = sbr.rel (0) target = $region9
  $region8: #{wide_resnet_forward.31} parent=0 // pred_region
    _
  $region9: #{wide_resnet_forward.31} parent=0 // pred_fallthru
    _
  // Predicated region
  $region10: #{wide_resnet_forward.31} parent=0 // pred_check
    _
  $region11: #{wide_resnet_forward.31} parent=0 // pred_check_branch
    %13 = sbr.rel (0) target = $region13
  $region12: #{wide_resnet_forward.31} parent=0 // pred_region
    _
  $region13: #{wide_resnet_forward.31} parent=0 // pred_fallthru
    _
  %v15 = vld [vmem:[%s0] sm:$0xff]
  %v16 = vld [vmem:[%s0 + $0x8] sm:$0xff]
  %v17 = vld [vmem:[%s1] sm:$0xf]
  %v18 = vld [vmem:[%s1 + $0x4] sm:$0xf]
  %v19 = vld [vmem:[%s1 + $0x8] sm:$0xf]
  %v20 = vld [vmem:[%s1 + $0xc] sm:$0xf]
  %v21 = vld [vmem:[%s1 + $0x10] sm:$0xf]
  %v22 = vld [vmem:[%s1 + $0x14] sm:$0xf]
  %v23 = vld [vmem:[%s1 + $0x18] sm:$0xf]
  %v24 = vld [vmem:[%s1 + $0x1c] sm:$0xf]
  %v25 = vld [vmem:[%s1 + $0x20] sm:$0xf]
  %v26 = vld [vmem:[%s1 + $0x24] sm:$0xf]
  %v27 = vld [vmem:[%s1 + $0x28] sm:$0xf]
  %v28 = vld [vmem:[%s1 + $0x2c] sm:$0xf]
  %v29 = vld [vmem:[%s1 + $0x30] sm:$0xf]
  %v30 = vld [vmem:[%s1 + $0x34] sm:$0xf]
  %v31 = vld [vmem:[%s1 + $0x38] sm:$0xf]
  %v32 = vld [vmem:[%s1 + $0x3c] sm:$0xf]
  %v33 = vld [vmem:[%s1 + $0x40] sm:$0xf]
  %v34 = vld [vmem:[%s1 + $0x44] sm:$0xf]
  %v35 = vld [vmem:[%s1 + $0x48] sm:$0xf]
  %v36 = vld [vmem:[%s1 + $0x4c] sm:$0xf]
  %v37 = vld [vmem:[%s1 + $0x50] sm:$0xf]
  %v38 = vld [vmem:[%s1 + $0x54] sm:$0xf]
  %v39 = vld [vmem:[%s1 + $0x58] sm:$0xf]
  %v40 = vld [vmem:[%s1 + $0x5c] sm:$0xf]
  %v41 = vld [vmem:[%s1 + $0x60] sm:$0xf]
  %v42 = vld [vmem:[%s1 + $0x64] sm:$0xf]
  %v43 = vld [vmem:[%s1 + $0x68] sm:$0xf]
  %v44 = vld [vmem:[%s1 + $0x6c] sm:$0xf]
  %v45 = vld [vmem:[%s1 + $0x70] sm:$0xf]
  %v46 = vld [vmem:[%s1 + $0x74] sm:$0xf]
  %v47 = vld [vmem:[%s1 + $0x78] sm:$0xf]
  %v48 = vld [vmem:[%s1 + $0x7c] sm:$0xf]
  %v49 = vld [vmem:[%s2] sm:$0x1]
  %v51 = vlaneseq
  %v52 = vshrl.u32 %v51, 7
  %v53 = vsub.s32 0, %v52
  %v54 = vrot.slane %v49, %v53
  %v58 = vunpack.c.l.b16 %v15
  %v59 = vunpack.c.h.b16 %v15
  %v60 = vunpack.c.l.b16 %v16
  %v61 = vunpack.c.h.b16 %v16
  %v62 = vpack.c.b16 %v60, %v58
  %v63 = vpack.c.b16 %v61, %v59
  %v98 = vunpack.c.l.b16 %v17
  %v99 = vunpack.c.l.b16 %v18
  %v100 = vunpack.c.l.b16 %v19
  %v101 = vunpack.c.l.b16 %v20
  %v102 = vunpack.c.l.b16 %v21
  %v103 = vunpack.c.l.b16 %v22
  %v104 = vunpack.c.l.b16 %v23
  %v105 = vunpack.c.l.b16 %v24
  %v106 = vunpack.c.l.b16 %v25
  %v107 = vunpack.c.l.b16 %v26
  %v108 = vunpack.c.l.b16 %v27
  %v109 = vunpack.c.l.b16 %v28
  %v110 = vunpack.c.l.b16 %v29
  %v111 = vunpack.c.l.b16 %v30
  %v112 = vunpack.c.l.b16 %v31
  %v113 = vunpack.c.l.b16 %v32
  %v114 = vunpack.c.l.b16 %v33
  %v115 = vunpack.c.l.b16 %v34
  %v116 = vunpack.c.l.b16 %v35
  %v117 = vunpack.c.l.b16 %v36
  %v118 = vunpack.c.l.b16 %v37
  %v119 = vunpack.c.l.b16 %v38
  %v120 = vunpack.c.l.b16 %v39
  %v121 = vunpack.c.l.b16 %v40
  %v122 = vunpack.c.l.b16 %v41
  %v123 = vunpack.c.l.b16 %v42
  %v124 = vunpack.c.l.b16 %v43
  %v125 = vunpack.c.l.b16 %v44
  %v126 = vunpack.c.l.b16 %v45
  %v127 = vunpack.c.l.b16 %v46
  %v128 = vunpack.c.l.b16 %v47
  %v129 = vunpack.c.l.b16 %v48
  %v130 = vpack.c.b16 %v99, %v98
  %v131 = vpack.c.b16 %v101, %v100
  %v132 = vpack.c.b16 %v103, %v102
  %v133 = vpack.c.b16 %v105, %v104
  %v134 = vpack.c.b16 %v107, %v106
  %v135 = vpack.c.b16 %v109, %v108
  %v136 = vpack.c.b16 %v111, %v110
  %v137 = vpack.c.b16 %v113, %v112
  %v138 = vpack.c.b16 %v115, %v114
  %v139 = vpack.c.b16 %v117, %v116
  %v140 = vpack.c.b16 %v119, %v118
  %v141 = vpack.c.b16 %v121, %v120
  %v142 = vpack.c.b16 %v123, %v122
  %v143 = vpack.c.b16 %v125, %v124
  %v144 = vpack.c.b16 %v127, %v126
  %v145 = vpack.c.b16 %v129, %v128
  %162 = vmatprep.subr.bf16.mxu0 0
  %163 = vmatpush1.bf16.msra.mxu0 %v137
  %164 = vmatprep.subr.bf16.mxu0 0
  %165 = vmatpush1.bf16.msra.mxu0 %v136
  %166 = vmatprep.subr.bf16.mxu0 0
  %167 = vmatpush1.bf16.msra.mxu0 %v135
  %168 = vmatprep.subr.bf16.mxu0 0
  %169 = vmatpush1.bf16.msra.mxu0 %v134
  %170 = vmatprep.subr.bf16.mxu0 0
  %171 = vmatpush1.bf16.msra.mxu0 %v133
  %172 = vmatprep.subr.bf16.mxu0 0
  %173 = vmatpush1.bf16.msra.mxu0 %v132
  %174 = vmatprep.subr.bf16.mxu0 0
  %175 = vmatpush1.bf16.msra.mxu0 %v131
  %176 = vmatprep.subr.bf16.mxu0 0
  %177 = vmatpush1.bf16.msra.mxu0 %v130
  %178 = vmatprep.subr.bf16.mxu0 0
  %179 = vmatpush2.bf16.msra.mxu0 %v145
  %180 = vmatprep.subr.bf16.mxu0 0
  %181 = vmatpush2.bf16.msra.mxu0 %v144
  %182 = vmatprep.subr.bf16.mxu0 0
  %183 = vmatpush2.bf16.msra.mxu0 %v143
  %184 = vmatprep.subr.bf16.mxu0 0
  %185 = vmatpush2.bf16.msra.mxu0 %v142
  %186 = vmatprep.subr.bf16.mxu0 0
  %187 = vmatpush2.bf16.msra.mxu0 %v141
  %188 = vmatprep.subr.bf16.mxu0 0
  %189 = vmatpush2.bf16.msra.mxu0 %v140
  %190 = vmatprep.subr.bf16.mxu0 0
  %191 = vmatpush2.bf16.msra.mxu0 %v139
  %192 = vmatprep.subr.bf16.mxu0 0
  %193 = vmatpush2.bf16.msra.mxu0 %v138
  %194 = vmatprep.mubr.bf16.mxu0 %v63
  %195 = vmatmul.mubr.bf16.gmra.mxu0 %v62
  %v196 = vpop.f32.mrf.mxu0
  %v197 = vadd.f32 %v54, %v196
  %v198 = vpop.f32.mrf.mxu0
  %v199 = vpop.f32.mrf.mxu0
  %v200 = vadd.f32 %v54, %v199
  %v201 = vpop.f32.mrf.mxu0
  %202 = vdwg.mxu0
  %203 = vst [vmem:[%s3] sm:$0xff] %v197
  %204 = vst [vmem:[%s3 + $0x8] sm:$0xff] %v200
  // Predicated region
  $region14: #{wide_resnet_forward.31} parent=0 // pred_check
    _
  $region15: #{wide_resnet_forward.31} parent=0 // pred_check_branch
    %206 = sbr.rel (0) target = $region17
  $region16: #{wide_resnet_forward.31} parent=0 // pred_region
    _
  $region17: #{wide_resnet_forward.31} parent=0 // pred_fallthru
    _
  // Predicated region
  $region18: #{wide_resnet_forward.31} parent=0 // pred_check
    _
  $region19: #{wide_resnet_forward.31} parent=0 // pred_check_branch
    %208 = sbr.rel (0) target = $region21
  $region20: #{wide_resnet_forward.31} parent=0 // pred_region
    _
  $region21: #{wide_resnet_forward.31} parent=0 // pred_fallthru
    _

</llo_original>
